<compile_context>
chip_gen: v7x
topology: tpu7x:2x2x1
jax: 0.10.0
libtpu: 0.0.40
codegen_flags: <defaults>
</compile_context>

<pallas_src>
import jax
import jax.numpy as jnp
from jax.experimental import pallas as pl
from jax.experimental.pallas import tpu as pltpu

# ----------------------------- model config ---------------------------------
BATCH = 2
CHANNELS = 4
IMG = 16
PATCH = 4
EMBED = 32            # D
HEADS = 4             # NH
HEAD_DIM = EMBED // HEADS
DEPTH = 2
MLP_HIDDEN = 2 * EMBED
NUM_CLASSES = 10
LN_EPS = 1e-6         # timm ViT uses eps=1e-6

NUM_PATCHES = (IMG // PATCH) ** 2        # 16
SEQ = NUM_PATCHES + 1                    # 17 (cls + patches)
SEQ_PAD = ((SEQ + 7) // 8) * 8           # 24 (sublane multiple; padded keys masked)
PATCH_DIM = CHANNELS * PATCH * PATCH     # 64
NCLS_PAD = 128                           # lane-dense head output, sliced to 10 outside

MXU_DTYPE = jnp.bfloat16                 # matmul operand dtype (f32 accumulation)


# ----------------------------- kernel helpers ---------------------------------
def _ln(x, g, b):
    mu = jnp.mean(x, axis=-1, keepdims=True)
    xc = x - mu
    var = jnp.mean(xc * xc, axis=-1, keepdims=True)
    return xc * jax.lax.rsqrt(var + LN_EPS) * g + b


def _mm(a, w, b=None):
    """2-D matmul on the MXU: bf16 operands (w is pre-cast), f32 accumulation."""
    y = jnp.dot(a.astype(MXU_DTYPE), w, preferred_element_type=jnp.float32)
    if b is not None:
        y = y + b
    return y


# ----------------------------- fused kernel ----------------------------------
def _vit_kernel(patches_ref, kmask_ref, patch_w_ref, base_ref,
                ln1_g_ref, ln1_b_ref,
                wqkv_ref, bqkv_ref, wo_ref, bo_ref,
                ln2_g_ref, ln2_b_ref,
                w1_ref, b1_ref, w2_ref, b2_ref,
                lnf_g_ref, lnf_b_ref, head_w_ref, head_b_ref,
                out_ref):
    B, S, PD = patches_ref.shape           # (BATCH, SEQ_PAD, PATCH_DIM)
    D = EMBED
    rows = B * S
    scale = 1.0 / float(HEAD_DIM) ** 0.5
    kmask = kmask_ref[...]                 # (1, SEQ_PAD): 0 valid / -1e30 padding

    # patch embedding; `base` folds [cls+pos0], [pos+patch_bias], zero pad
    x2 = _mm(patches_ref[...].reshape(rows, PD), patch_w_ref[...])
    x = x2.reshape(B, S, D) + base_ref[...]

    for d in range(DEPTH):                 # static unroll (DEPTH = 2)
        # ---------------- attention sub-block (pre-norm) ----------------
        h = _ln(x, ln1_g_ref[d], ln1_b_ref[d])
        # fused QKV: one (rows, D) @ (D, 3D) matmul
        qkv = _mm(h.reshape(rows, D), wqkv_ref[d], bqkv_ref[d])      # (rows, 3D) f32
        qkv_b = qkv.reshape(B, S, 3 * D).astype(MXU_DTYPE)           # one cast, then slice

        o_heads = []
        for hh in range(HEADS):                                      # static unroll (4)
            q_sl = slice(hh * HEAD_DIM, (hh + 1) * HEAD_DIM)
            k_sl = slice(D + hh * HEAD_DIM, D + (hh + 1) * HEAD_DIM)
            v_sl = slice(2 * D + hh * HEAD_DIM, 2 * D + (hh + 1) * HEAD_DIM)
            qh = qkv_b[:, :, q_sl]
            kh = qkv_b[:, :, k_sl]
            vh = qkv_b[:, :, v_sl]
            s = jnp.einsum('bqd,bkd->bqk', qh, kh,
                           preferred_element_type=jnp.float32) * scale
            s = s + kmask                                            # mask padded keys
            s = s - jnp.max(s, axis=-1, keepdims=True)
            p = jnp.exp(s)
            p = p * pl.reciprocal(jnp.sum(p, axis=-1, keepdims=True), approx=True)
            o_heads.append(jnp.einsum('bqk,bkd->bqd', p.astype(MXU_DTYPE), vh,
                                      preferred_element_type=jnp.float32))
        o = jnp.concatenate(o_heads, axis=-1).reshape(rows, D)       # (rows, D)
        proj = _mm(o, wo_ref[d], bo_ref[d])                          # single K=D projection
        x = x + proj.reshape(B, S, D)

        # ---------------- MLP sub-block (pre-norm) ----------------
        h = _ln(x, ln2_g_ref[d], ln2_b_ref[d])
        a = _mm(h.reshape(rows, D), w1_ref[d], b1_ref[d])
        # TODO(synk): torch nn.GELU defaults to exact erf GELU; tanh approx used here.
        a = jax.nn.gelu(a, approximate=True)
        m = _mm(a, w2_ref[d], b2_ref[d])
        x = x + m.reshape(B, S, D)

    # final norm + replaced head (ViTBase.model.head) on the cls row only
    cls_tok = x[:, 0, :]                                             # (B, D)
    cls_n = _ln(cls_tok, lnf_g_ref[...], lnf_b_ref[...])
    out_ref[...] = _mm(cls_n, head_w_ref[...], head_b_ref[...])      # (B, NCLS_PAD)


def _full_spec(shape):
    zeros = (0,) * len(shape)
    return pl.BlockSpec(shape, lambda i, _z=zeros: _z)


# ----------------------------- parameter init --------------------------------
def init_params(key):
    def nrm(k, shape, scale=0.02):
        return scale * jax.random.normal(k, shape, dtype=jnp.float32)

    keys = jax.random.split(key, 5)
    params = {
        "patch_w": nrm(keys[0], (PATCH_DIM, EMBED)),
        "patch_b": jnp.zeros((EMBED,), jnp.float32),
        "cls": nrm(keys[1], (1, 1, EMBED)),
        "pos": nrm(keys[2], (1, SEQ, EMBED)),
        "lnf_g": jnp.ones((EMBED,), jnp.float32),
        "lnf_b": jnp.zeros((EMBED,), jnp.float32),
        "head_w": nrm(keys[3], (EMBED, NUM_CLASSES)),
        "head_b": jnp.zeros((NUM_CLASSES,), jnp.float32),
    }
    bkeys = jax.random.split(keys[4], 6)
    params["blocks"] = {
        "ln1_g": jnp.ones((DEPTH, 1, EMBED), jnp.float32),
        "ln1_b": jnp.zeros((DEPTH, 1, EMBED), jnp.float32),
        "wq": nrm(bkeys[0], (DEPTH, EMBED, EMBED)),
        "bq": jnp.zeros((DEPTH, 1, EMBED), jnp.float32),
        "wk": nrm(bkeys[1], (DEPTH, EMBED, EMBED)),
        "bk": jnp.zeros((DEPTH, 1, EMBED), jnp.float32),
        "wv": nrm(bkeys[2], (DEPTH, EMBED, EMBED)),
        "bv": jnp.zeros((DEPTH, 1, EMBED), jnp.float32),
        "wo": nrm(bkeys[3], (DEPTH, EMBED, EMBED)),
        "bo": jnp.zeros((DEPTH, 1, EMBED), jnp.float32),
        "ln2_g": jnp.ones((DEPTH, 1, EMBED), jnp.float32),
        "ln2_b": jnp.zeros((DEPTH, 1, EMBED), jnp.float32),
        "w1": nrm(bkeys[4], (DEPTH, EMBED, MLP_HIDDEN)),
        "b1": jnp.zeros((DEPTH, 1, MLP_HIDDEN), jnp.float32),
        "w2": nrm(bkeys[5], (DEPTH, MLP_HIDDEN, EMBED)),
        "b2": jnp.zeros((DEPTH, 1, EMBED), jnp.float32),
    }
    return params


# ----------------------------- one-time packing --------------------------------
def prepare_params(params):
    """One-time constant packing (fused Wqkv, bf16 weight casts, padded head,
    base tensor, key mask).  Called ONCE outside the per-step forward."""
    blk = params["blocks"]

    # fused QKV weight/bias: (DEPTH, D, 3D) / (DEPTH, 1, 3D)
    wqkv = jnp.concatenate([blk["wq"], blk["wk"], blk["wv"]], axis=-1)
    bqkv = jnp.concatenate([blk["bq"], blk["bk"], blk["bv"]], axis=-1)

    # `base` folds: row 0 = cls + pos[0]; rows 1..NP = pos[1:] + patch bias; rest 0
    base = jnp.zeros((1, SEQ_PAD, EMBED), jnp.float32)
    base = base.at[:, 0, :].set(params["cls"][0, 0] + params["pos"][0, 0])
    base = base.at[:, 1:SEQ, :].set(params["pos"][0, 1:] + params["patch_b"][None, :])

    # key mask for padded sequence positions
    kmask = jnp.where(jnp.arange(SEQ_PAD) < SEQ, 0.0, -1e30).astype(jnp.float32)
    kmask = kmask.reshape(1, SEQ_PAD)

    # lane-dense (128-wide) head weights; real logits sliced out afterwards
    head_w = jnp.zeros((EMBED, NCLS_PAD), jnp.float32).at[:, :NUM_CLASSES].set(params["head_w"])
    head_b = jnp.zeros((1, NCLS_PAD), jnp.float32).at[0, :NUM_CLASSES].set(params["head_b"])

    bf = lambda a: a.astype(MXU_DTYPE)   # weight matrices -> bf16 (f32 accumulation in-kernel)

    return (kmask, bf(params["patch_w"]), base,
            blk["ln1_g"], blk["ln1_b"],
            bf(wqkv), bqkv, bf(blk["wo"]), blk["bo"],
            blk["ln2_g"], blk["ln2_b"],
            bf(blk["w1"]), blk["b1"], bf(blk["w2"]), blk["b2"],
            params["lnf_g"].reshape(1, EMBED), params["lnf_b"].reshape(1, EMBED),
            bf(head_w), head_b)


# ----------------------------- forward pass -----------------------------------
def vit_forward(x, prepped):
    """x: (B, C, H, W) f32 NCHW -> logits (B, NUM_CLASSES)."""
    B, C, H, W = x.shape
    P = PATCH
    nph, npw = H // P, W // P
    np_ = nph * npw
    pd = C * P * P

    # patchify (glue): NCHW -> (B, num_patches, C*P*P), matching
    # nn.Conv2d(kernel=stride=P) flattened as (C, P, P) per patch.
    patches = (x.reshape(B, C, nph, P, npw, P)
                 .transpose(0, 2, 4, 1, 3, 5)
                 .reshape(B, np_, pd))
    # place patches at sequence positions 1..np_ of the padded sequence
    patches_p = jnp.pad(patches, ((0, 0), (1, SEQ_PAD - SEQ + 1 - 1), (0, 0)))
    # (pad 1 row in front for cls, SEQ_PAD - SEQ rows at the back)

    inputs = (patches_p,) + prepped
    in_specs = [_full_spec(a.shape) for a in inputs]

    # Single grid step: whole batch in one invocation (best on 1-TC v5e/v6e;
    # on v7x with batch>=2 per chip, grid=(B,) + ("parallel",) is the knob).
    out = pl.pallas_call(
        _vit_kernel,
        out_shape=jax.ShapeDtypeStruct((B, NCLS_PAD), jnp.float32),
        grid=(1,),
        in_specs=in_specs,
        out_specs=pl.BlockSpec((B, NCLS_PAD), lambda i: (0, 0)),
        compiler_params=pltpu.CompilerParams(
            dimension_semantics=("arbitrary",)),
    )(*inputs)
    return out[:, :NUM_CLASSES]


# ----------------------------- main -------------------------------------------
if __name__ == "__main__":
    key = jax.random.PRNGKey(0)
    k_x, k_p = jax.random.split(key)
    x = jax.random.normal(k_x, (BATCH, CHANNELS, IMG, IMG), dtype=jnp.float32)
    params = init_params(k_p)

    prepped = prepare_params(params)          # one-time constant packing
    fwd = jax.jit(vit_forward)
    logits = fwd(x, prepped)
    logits = jax.block_until_ready(logits)
    assert logits.shape == (BATCH, NUM_CLASSES)
    assert bool(jnp.all(jnp.isfinite(logits)))
    print("KERNEL_OK")
</pallas_src>

<mosaic_0001>
module attributes {stable_mosaic.version = 11 : i64} {
  func.func @_vit_kernel(%arg0: i32, %arg1: memref<2x24x64xf32, #tpu.memory_space<vmem>>, %arg2: memref<1x24xf32, #tpu.memory_space<vmem>>, %arg3: memref<64x32xbf16, #tpu.memory_space<vmem>>, %arg4: memref<1x24x32xf32, #tpu.memory_space<vmem>>, %arg5: memref<2x1x32xf32, #tpu.memory_space<vmem>>, %arg6: memref<2x1x32xf32, #tpu.memory_space<vmem>>, %arg7: memref<2x32x96xbf16, #tpu.memory_space<vmem>>, %arg8: memref<2x1x96xf32, #tpu.memory_space<vmem>>, %arg9: memref<2x32x32xbf16, #tpu.memory_space<vmem>>, %arg10: memref<2x1x32xf32, #tpu.memory_space<vmem>>, %arg11: memref<2x1x32xf32, #tpu.memory_space<vmem>>, %arg12: memref<2x1x32xf32, #tpu.memory_space<vmem>>, %arg13: memref<2x32x64xbf16, #tpu.memory_space<vmem>>, %arg14: memref<2x1x64xf32, #tpu.memory_space<vmem>>, %arg15: memref<2x64x32xbf16, #tpu.memory_space<vmem>>, %arg16: memref<2x1x32xf32, #tpu.memory_space<vmem>>, %arg17: memref<1x32xf32, #tpu.memory_space<vmem>>, %arg18: memref<1x32xf32, #tpu.memory_space<vmem>>, %arg19: memref<32x128xbf16, #tpu.memory_space<vmem>>, %arg20: memref<1x128xf32, #tpu.memory_space<vmem>>, %arg21: memref<2x128xf32, #tpu.memory_space<vmem>>) attributes {dimension_semantics = [#tpu.dimension_semantics<arbitrary>], iteration_bounds = array<i64: 1>, scalar_prefetch = 0 : i64, scratch_operands = 0 : i64, tpu.core_type = #tpu.core_type<tc>, window_params = [{pipeline_mode = #tpu.pipeline_mode<synchronous>, transform_indices = @transform_0, window_bounds = array<i64: 2, 24, 64>}, {pipeline_mode = #tpu.pipeline_mode<synchronous>, transform_indices = @transform_1, window_bounds = array<i64: 1, 24>}, {pipeline_mode = #tpu.pipeline_mode<synchronous>, transform_indices = @transform_2, window_bounds = array<i64: 64, 32>}, {pipeline_mode = #tpu.pipeline_mode<synchronous>, transform_indices = @transform_3, window_bounds = array<i64: 1, 24, 32>}, {pipeline_mode = #tpu.pipeline_mode<synchronous>, transform_indices = @transform_4, window_bounds = array<i64: 2, 1, 32>}, {pipeline_mode = #tpu.pipeline_mode<synchronous>, transform_indices = @transform_5, window_bounds = array<i64: 2, 1, 32>}, {pipeline_mode = #tpu.pipeline_mode<synchronous>, transform_indices = @transform_6, window_bounds = array<i64: 2, 32, 96>}, {pipeline_mode = #tpu.pipeline_mode<synchronous>, transform_indices = @transform_7, window_bounds = array<i64: 2, 1, 96>}, {pipeline_mode = #tpu.pipeline_mode<synchronous>, transform_indices = @transform_8, window_bounds = array<i64: 2, 32, 32>}, {pipeline_mode = #tpu.pipeline_mode<synchronous>, transform_indices = @transform_9, window_bounds = array<i64: 2, 1, 32>}, {pipeline_mode = #tpu.pipeline_mode<synchronous>, transform_indices = @transform_10, window_bounds = array<i64: 2, 1, 32>}, {pipeline_mode = #tpu.pipeline_mode<synchronous>, transform_indices = @transform_11, window_bounds = array<i64: 2, 1, 32>}, {pipeline_mode = #tpu.pipeline_mode<synchronous>, transform_indices = @transform_12, window_bounds = array<i64: 2, 32, 64>}, {pipeline_mode = #tpu.pipeline_mode<synchronous>, transform_indices = @transform_13, window_bounds = array<i64: 2, 1, 64>}, {pipeline_mode = #tpu.pipeline_mode<synchronous>, transform_indices = @transform_14, window_bounds = array<i64: 2, 64, 32>}, {pipeline_mode = #tpu.pipeline_mode<synchronous>, transform_indices = @transform_15, window_bounds = array<i64: 2, 1, 32>}, {pipeline_mode = #tpu.pipeline_mode<synchronous>, transform_indices = @transform_16, window_bounds = array<i64: 1, 32>}, {pipeline_mode = #tpu.pipeline_mode<synchronous>, transform_indices = @transform_17, window_bounds = array<i64: 1, 32>}, {pipeline_mode = #tpu.pipeline_mode<synchronous>, transform_indices = @transform_18, window_bounds = array<i64: 32, 128>}, {pipeline_mode = #tpu.pipeline_mode<synchronous>, transform_indices = @transform_19, window_bounds = array<i64: 1, 128>}, {pipeline_mode = #tpu.pipeline_mode<synchronous>, transform_indices = @transform_20, window_bounds = array<i64: 2, 128>}]} {
    %c0 = arith.constant 0 : index
    %c0_0 = arith.constant 0 : index
    %0 = vector.load %arg2[%c0, %c0_0] : memref<1x24xf32, #tpu.memory_space<vmem>>, vector<1x24xf32>
    %c0_1 = arith.constant 0 : index
    %c0_2 = arith.constant 0 : index
    %c0_3 = arith.constant 0 : index
    %1 = vector.load %arg1[%c0_1, %c0_2, %c0_3] : memref<2x24x64xf32, #tpu.memory_space<vmem>>, vector<2x24x64xf32>
    %2 = vector.shape_cast %1 : vector<2x24x64xf32> to vector<48x64xf32>
    %c0_4 = arith.constant 0 : index
    %c0_5 = arith.constant 0 : index
    %3 = vector.load %arg3[%c0_4, %c0_5] : memref<64x32xbf16, #tpu.memory_space<vmem>>, vector<64x32xbf16>
    %4 = arith.truncf %2 : vector<48x64xf32> to vector<48x64xbf16>
    %cst = arith.constant dense<0.000000e+00> : vector<48x32xf32>
    %5 = tpu.matmul %4, %3, %cst {dimension_numbers = #tpu.dot_dimension_numbers<[1], [0], [0], [1], [0, 0, 1, 1], [], []>} : vector<48x64xbf16>, vector<64x32xbf16>, vector<48x32xf32> -> vector<48x32xf32>
    %6 = vector.shape_cast %5 : vector<48x32xf32> to vector<2x24x32xf32>
    %c0_6 = arith.constant 0 : index
    %c0_7 = arith.constant 0 : index
    %c0_8 = arith.constant 0 : index
    %7 = vector.load %arg4[%c0_6, %c0_7, %c0_8] : memref<1x24x32xf32, #tpu.memory_space<vmem>>, vector<1x24x32xf32>
    %8 = vector.broadcast %7 : vector<1x24x32xf32> to vector<2x24x32xf32>
    %9 = arith.addf %6, %8 : vector<2x24x32xf32>
    %c0_9 = arith.constant 0 : index
    %c0_10 = arith.constant 0 : index
    %c0_11 = arith.constant 0 : index
    %10 = vector.load %arg5[%c0_9, %c0_10, %c0_11] : memref<2x1x32xf32, #tpu.memory_space<vmem>>, vector<1x1x32xf32>
    %11 = vector.shape_cast %10 : vector<1x1x32xf32> to vector<1x32xf32>
    %c0_12 = arith.constant 0 : index
    %c0_13 = arith.constant 0 : index
    %c0_14 = arith.constant 0 : index
    %12 = vector.load %arg6[%c0_12, %c0_13, %c0_14] : memref<2x1x32xf32, #tpu.memory_space<vmem>>, vector<1x1x32xf32>
    %13 = vector.shape_cast %12 : vector<1x1x32xf32> to vector<1x32xf32>
    %cst_15 = arith.constant dense<0.000000e+00> : vector<2x24xf32>
    %14 = vector.multi_reduction <add>, %9, %cst_15 [2] : vector<2x24x32xf32> to vector<2x24xf32>
    %15 = vector.shape_cast %14 : vector<2x24xf32> to vector<2x24x1xf32>
    %cst_16 = arith.constant 3.200000e+01 : f32
    %16 = vector.broadcast %cst_16 : f32 to vector<2x24x1xf32>
    %17 = arith.divf %15, %16 : vector<2x24x1xf32>
    %18 = vector.broadcast %17 : vector<2x24x1xf32> to vector<2x24x32xf32>
    %19 = arith.subf %9, %18 : vector<2x24x32xf32>
    %20 = arith.mulf %19, %19 : vector<2x24x32xf32>
    %cst_17 = arith.constant dense<0.000000e+00> : vector<2x24xf32>
    %21 = vector.multi_reduction <add>, %20, %cst_17 [2] : vector<2x24x32xf32> to vector<2x24xf32>
    %22 = vector.shape_cast %21 : vector<2x24xf32> to vector<2x24x1xf32>
    %cst_18 = arith.constant 3.200000e+01 : f32
    %23 = vector.broadcast %cst_18 : f32 to vector<2x24x1xf32>
    %24 = arith.divf %22, %23 : vector<2x24x1xf32>
    %cst_19 = arith.constant 9.99999997E-7 : f32
    %25 = vector.broadcast %cst_19 : f32 to vector<2x24x1xf32>
    %26 = arith.addf %24, %25 : vector<2x24x1xf32>
    %27 = math.rsqrt %26 : vector<2x24x1xf32>
    %28 = vector.broadcast %27 : vector<2x24x1xf32> to vector<2x24x32xf32>
    %29 = arith.mulf %19, %28 : vector<2x24x32xf32>
    %30 = vector.shape_cast %11 : vector<1x32xf32> to vector<1x1x32xf32>
    %31 = vector.broadcast %30 : vector<1x1x32xf32> to vector<2x24x32xf32>
    %32 = arith.mulf %29, %31 : vector<2x24x32xf32>
    %33 = vector.shape_cast %13 : vector<1x32xf32> to vector<1x1x32xf32>
    %34 = vector.broadcast %33 : vector<1x1x32xf32> to vector<2x24x32xf32>
    %35 = arith.addf %32, %34 : vector<2x24x32xf32>
    %36 = vector.shape_cast %35 : vector<2x24x32xf32> to vector<48x32xf32>
    %c0_20 = arith.constant 0 : index
    %c0_21 = arith.constant 0 : index
    %c0_22 = arith.constant 0 : index
    %37 = vector.load %arg7[%c0_20, %c0_21, %c0_22] : memref<2x32x96xbf16, #tpu.memory_space<vmem>>, vector<1x32x96xbf16>
    %38 = vector.shape_cast %37 : vector<1x32x96xbf16> to vector<32x96xbf16>
    %c0_23 = arith.constant 0 : index
    %c0_24 = arith.constant 0 : index
    %c0_25 = arith.constant 0 : index
    %39 = vector.load %arg8[%c0_23, %c0_24, %c0_25] : memref<2x1x96xf32, #tpu.memory_space<vmem>>, vector<1x1x96xf32>
    %40 = vector.shape_cast %39 : vector<1x1x96xf32> to vector<1x96xf32>
    %41 = arith.truncf %36 : vector<48x32xf32> to vector<48x32xbf16>
    %cst_26 = arith.constant dense<0.000000e+00> : vector<48x96xf32>
    %42 = tpu.matmul %41, %38, %cst_26 {dimension_numbers = #tpu.dot_dimension_numbers<[1], [0], [0], [1], [0, 0, 1, 1], [], []>} : vector<48x32xbf16>, vector<32x96xbf16>, vector<48x96xf32> -> vector<48x96xf32>
    %43 = vector.broadcast %40 : vector<1x96xf32> to vector<48x96xf32>
    %44 = arith.addf %42, %43 : vector<48x96xf32>
    %45 = vector.shape_cast %44 : vector<48x96xf32> to vector<2x24x96xf32>
    %46 = arith.truncf %45 : vector<2x24x96xf32> to vector<2x24x96xbf16>
    %47 = vector.extract_strided_slice %46 {offsets = [0, 0, 0], sizes = [2, 24, 8], strides = [1, 1, 1]} : vector<2x24x96xbf16> to vector<2x24x8xbf16>
    %48 = vector.extract_strided_slice %46 {offsets = [0, 0, 32], sizes = [2, 24, 8], strides = [1, 1, 1]} : vector<2x24x96xbf16> to vector<2x24x8xbf16>
    %49 = vector.extract_strided_slice %46 {offsets = [0, 0, 64], sizes = [2, 24, 8], strides = [1, 1, 1]} : vector<2x24x96xbf16> to vector<2x24x8xbf16>
    "tpu.trace_start"() <{level = 10 : i32, message = "bqd,bkd->bqk"}> : () -> ()
    %cst_27 = arith.constant dense<0.000000e+00> : vector<2x24x24xf32>
    %50 = tpu.matmul %47, %48, %cst_27 {dimension_numbers = #tpu.dot_dimension_numbers<[2], [2], [1], [1], [0, 0, 0, 1, 1, 1], [0], [0]>} : vector<2x24x8xbf16>, vector<2x24x8xbf16>, vector<2x24x24xf32> -> vector<2x24x24xf32>
    "tpu.trace_stop"() : () -> ()
    %cst_28 = arith.constant 0.353553385 : f32
    %51 = vector.broadcast %cst_28 : f32 to vector<2x24x24xf32>
    %52 = arith.mulf %50, %51 : vector<2x24x24xf32>
    %53 = vector.shape_cast %0 : vector<1x24xf32> to vector<1x1x24xf32>
    %54 = vector.broadcast %53 : vector<1x1x24xf32> to vector<2x24x24xf32>
    %55 = arith.addf %52, %54 : vector<2x24x24xf32>
    %cst_29 = arith.constant dense<0xFF800000> : vector<2x24xf32>
    %56 = vector.multi_reduction <maximumf>, %55, %cst_29 [2] : vector<2x24x24xf32> to vector<2x24xf32>
    %57 = vector.shape_cast %56 : vector<2x24xf32> to vector<2x24x1xf32>
    %58 = vector.broadcast %57 : vector<2x24x1xf32> to vector<2x24x24xf32>
    %59 = arith.subf %55, %58 : vector<2x24x24xf32>
    %60 = math.exp %59 : vector<2x24x24xf32>
    %cst_30 = arith.constant dense<0.000000e+00> : vector<2x24xf32>
    %61 = vector.multi_reduction <add>, %60, %cst_30 [2] : vector<2x24x24xf32> to vector<2x24xf32>
    %62 = vector.shape_cast %61 : vector<2x24xf32> to vector<2x24x1xf32>
    %63 = tpu.reciprocal %62 {approx = true} : vector<2x24x1xf32> -> vector<2x24x1xf32>
    %64 = vector.broadcast %63 : vector<2x24x1xf32> to vector<2x24x24xf32>
    %65 = arith.mulf %60, %64 : vector<2x24x24xf32>
    %66 = arith.truncf %65 : vector<2x24x24xf32> to vector<2x24x24xbf16>
    "tpu.trace_start"() <{level = 10 : i32, message = "bqk,bkd->bqd"}> : () -> ()
    %cst_31 = arith.constant dense<0.000000e+00> : vector<2x24x8xf32>
    %67 = tpu.matmul %66, %49, %cst_31 {dimension_numbers = #tpu.dot_dimension_numbers<[2], [1], [1], [2], [0, 0, 0, 1, 1, 2], [0], [0]>} : vector<2x24x24xbf16>, vector<2x24x8xbf16>, vector<2x24x8xf32> -> vector<2x24x8xf32>
    "tpu.trace_stop"() : () -> ()
    %68 = vector.extract_strided_slice %46 {offsets = [0, 0, 8], sizes = [2, 24, 8], strides = [1, 1, 1]} : vector<2x24x96xbf16> to vector<2x24x8xbf16>
    %69 = vector.extract_strided_slice %46 {offsets = [0, 0, 40], sizes = [2, 24, 8], strides = [1, 1, 1]} : vector<2x24x96xbf16> to vector<2x24x8xbf16>
    %70 = vector.extract_strided_slice %46 {offsets = [0, 0, 72], sizes = [2, 24, 8], strides = [1, 1, 1]} : vector<2x24x96xbf16> to vector<2x24x8xbf16>
    "tpu.trace_start"() <{level = 10 : i32, message = "bqd,bkd->bqk"}> : () -> ()
    %cst_32 = arith.constant dense<0.000000e+00> : vector<2x24x24xf32>
    %71 = tpu.matmul %68, %69, %cst_32 {dimension_numbers = #tpu.dot_dimension_numbers<[2], [2], [1], [1], [0, 0, 0, 1, 1, 1], [0], [0]>} : vector<2x24x8xbf16>, vector<2x24x8xbf16>, vector<2x24x24xf32> -> vector<2x24x24xf32>
    "tpu.trace_stop"() : () -> ()
    %cst_33 = arith.constant 0.353553385 : f32
    %72 = vector.broadcast %cst_33 : f32 to vector<2x24x24xf32>
    %73 = arith.mulf %71, %72 : vector<2x24x24xf32>
    %74 = vector.shape_cast %0 : vector<1x24xf32> to vector<1x1x24xf32>
    %75 = vector.broadcast %74 : vector<1x1x24xf32> to vector<2x24x24xf32>
    %76 = arith.addf %73, %75 : vector<2x24x24xf32>
    %cst_34 = arith.constant dense<0xFF800000> : vector<2x24xf32>
    %77 = vector.multi_reduction <maximumf>, %76, %cst_34 [2] : vector<2x24x24xf32> to vector<2x24xf32>
    %78 = vector.shape_cast %77 : vector<2x24xf32> to vector<2x24x1xf32>
    %79 = vector.broadcast %78 : vector<2x24x1xf32> to vector<2x24x24xf32>
    %80 = arith.subf %76, %79 : vector<2x24x24xf32>
    %81 = math.exp %80 : vector<2x24x24xf32>
    %cst_35 = arith.constant dense<0.000000e+00> : vector<2x24xf32>
    %82 = vector.multi_reduction <add>, %81, %cst_35 [2] : vector<2x24x24xf32> to vector<2x24xf32>
    %83 = vector.shape_cast %82 : vector<2x24xf32> to vector<2x24x1xf32>
    %84 = tpu.reciprocal %83 {approx = true} : vector<2x24x1xf32> -> vector<2x24x1xf32>
    %85 = vector.broadcast %84 : vector<2x24x1xf32> to vector<2x24x24xf32>
    %86 = arith.mulf %81, %85 : vector<2x24x24xf32>
    %87 = arith.truncf %86 : vector<2x24x24xf32> to vector<2x24x24xbf16>
    "tpu.trace_start"() <{level = 10 : i32, message = "bqk,bkd->bqd"}> : () -> ()
    %cst_36 = arith.constant dense<0.000000e+00> : vector<2x24x8xf32>
    %88 = tpu.matmul %87, %70, %cst_36 {dimension_numbers = #tpu.dot_dimension_numbers<[2], [1], [1], [2], [0, 0, 0, 1, 1, 2], [0], [0]>} : vector<2x24x24xbf16>, vector<2x24x8xbf16>, vector<2x24x8xf32> -> vector<2x24x8xf32>
    "tpu.trace_stop"() : () -> ()
    %89 = vector.extract_strided_slice %46 {offsets = [0, 0, 16], sizes = [2, 24, 8], strides = [1, 1, 1]} : vector<2x24x96xbf16> to vector<2x24x8xbf16>
    %90 = vector.extract_strided_slice %46 {offsets = [0, 0, 48], sizes = [2, 24, 8], strides = [1, 1, 1]} : vector<2x24x96xbf16> to vector<2x24x8xbf16>
    %91 = vector.extract_strided_slice %46 {offsets = [0, 0, 80], sizes = [2, 24, 8], strides = [1, 1, 1]} : vector<2x24x96xbf16> to vector<2x24x8xbf16>
    "tpu.trace_start"() <{level = 10 : i32, message = "bqd,bkd->bqk"}> : () -> ()
    %cst_37 = arith.constant dense<0.000000e+00> : vector<2x24x24xf32>
    %92 = tpu.matmul %89, %90, %cst_37 {dimension_numbers = #tpu.dot_dimension_numbers<[2], [2], [1], [1], [0, 0, 0, 1, 1, 1], [0], [0]>} : vector<2x24x8xbf16>, vector<2x24x8xbf16>, vector<2x24x24xf32> -> vector<2x24x24xf32>
    "tpu.trace_stop"() : () -> ()
    %cst_38 = arith.constant 0.353553385 : f32
    %93 = vector.broadcast %cst_38 : f32 to vector<2x24x24xf32>
    %94 = arith.mulf %92, %93 : vector<2x24x24xf32>
    %95 = vector.shape_cast %0 : vector<1x24xf32> to vector<1x1x24xf32>
    %96 = vector.broadcast %95 : vector<1x1x24xf32> to vector<2x24x24xf32>
    %97 = arith.addf %94, %96 : vector<2x24x24xf32>
    %cst_39 = arith.constant dense<0xFF800000> : vector<2x24xf32>
    %98 = vector.multi_reduction <maximumf>, %97, %cst_39 [2] : vector<2x24x24xf32> to vector<2x24xf32>
    %99 = vector.shape_cast %98 : vector<2x24xf32> to vector<2x24x1xf32>
    %100 = vector.broadcast %99 : vector<2x24x1xf32> to vector<2x24x24xf32>
    %101 = arith.subf %97, %100 : vector<2x24x24xf32>
    %102 = math.exp %101 : vector<2x24x24xf32>
    %cst_40 = arith.constant dense<0.000000e+00> : vector<2x24xf32>
    %103 = vector.multi_reduction <add>, %102, %cst_40 [2] : vector<2x24x24xf32> to vector<2x24xf32>
    %104 = vector.shape_cast %103 : vector<2x24xf32> to vector<2x24x1xf32>
    %105 = tpu.reciprocal %104 {approx = true} : vector<2x24x1xf32> -> vector<2x24x1xf32>
    %106 = vector.broadcast %105 : vector<2x24x1xf32> to vector<2x24x24xf32>
    %107 = arith.mulf %102, %106 : vector<2x24x24xf32>
    %108 = arith.truncf %107 : vector<2x24x24xf32> to vector<2x24x24xbf16>
    "tpu.trace_start"() <{level = 10 : i32, message = "bqk,bkd->bqd"}> : () -> ()
    %cst_41 = arith.constant dense<0.000000e+00> : vector<2x24x8xf32>
    %109 = tpu.matmul %108, %91, %cst_41 {dimension_numbers = #tpu.dot_dimension_numbers<[2], [1], [1], [2], [0, 0, 0, 1, 1, 2], [0], [0]>} : vector<2x24x24xbf16>, vector<2x24x8xbf16>, vector<2x24x8xf32> -> vector<2x24x8xf32>
    "tpu.trace_stop"() : () -> ()
    %110 = vector.extract_strided_slice %46 {offsets = [0, 0, 24], sizes = [2, 24, 8], strides = [1, 1, 1]} : vector<2x24x96xbf16> to vector<2x24x8xbf16>
    %111 = vector.extract_strided_slice %46 {offsets = [0, 0, 56], sizes = [2, 24, 8], strides = [1, 1, 1]} : vector<2x24x96xbf16> to vector<2x24x8xbf16>
    %112 = vector.extract_strided_slice %46 {offsets = [0, 0, 88], sizes = [2, 24, 8], strides = [1, 1, 1]} : vector<2x24x96xbf16> to vector<2x24x8xbf16>
    "tpu.trace_start"() <{level = 10 : i32, message = "bqd,bkd->bqk"}> : () -> ()
    %cst_42 = arith.constant dense<0.000000e+00> : vector<2x24x24xf32>
    %113 = tpu.matmul %110, %111, %cst_42 {dimension_numbers = #tpu.dot_dimension_numbers<[2], [2], [1], [1], [0, 0, 0, 1, 1, 1], [0], [0]>} : vector<2x24x8xbf16>, vector<2x24x8xbf16>, vector<2x24x24xf32> -> vector<2x24x24xf32>
    "tpu.trace_stop"() : () -> ()
    %cst_43 = arith.constant 0.353553385 : f32
    %114 = vector.broadcast %cst_43 : f32 to vector<2x24x24xf32>
    %115 = arith.mulf %113, %114 : vector<2x24x24xf32>
    %116 = vector.shape_cast %0 : vector<1x24xf32> to vector<1x1x24xf32>
    %117 = vector.broadcast %116 : vector<1x1x24xf32> to vector<2x24x24xf32>
    %118 = arith.addf %115, %117 : vector<2x24x24xf32>
    %cst_44 = arith.constant dense<0xFF800000> : vector<2x24xf32>
    %119 = vector.multi_reduction <maximumf>, %118, %cst_44 [2] : vector<2x24x24xf32> to vector<2x24xf32>
    %120 = vector.shape_cast %119 : vector<2x24xf32> to vector<2x24x1xf32>
    %121 = vector.broadcast %120 : vector<2x24x1xf32> to vector<2x24x24xf32>
    %122 = arith.subf %118, %121 : vector<2x24x24xf32>
    %123 = math.exp %122 : vector<2x24x24xf32>
    %cst_45 = arith.constant dense<0.000000e+00> : vector<2x24xf32>
    %124 = vector.multi_reduction <add>, %123, %cst_45 [2] : vector<2x24x24xf32> to vector<2x24xf32>
    %125 = vector.shape_cast %124 : vector<2x24xf32> to vector<2x24x1xf32>
    %126 = tpu.reciprocal %125 {approx = true} : vector<2x24x1xf32> -> vector<2x24x1xf32>
    %127 = vector.broadcast %126 : vector<2x24x1xf32> to vector<2x24x24xf32>
    %128 = arith.mulf %123, %127 : vector<2x24x24xf32>
    %129 = arith.truncf %128 : vector<2x24x24xf32> to vector<2x24x24xbf16>
    "tpu.trace_start"() <{level = 10 : i32, message = "bqk,bkd->bqd"}> : () -> ()
    %cst_46 = arith.constant dense<0.000000e+00> : vector<2x24x8xf32>
    %130 = tpu.matmul %129, %112, %cst_46 {dimension_numbers = #tpu.dot_dimension_numbers<[2], [1], [1], [2], [0, 0, 0, 1, 1, 2], [0], [0]>} : vector<2x24x24xbf16>, vector<2x24x8xbf16>, vector<2x24x8xf32> -> vector<2x24x8xf32>
    "tpu.trace_stop"() : () -> ()
    %131 = tpu.concatenate %67, %88, %109, %130 in 2 : vector<2x24x8xf32>, vector<2x24x8xf32>, vector<2x24x8xf32>, vector<2x24x8xf32> -> vector<2x24x32xf32>
    %132 = vector.shape_cast %131 : vector<2x24x32xf32> to vector<48x32xf32>
    %c0_47 = arith.constant 0 : index
    %c0_48 = arith.constant 0 : index
    %c0_49 = arith.constant 0 : index
    %133 = vector.load %arg9[%c0_47, %c0_48, %c0_49] : memref<2x32x32xbf16, #tpu.memory_space<vmem>>, vector<1x32x32xbf16>
    %134 = vector.shape_cast %133 : vector<1x32x32xbf16> to vector<32x32xbf16>
    %c0_50 = arith.constant 0 : index
    %c0_51 = arith.constant 0 : index
    %c0_52 = arith.constant 0 : index
    %135 = vector.load %arg10[%c0_50, %c0_51, %c0_52] : memref<2x1x32xf32, #tpu.memory_space<vmem>>, vector<1x1x32xf32>
    %136 = vector.shape_cast %135 : vector<1x1x32xf32> to vector<1x32xf32>
    %137 = arith.truncf %132 : vector<48x32xf32> to vector<48x32xbf16>
    %cst_53 = arith.constant dense<0.000000e+00> : vector<48x32xf32>
    %138 = tpu.matmul %137, %134, %cst_53 {dimension_numbers = #tpu.dot_dimension_numbers<[1], [0], [0], [1], [0, 0, 1, 1], [], []>} : vector<48x32xbf16>, vector<32x32xbf16>, vector<48x32xf32> -> vector<48x32xf32>
    %139 = vector.broadcast %136 : vector<1x32xf32> to vector<48x32xf32>
    %140 = arith.addf %138, %139 : vector<48x32xf32>
    %141 = vector.shape_cast %140 : vector<48x32xf32> to vector<2x24x32xf32>
    %142 = arith.addf %9, %141 : vector<2x24x32xf32>
    %c0_54 = arith.constant 0 : index
    %c0_55 = arith.constant 0 : index
    %c0_56 = arith.constant 0 : index
    %143 = vector.load %arg11[%c0_54, %c0_55, %c0_56] : memref<2x1x32xf32, #tpu.memory_space<vmem>>, vector<1x1x32xf32>
    %144 = vector.shape_cast %143 : vector<1x1x32xf32> to vector<1x32xf32>
    %c0_57 = arith.constant 0 : index
    %c0_58 = arith.constant 0 : index
    %c0_59 = arith.constant 0 : index
    %145 = vector.load %arg12[%c0_57, %c0_58, %c0_59] : memref<2x1x32xf32, #tpu.memory_space<vmem>>, vector<1x1x32xf32>
    %146 = vector.shape_cast %145 : vector<1x1x32xf32> to vector<1x32xf32>
    %cst_60 = arith.constant dense<0.000000e+00> : vector<2x24xf32>
    %147 = vector.multi_reduction <add>, %142, %cst_60 [2] : vector<2x24x32xf32> to vector<2x24xf32>
    %148 = vector.shape_cast %147 : vector<2x24xf32> to vector<2x24x1xf32>
    %cst_61 = arith.constant 3.200000e+01 : f32
    %149 = vector.broadcast %cst_61 : f32 to vector<2x24x1xf32>
    %150 = arith.divf %148, %149 : vector<2x24x1xf32>
    %151 = vector.broadcast %150 : vector<2x24x1xf32> to vector<2x24x32xf32>
    %152 = arith.subf %142, %151 : vector<2x24x32xf32>
    %153 = arith.mulf %152, %152 : vector<2x24x32xf32>
    %cst_62 = arith.constant dense<0.000000e+00> : vector<2x24xf32>
    %154 = vector.multi_reduction <add>, %153, %cst_62 [2] : vector<2x24x32xf32> to vector<2x24xf32>
    %155 = vector.shape_cast %154 : vector<2x24xf32> to vector<2x24x1xf32>
    %cst_63 = arith.constant 3.200000e+01 : f32
    %156 = vector.broadcast %cst_63 : f32 to vector<2x24x1xf32>
    %157 = arith.divf %155, %156 : vector<2x24x1xf32>
    %cst_64 = arith.constant 9.99999997E-7 : f32
    %158 = vector.broadcast %cst_64 : f32 to vector<2x24x1xf32>
    %159 = arith.addf %157, %158 : vector<2x24x1xf32>
    %160 = math.rsqrt %159 : vector<2x24x1xf32>
    %161 = vector.broadcast %160 : vector<2x24x1xf32> to vector<2x24x32xf32>
    %162 = arith.mulf %152, %161 : vector<2x24x32xf32>
    %163 = vector.shape_cast %144 : vector<1x32xf32> to vector<1x1x32xf32>
    %164 = vector.broadcast %163 : vector<1x1x32xf32> to vector<2x24x32xf32>
    %165 = arith.mulf %162, %164 : vector<2x24x32xf32>
    %166 = vector.shape_cast %146 : vector<1x32xf32> to vector<1x1x32xf32>
    %167 = vector.broadcast %166 : vector<1x1x32xf32> to vector<2x24x32xf32>
    %168 = arith.addf %165, %167 : vector<2x24x32xf32>
    %169 = vector.shape_cast %168 : vector<2x24x32xf32> to vector<48x32xf32>
    %c0_65 = arith.constant 0 : index
    %c0_66 = arith.constant 0 : index
    %c0_67 = arith.constant 0 : index
    %170 = vector.load %arg13[%c0_65, %c0_66, %c0_67] : memref<2x32x64xbf16, #tpu.memory_space<vmem>>, vector<1x32x64xbf16>
    %171 = vector.shape_cast %170 : vector<1x32x64xbf16> to vector<32x64xbf16>
    %c0_68 = arith.constant 0 : index
    %c0_69 = arith.constant 0 : index
    %c0_70 = arith.constant 0 : index
    %172 = vector.load %arg14[%c0_68, %c0_69, %c0_70] : memref<2x1x64xf32, #tpu.memory_space<vmem>>, vector<1x1x64xf32>
    %173 = vector.shape_cast %172 : vector<1x1x64xf32> to vector<1x64xf32>
    %174 = arith.truncf %169 : vector<48x32xf32> to vector<48x32xbf16>
    %cst_71 = arith.constant dense<0.000000e+00> : vector<48x64xf32>
    %175 = tpu.matmul %174, %171, %cst_71 {dimension_numbers = #tpu.dot_dimension_numbers<[1], [0], [0], [1], [0, 0, 1, 1], [], []>} : vector<48x32xbf16>, vector<32x64xbf16>, vector<48x64xf32> -> vector<48x64xf32>
    %176 = vector.broadcast %173 : vector<1x64xf32> to vector<48x64xf32>
    %177 = arith.addf %175, %176 : vector<48x64xf32>
    %178 = arith.mulf %177, %177 : vector<48x64xf32>
    %179 = arith.mulf %177, %178 : vector<48x64xf32>
    %cst_72 = arith.constant 4.471500e-02 : f32
    %180 = vector.broadcast %cst_72 : f32 to vector<48x64xf32>
    %181 = arith.mulf %180, %179 : vector<48x64xf32>
    %182 = arith.addf %177, %181 : vector<48x64xf32>
    %cst_73 = arith.constant 0.797884583 : f32
    %183 = vector.broadcast %cst_73 : f32 to vector<48x64xf32>
    %184 = arith.mulf %183, %182 : vector<48x64xf32>
    %185 = math.tanh %184 : vector<48x64xf32>
    %cst_74 = arith.constant 1.000000e+00 : f32
    %186 = vector.broadcast %cst_74 : f32 to vector<48x64xf32>
    %187 = arith.addf %186, %185 : vector<48x64xf32>
    %cst_75 = arith.constant 5.000000e-01 : f32
    %188 = vector.broadcast %cst_75 : f32 to vector<48x64xf32>
    %189 = arith.mulf %188, %187 : vector<48x64xf32>
    %190 = arith.mulf %177, %189 : vector<48x64xf32>
    %c0_76 = arith.constant 0 : index
    %c0_77 = arith.constant 0 : index
    %c0_78 = arith.constant 0 : index
    %191 = vector.load %arg15[%c0_76, %c0_77, %c0_78] : memref<2x64x32xbf16, #tpu.memory_space<vmem>>, vector<1x64x32xbf16>
    %192 = vector.shape_cast %191 : vector<1x64x32xbf16> to vector<64x32xbf16>
    %c0_79 = arith.constant 0 : index
    %c0_80 = arith.constant 0 : index
    %c0_81 = arith.constant 0 : index
    %193 = vector.load %arg16[%c0_79, %c0_80, %c0_81] : memref<2x1x32xf32, #tpu.memory_space<vmem>>, vector<1x1x32xf32>
    %194 = vector.shape_cast %193 : vector<1x1x32xf32> to vector<1x32xf32>
    %195 = arith.truncf %190 : vector<48x64xf32> to vector<48x64xbf16>
    %cst_82 = arith.constant dense<0.000000e+00> : vector<48x32xf32>
    %196 = tpu.matmul %195, %192, %cst_82 {dimension_numbers = #tpu.dot_dimension_numbers<[1], [0], [0], [1], [0, 0, 1, 1], [], []>} : vector<48x64xbf16>, vector<64x32xbf16>, vector<48x32xf32> -> vector<48x32xf32>
    %197 = vector.broadcast %194 : vector<1x32xf32> to vector<48x32xf32>
    %198 = arith.addf %196, %197 : vector<48x32xf32>
    %199 = vector.shape_cast %198 : vector<48x32xf32> to vector<2x24x32xf32>
    %200 = arith.addf %142, %199 : vector<2x24x32xf32>
    %c1 = arith.constant 1 : index
    %c0_83 = arith.constant 0 : index
    %c0_84 = arith.constant 0 : index
    %201 = vector.load %arg5[%c1, %c0_83, %c0_84] : memref<2x1x32xf32, #tpu.memory_space<vmem>>, vector<1x1x32xf32>
    %202 = vector.shape_cast %201 : vector<1x1x32xf32> to vector<1x32xf32>
    %c1_85 = arith.constant 1 : index
    %c0_86 = arith.constant 0 : index
    %c0_87 = arith.constant 0 : index
    %203 = vector.load %arg6[%c1_85, %c0_86, %c0_87] : memref<2x1x32xf32, #tpu.memory_space<vmem>>, vector<1x1x32xf32>
    %204 = vector.shape_cast %203 : vector<1x1x32xf32> to vector<1x32xf32>
    %cst_88 = arith.constant dense<0.000000e+00> : vector<2x24xf32>
    %205 = vector.multi_reduction <add>, %200, %cst_88 [2] : vector<2x24x32xf32> to vector<2x24xf32>
    %206 = vector.shape_cast %205 : vector<2x24xf32> to vector<2x24x1xf32>
    %cst_89 = arith.constant 3.200000e+01 : f32
    %207 = vector.broadcast %cst_89 : f32 to vector<2x24x1xf32>
    %208 = arith.divf %206, %207 : vector<2x24x1xf32>
    %209 = vector.broadcast %208 : vector<2x24x1xf32> to vector<2x24x32xf32>
    %210 = arith.subf %200, %209 : vector<2x24x32xf32>
    %211 = arith.mulf %210, %210 : vector<2x24x32xf32>
    %cst_90 = arith.constant dense<0.000000e+00> : vector<2x24xf32>
    %212 = vector.multi_reduction <add>, %211, %cst_90 [2] : vector<2x24x32xf32> to vector<2x24xf32>
    %213 = vector.shape_cast %212 : vector<2x24xf32> to vector<2x24x1xf32>
    %cst_91 = arith.constant 3.200000e+01 : f32
    %214 = vector.broadcast %cst_91 : f32 to vector<2x24x1xf32>
    %215 = arith.divf %213, %214 : vector<2x24x1xf32>
    %cst_92 = arith.constant 9.99999997E-7 : f32
    %216 = vector.broadcast %cst_92 : f32 to vector<2x24x1xf32>
    %217 = arith.addf %215, %216 : vector<2x24x1xf32>
    %218 = math.rsqrt %217 : vector<2x24x1xf32>
    %219 = vector.broadcast %218 : vector<2x24x1xf32> to vector<2x24x32xf32>
    %220 = arith.mulf %210, %219 : vector<2x24x32xf32>
    %221 = vector.shape_cast %202 : vector<1x32xf32> to vector<1x1x32xf32>
    %222 = vector.broadcast %221 : vector<1x1x32xf32> to vector<2x24x32xf32>
    %223 = arith.mulf %220, %222 : vector<2x24x32xf32>
    %224 = vector.shape_cast %204 : vector<1x32xf32> to vector<1x1x32xf32>
    %225 = vector.broadcast %224 : vector<1x1x32xf32> to vector<2x24x32xf32>
    %226 = arith.addf %223, %225 : vector<2x24x32xf32>
    %227 = vector.shape_cast %226 : vector<2x24x32xf32> to vector<48x32xf32>
    %c1_93 = arith.constant 1 : index
    %c0_94 = arith.constant 0 : index
    %c0_95 = arith.constant 0 : index
    %228 = vector.load %arg7[%c1_93, %c0_94, %c0_95] : memref<2x32x96xbf16, #tpu.memory_space<vmem>>, vector<1x32x96xbf16>
    %229 = vector.shape_cast %228 : vector<1x32x96xbf16> to vector<32x96xbf16>
    %c1_96 = arith.constant 1 : index
    %c0_97 = arith.constant 0 : index
    %c0_98 = arith.constant 0 : index
    %230 = vector.load %arg8[%c1_96, %c0_97, %c0_98] : memref<2x1x96xf32, #tpu.memory_space<vmem>>, vector<1x1x96xf32>
    %231 = vector.shape_cast %230 : vector<1x1x96xf32> to vector<1x96xf32>
    %232 = arith.truncf %227 : vector<48x32xf32> to vector<48x32xbf16>
    %cst_99 = arith.constant dense<0.000000e+00> : vector<48x96xf32>
    %233 = tpu.matmul %232, %229, %cst_99 {dimension_numbers = #tpu.dot_dimension_numbers<[1], [0], [0], [1], [0, 0, 1, 1], [], []>} : vector<48x32xbf16>, vector<32x96xbf16>, vector<48x96xf32> -> vector<48x96xf32>
    %234 = vector.broadcast %231 : vector<1x96xf32> to vector<48x96xf32>
    %235 = arith.addf %233, %234 : vector<48x96xf32>
    %236 = vector.shape_cast %235 : vector<48x96xf32> to vector<2x24x96xf32>
    %237 = arith.truncf %236 : vector<2x24x96xf32> to vector<2x24x96xbf16>
    %238 = vector.extract_strided_slice %237 {offsets = [0, 0, 0], sizes = [2, 24, 8], strides = [1, 1, 1]} : vector<2x24x96xbf16> to vector<2x24x8xbf16>
    %239 = vector.extract_strided_slice %237 {offsets = [0, 0, 32], sizes = [2, 24, 8], strides = [1, 1, 1]} : vector<2x24x96xbf16> to vector<2x24x8xbf16>
    %240 = vector.extract_strided_slice %237 {offsets = [0, 0, 64], sizes = [2, 24, 8], strides = [1, 1, 1]} : vector<2x24x96xbf16> to vector<2x24x8xbf16>
    "tpu.trace_start"() <{level = 10 : i32, message = "bqd,bkd->bqk"}> : () -> ()
    %cst_100 = arith.constant dense<0.000000e+00> : vector<2x24x24xf32>
    %241 = tpu.matmul %238, %239, %cst_100 {dimension_numbers = #tpu.dot_dimension_numbers<[2], [2], [1], [1], [0, 0, 0, 1, 1, 1], [0], [0]>} : vector<2x24x8xbf16>, vector<2x24x8xbf16>, vector<2x24x24xf32> -> vector<2x24x24xf32>
    "tpu.trace_stop"() : () -> ()
    %cst_101 = arith.constant 0.353553385 : f32
    %242 = vector.broadcast %cst_101 : f32 to vector<2x24x24xf32>
    %243 = arith.mulf %241, %242 : vector<2x24x24xf32>
    %244 = vector.shape_cast %0 : vector<1x24xf32> to vector<1x1x24xf32>
    %245 = vector.broadcast %244 : vector<1x1x24xf32> to vector<2x24x24xf32>
    %246 = arith.addf %243, %245 : vector<2x24x24xf32>
    %cst_102 = arith.constant dense<0xFF800000> : vector<2x24xf32>
    %247 = vector.multi_reduction <maximumf>, %246, %cst_102 [2] : vector<2x24x24xf32> to vector<2x24xf32>
    %248 = vector.shape_cast %247 : vector<2x24xf32> to vector<2x24x1xf32>
    %249 = vector.broadcast %248 : vector<2x24x1xf32> to vector<2x24x24xf32>
    %250 = arith.subf %246, %249 : vector<2x24x24xf32>
    %251 = math.exp %250 : vector<2x24x24xf32>
    %cst_103 = arith.constant dense<0.000000e+00> : vector<2x24xf32>
    %252 = vector.multi_reduction <add>, %251, %cst_103 [2] : vector<2x24x24xf32> to vector<2x24xf32>
    %253 = vector.shape_cast %252 : vector<2x24xf32> to vector<2x24x1xf32>
    %254 = tpu.reciprocal %253 {approx = true} : vector<2x24x1xf32> -> vector<2x24x1xf32>
    %255 = vector.broadcast %254 : vector<2x24x1xf32> to vector<2x24x24xf32>
    %256 = arith.mulf %251, %255 : vector<2x24x24xf32>
    %257 = arith.truncf %256 : vector<2x24x24xf32> to vector<2x24x24xbf16>
    "tpu.trace_start"() <{level = 10 : i32, message = "bqk,bkd->bqd"}> : () -> ()
    %cst_104 = arith.constant dense<0.000000e+00> : vector<2x24x8xf32>
    %258 = tpu.matmul %257, %240, %cst_104 {dimension_numbers = #tpu.dot_dimension_numbers<[2], [1], [1], [2], [0, 0, 0, 1, 1, 2], [0], [0]>} : vector<2x24x24xbf16>, vector<2x24x8xbf16>, vector<2x24x8xf32> -> vector<2x24x8xf32>
    "tpu.trace_stop"() : () -> ()
    %259 = vector.extract_strided_slice %237 {offsets = [0, 0, 8], sizes = [2, 24, 8], strides = [1, 1, 1]} : vector<2x24x96xbf16> to vector<2x24x8xbf16>
    %260 = vector.extract_strided_slice %237 {offsets = [0, 0, 40], sizes = [2, 24, 8], strides = [1, 1, 1]} : vector<2x24x96xbf16> to vector<2x24x8xbf16>
    %261 = vector.extract_strided_slice %237 {offsets = [0, 0, 72], sizes = [2, 24, 8], strides = [1, 1, 1]} : vector<2x24x96xbf16> to vector<2x24x8xbf16>
    "tpu.trace_start"() <{level = 10 : i32, message = "bqd,bkd->bqk"}> : () -> ()
    %cst_105 = arith.constant dense<0.000000e+00> : vector<2x24x24xf32>
    %262 = tpu.matmul %259, %260, %cst_105 {dimension_numbers = #tpu.dot_dimension_numbers<[2], [2], [1], [1], [0, 0, 0, 1, 1, 1], [0], [0]>} : vector<2x24x8xbf16>, vector<2x24x8xbf16>, vector<2x24x24xf32> -> vector<2x24x24xf32>
    "tpu.trace_stop"() : () -> ()
    %cst_106 = arith.constant 0.353553385 : f32
    %263 = vector.broadcast %cst_106 : f32 to vector<2x24x24xf32>
    %264 = arith.mulf %262, %263 : vector<2x24x24xf32>
    %265 = vector.shape_cast %0 : vector<1x24xf32> to vector<1x1x24xf32>
    %266 = vector.broadcast %265 : vector<1x1x24xf32> to vector<2x24x24xf32>
    %267 = arith.addf %264, %266 : vector<2x24x24xf32>
    %cst_107 = arith.constant dense<0xFF800000> : vector<2x24xf32>
    %268 = vector.multi_reduction <maximumf>, %267, %cst_107 [2] : vector<2x24x24xf32> to vector<2x24xf32>
    %269 = vector.shape_cast %268 : vector<2x24xf32> to vector<2x24x1xf32>
    %270 = vector.broadcast %269 : vector<2x24x1xf32> to vector<2x24x24xf32>
    %271 = arith.subf %267, %270 : vector<2x24x24xf32>
    %272 = math.exp %271 : vector<2x24x24xf32>
    %cst_108 = arith.constant dense<0.000000e+00> : vector<2x24xf32>
    %273 = vector.multi_reduction <add>, %272, %cst_108 [2] : vector<2x24x24xf32> to vector<2x24xf32>
    %274 = vector.shape_cast %273 : vector<2x24xf32> to vector<2x24x1xf32>
    %275 = tpu.reciprocal %274 {approx = true} : vector<2x24x1xf32> -> vector<2x24x1xf32>
    %276 = vector.broadcast %275 : vector<2x24x1xf32> to vector<2x24x24xf32>
    %277 = arith.mulf %272, %276 : vector<2x24x24xf32>
    %278 = arith.truncf %277 : vector<2x24x24xf32> to vector<2x24x24xbf16>
    "tpu.trace_start"() <{level = 10 : i32, message = "bqk,bkd->bqd"}> : () -> ()
    %cst_109 = arith.constant dense<0.000000e+00> : vector<2x24x8xf32>
    %279 = tpu.matmul %278, %261, %cst_109 {dimension_numbers = #tpu.dot_dimension_numbers<[2], [1], [1], [2], [0, 0, 0, 1, 1, 2], [0], [0]>} : vector<2x24x24xbf16>, vector<2x24x8xbf16>, vector<2x24x8xf32> -> vector<2x24x8xf32>
    "tpu.trace_stop"() : () -> ()
    %280 = vector.extract_strided_slice %237 {offsets = [0, 0, 16], sizes = [2, 24, 8], strides = [1, 1, 1]} : vector<2x24x96xbf16> to vector<2x24x8xbf16>
    %281 = vector.extract_strided_slice %237 {offsets = [0, 0, 48], sizes = [2, 24, 8], strides = [1, 1, 1]} : vector<2x24x96xbf16> to vector<2x24x8xbf16>
    %282 = vector.extract_strided_slice %237 {offsets = [0, 0, 80], sizes = [2, 24, 8], strides = [1, 1, 1]} : vector<2x24x96xbf16> to vector<2x24x8xbf16>
    "tpu.trace_start"() <{level = 10 : i32, message = "bqd,bkd->bqk"}> : () -> ()
    %cst_110 = arith.constant dense<0.000000e+00> : vector<2x24x24xf32>
    %283 = tpu.matmul %280, %281, %cst_110 {dimension_numbers = #tpu.dot_dimension_numbers<[2], [2], [1], [1], [0, 0, 0, 1, 1, 1], [0], [0]>} : vector<2x24x8xbf16>, vector<2x24x8xbf16>, vector<2x24x24xf32> -> vector<2x24x24xf32>
    "tpu.trace_stop"() : () -> ()
    %cst_111 = arith.constant 0.353553385 : f32
    %284 = vector.broadcast %cst_111 : f32 to vector<2x24x24xf32>
    %285 = arith.mulf %283, %284 : vector<2x24x24xf32>
    %286 = vector.shape_cast %0 : vector<1x24xf32> to vector<1x1x24xf32>
    %287 = vector.broadcast %286 : vector<1x1x24xf32> to vector<2x24x24xf32>
    %288 = arith.addf %285, %287 : vector<2x24x24xf32>
    %cst_112 = arith.constant dense<0xFF800000> : vector<2x24xf32>
    %289 = vector.multi_reduction <maximumf>, %288, %cst_112 [2] : vector<2x24x24xf32> to vector<2x24xf32>
    %290 = vector.shape_cast %289 : vector<2x24xf32> to vector<2x24x1xf32>
    %291 = vector.broadcast %290 : vector<2x24x1xf32> to vector<2x24x24xf32>
    %292 = arith.subf %288, %291 : vector<2x24x24xf32>
    %293 = math.exp %292 : vector<2x24x24xf32>
    %cst_113 = arith.constant dense<0.000000e+00> : vector<2x24xf32>
    %294 = vector.multi_reduction <add>, %293, %cst_113 [2] : vector<2x24x24xf32> to vector<2x24xf32>
    %295 = vector.shape_cast %294 : vector<2x24xf32> to vector<2x24x1xf32>
    %296 = tpu.reciprocal %295 {approx = true} : vector<2x24x1xf32> -> vector<2x24x1xf32>
    %297 = vector.broadcast %296 : vector<2x24x1xf32> to vector<2x24x24xf32>
    %298 = arith.mulf %293, %297 : vector<2x24x24xf32>
    %299 = arith.truncf %298 : vector<2x24x24xf32> to vector<2x24x24xbf16>
    "tpu.trace_start"() <{level = 10 : i32, message = "bqk,bkd->bqd"}> : () -> ()
    %cst_114 = arith.constant dense<0.000000e+00> : vector<2x24x8xf32>
    %300 = tpu.matmul %299, %282, %cst_114 {dimension_numbers = #tpu.dot_dimension_numbers<[2], [1], [1], [2], [0, 0, 0, 1, 1, 2], [0], [0]>} : vector<2x24x24xbf16>, vector<2x24x8xbf16>, vector<2x24x8xf32> -> vector<2x24x8xf32>
    "tpu.trace_stop"() : () -> ()
    %301 = vector.extract_strided_slice %237 {offsets = [0, 0, 24], sizes = [2, 24, 8], strides = [1, 1, 1]} : vector<2x24x96xbf16> to vector<2x24x8xbf16>
    %302 = vector.extract_strided_slice %237 {offsets = [0, 0, 56], sizes = [2, 24, 8], strides = [1, 1, 1]} : vector<2x24x96xbf16> to vector<2x24x8xbf16>
    %303 = vector.extract_strided_slice %237 {offsets = [0, 0, 88], sizes = [2, 24, 8], strides = [1, 1, 1]} : vector<2x24x96xbf16> to vector<2x24x8xbf16>
    "tpu.trace_start"() <{level = 10 : i32, message = "bqd,bkd->bqk"}> : () -> ()
    %cst_115 = arith.constant dense<0.000000e+00> : vector<2x24x24xf32>
    %304 = tpu.matmul %301, %302, %cst_115 {dimension_numbers = #tpu.dot_dimension_numbers<[2], [2], [1], [1], [0, 0, 0, 1, 1, 1], [0], [0]>} : vector<2x24x8xbf16>, vector<2x24x8xbf16>, vector<2x24x24xf32> -> vector<2x24x24xf32>
    "tpu.trace_stop"() : () -> ()
    %cst_116 = arith.constant 0.353553385 : f32
    %305 = vector.broadcast %cst_116 : f32 to vector<2x24x24xf32>
    %306 = arith.mulf %304, %305 : vector<2x24x24xf32>
    %307 = vector.shape_cast %0 : vector<1x24xf32> to vector<1x1x24xf32>
    %308 = vector.broadcast %307 : vector<1x1x24xf32> to vector<2x24x24xf32>
    %309 = arith.addf %306, %308 : vector<2x24x24xf32>
    %cst_117 = arith.constant dense<0xFF800000> : vector<2x24xf32>
    %310 = vector.multi_reduction <maximumf>, %309, %cst_117 [2] : vector<2x24x24xf32> to vector<2x24xf32>
    %311 = vector.shape_cast %310 : vector<2x24xf32> to vector<2x24x1xf32>
    %312 = vector.broadcast %311 : vector<2x24x1xf32> to vector<2x24x24xf32>
    %313 = arith.subf %309, %312 : vector<2x24x24xf32>
    %314 = math.exp %313 : vector<2x24x24xf32>
    %cst_118 = arith.constant dense<0.000000e+00> : vector<2x24xf32>
    %315 = vector.multi_reduction <add>, %314, %cst_118 [2] : vector<2x24x24xf32> to vector<2x24xf32>
    %316 = vector.shape_cast %315 : vector<2x24xf32> to vector<2x24x1xf32>
    %317 = tpu.reciprocal %316 {approx = true} : vector<2x24x1xf32> -> vector<2x24x1xf32>
    %318 = vector.broadcast %317 : vector<2x24x1xf32> to vector<2x24x24xf32>
    %319 = arith.mulf %314, %318 : vector<2x24x24xf32>
    %320 = arith.truncf %319 : vector<2x24x24xf32> to vector<2x24x24xbf16>
    "tpu.trace_start"() <{level = 10 : i32, message = "bqk,bkd->bqd"}> : () -> ()
    %cst_119 = arith.constant dense<0.000000e+00> : vector<2x24x8xf32>
    %321 = tpu.matmul %320, %303, %cst_119 {dimension_numbers = #tpu.dot_dimension_numbers<[2], [1], [1], [2], [0, 0, 0, 1, 1, 2], [0], [0]>} : vector<2x24x24xbf16>, vector<2x24x8xbf16>, vector<2x24x8xf32> -> vector<2x24x8xf32>
    "tpu.trace_stop"() : () -> ()
    %322 = tpu.concatenate %258, %279, %300, %321 in 2 : vector<2x24x8xf32>, vector<2x24x8xf32>, vector<2x24x8xf32>, vector<2x24x8xf32> -> vector<2x24x32xf32>
    %323 = vector.shape_cast %322 : vector<2x24x32xf32> to vector<48x32xf32>
    %c1_120 = arith.constant 1 : index
    %c0_121 = arith.constant 0 : index
    %c0_122 = arith.constant 0 : index
    %324 = vector.load %arg9[%c1_120, %c0_121, %c0_122] : memref<2x32x32xbf16, #tpu.memory_space<vmem>>, vector<1x32x32xbf16>
    %325 = vector.shape_cast %324 : vector<1x32x32xbf16> to vector<32x32xbf16>
    %c1_123 = arith.constant 1 : index
    %c0_124 = arith.constant 0 : index
    %c0_125 = arith.constant 0 : index
    %326 = vector.load %arg10[%c1_123, %c0_124, %c0_125] : memref<2x1x32xf32, #tpu.memory_space<vmem>>, vector<1x1x32xf32>
    %327 = vector.shape_cast %326 : vector<1x1x32xf32> to vector<1x32xf32>
    %328 = arith.truncf %323 : vector<48x32xf32> to vector<48x32xbf16>
    %cst_126 = arith.constant dense<0.000000e+00> : vector<48x32xf32>
    %329 = tpu.matmul %328, %325, %cst_126 {dimension_numbers = #tpu.dot_dimension_numbers<[1], [0], [0], [1], [0, 0, 1, 1], [], []>} : vector<48x32xbf16>, vector<32x32xbf16>, vector<48x32xf32> -> vector<48x32xf32>
    %330 = vector.broadcast %327 : vector<1x32xf32> to vector<48x32xf32>
    %331 = arith.addf %329, %330 : vector<48x32xf32>
    %332 = vector.shape_cast %331 : vector<48x32xf32> to vector<2x24x32xf32>
    %333 = arith.addf %200, %332 : vector<2x24x32xf32>
    %c1_127 = arith.constant 1 : index
    %c0_128 = arith.constant 0 : index
    %c0_129 = arith.constant 0 : index
    %334 = vector.load %arg11[%c1_127, %c0_128, %c0_129] : memref<2x1x32xf32, #tpu.memory_space<vmem>>, vector<1x1x32xf32>
    %335 = vector.shape_cast %334 : vector<1x1x32xf32> to vector<1x32xf32>
    %c1_130 = arith.constant 1 : index
    %c0_131 = arith.constant 0 : index
    %c0_132 = arith.constant 0 : index
    %336 = vector.load %arg12[%c1_130, %c0_131, %c0_132] : memref<2x1x32xf32, #tpu.memory_space<vmem>>, vector<1x1x32xf32>
    %337 = vector.shape_cast %336 : vector<1x1x32xf32> to vector<1x32xf32>
    %cst_133 = arith.constant dense<0.000000e+00> : vector<2x24xf32>
    %338 = vector.multi_reduction <add>, %333, %cst_133 [2] : vector<2x24x32xf32> to vector<2x24xf32>
    %339 = vector.shape_cast %338 : vector<2x24xf32> to vector<2x24x1xf32>
    %cst_134 = arith.constant 3.200000e+01 : f32
    %340 = vector.broadcast %cst_134 : f32 to vector<2x24x1xf32>
    %341 = arith.divf %339, %340 : vector<2x24x1xf32>
    %342 = vector.broadcast %341 : vector<2x24x1xf32> to vector<2x24x32xf32>
    %343 = arith.subf %333, %342 : vector<2x24x32xf32>
    %344 = arith.mulf %343, %343 : vector<2x24x32xf32>
    %cst_135 = arith.constant dense<0.000000e+00> : vector<2x24xf32>
    %345 = vector.multi_reduction <add>, %344, %cst_135 [2] : vector<2x24x32xf32> to vector<2x24xf32>
    %346 = vector.shape_cast %345 : vector<2x24xf32> to vector<2x24x1xf32>
    %cst_136 = arith.constant 3.200000e+01 : f32
    %347 = vector.broadcast %cst_136 : f32 to vector<2x24x1xf32>
    %348 = arith.divf %346, %347 : vector<2x24x1xf32>
    %cst_137 = arith.constant 9.99999997E-7 : f32
    %349 = vector.broadcast %cst_137 : f32 to vector<2x24x1xf32>
    %350 = arith.addf %348, %349 : vector<2x24x1xf32>
    %351 = math.rsqrt %350 : vector<2x24x1xf32>
    %352 = vector.broadcast %351 : vector<2x24x1xf32> to vector<2x24x32xf32>
    %353 = arith.mulf %343, %352 : vector<2x24x32xf32>
    %354 = vector.shape_cast %335 : vector<1x32xf32> to vector<1x1x32xf32>
    %355 = vector.broadcast %354 : vector<1x1x32xf32> to vector<2x24x32xf32>
    %356 = arith.mulf %353, %355 : vector<2x24x32xf32>
    %357 = vector.shape_cast %337 : vector<1x32xf32> to vector<1x1x32xf32>
    %358 = vector.broadcast %357 : vector<1x1x32xf32> to vector<2x24x32xf32>
    %359 = arith.addf %356, %358 : vector<2x24x32xf32>
    %360 = vector.shape_cast %359 : vector<2x24x32xf32> to vector<48x32xf32>
    %c1_138 = arith.constant 1 : index
    %c0_139 = arith.constant 0 : index
    %c0_140 = arith.constant 0 : index
    %361 = vector.load %arg13[%c1_138, %c0_139, %c0_140] : memref<2x32x64xbf16, #tpu.memory_space<vmem>>, vector<1x32x64xbf16>
    %362 = vector.shape_cast %361 : vector<1x32x64xbf16> to vector<32x64xbf16>
    %c1_141 = arith.constant 1 : index
    %c0_142 = arith.constant 0 : index
    %c0_143 = arith.constant 0 : index
    %363 = vector.load %arg14[%c1_141, %c0_142, %c0_143] : memref<2x1x64xf32, #tpu.memory_space<vmem>>, vector<1x1x64xf32>
    %364 = vector.shape_cast %363 : vector<1x1x64xf32> to vector<1x64xf32>
    %365 = arith.truncf %360 : vector<48x32xf32> to vector<48x32xbf16>
    %cst_144 = arith.constant dense<0.000000e+00> : vector<48x64xf32>
    %366 = tpu.matmul %365, %362, %cst_144 {dimension_numbers = #tpu.dot_dimension_numbers<[1], [0], [0], [1], [0, 0, 1, 1], [], []>} : vector<48x32xbf16>, vector<32x64xbf16>, vector<48x64xf32> -> vector<48x64xf32>
    %367 = vector.broadcast %364 : vector<1x64xf32> to vector<48x64xf32>
    %368 = arith.addf %366, %367 : vector<48x64xf32>
    %369 = arith.mulf %368, %368 : vector<48x64xf32>
    %370 = arith.mulf %368, %369 : vector<48x64xf32>
    %cst_145 = arith.constant 4.471500e-02 : f32
    %371 = vector.broadcast %cst_145 : f32 to vector<48x64xf32>
    %372 = arith.mulf %371, %370 : vector<48x64xf32>
    %373 = arith.addf %368, %372 : vector<48x64xf32>
    %cst_146 = arith.constant 0.797884583 : f32
    %374 = vector.broadcast %cst_146 : f32 to vector<48x64xf32>
    %375 = arith.mulf %374, %373 : vector<48x64xf32>
    %376 = math.tanh %375 : vector<48x64xf32>
    %cst_147 = arith.constant 1.000000e+00 : f32
    %377 = vector.broadcast %cst_147 : f32 to vector<48x64xf32>
    %378 = arith.addf %377, %376 : vector<48x64xf32>
    %cst_148 = arith.constant 5.000000e-01 : f32
    %379 = vector.broadcast %cst_148 : f32 to vector<48x64xf32>
    %380 = arith.mulf %379, %378 : vector<48x64xf32>
    %381 = arith.mulf %368, %380 : vector<48x64xf32>
    %c1_149 = arith.constant 1 : index
    %c0_150 = arith.constant 0 : index
    %c0_151 = arith.constant 0 : index
    %382 = vector.load %arg15[%c1_149, %c0_150, %c0_151] : memref<2x64x32xbf16, #tpu.memory_space<vmem>>, vector<1x64x32xbf16>
    %383 = vector.shape_cast %382 : vector<1x64x32xbf16> to vector<64x32xbf16>
    %c1_152 = arith.constant 1 : index
    %c0_153 = arith.constant 0 : index
    %c0_154 = arith.constant 0 : index
    %384 = vector.load %arg16[%c1_152, %c0_153, %c0_154] : memref<2x1x32xf32, #tpu.memory_space<vmem>>, vector<1x1x32xf32>
    %385 = vector.shape_cast %384 : vector<1x1x32xf32> to vector<1x32xf32>
    %386 = arith.truncf %381 : vector<48x64xf32> to vector<48x64xbf16>
    %cst_155 = arith.constant dense<0.000000e+00> : vector<48x32xf32>
    %387 = tpu.matmul %386, %383, %cst_155 {dimension_numbers = #tpu.dot_dimension_numbers<[1], [0], [0], [1], [0, 0, 1, 1], [], []>} : vector<48x64xbf16>, vector<64x32xbf16>, vector<48x32xf32> -> vector<48x32xf32>
    %388 = vector.broadcast %385 : vector<1x32xf32> to vector<48x32xf32>
    %389 = arith.addf %387, %388 : vector<48x32xf32>
    %390 = vector.shape_cast %389 : vector<48x32xf32> to vector<2x24x32xf32>
    %391 = arith.addf %333, %390 : vector<2x24x32xf32>
    %392 = vector.extract_strided_slice %391 {offsets = [0, 0, 0], sizes = [2, 1, 32], strides = [1, 1, 1]} : vector<2x24x32xf32> to vector<2x1x32xf32>
    %393 = vector.shape_cast %392 : vector<2x1x32xf32> to vector<2x32xf32>
    %c0_156 = arith.constant 0 : index
    %c0_157 = arith.constant 0 : index
    %394 = vector.load %arg17[%c0_156, %c0_157] : memref<1x32xf32, #tpu.memory_space<vmem>>, vector<1x32xf32>
    %c0_158 = arith.constant 0 : index
    %c0_159 = arith.constant 0 : index
    %395 = vector.load %arg18[%c0_158, %c0_159] : memref<1x32xf32, #tpu.memory_space<vmem>>, vector<1x32xf32>
    %cst_160 = arith.constant dense<0.000000e+00> : vector<2xf32>
    %396 = vector.multi_reduction <add>, %393, %cst_160 [1] : vector<2x32xf32> to vector<2xf32>
    %397 = vector.shape_cast %396 : vector<2xf32> to vector<2x1xf32>
    %cst_161 = arith.constant 3.200000e+01 : f32
    %398 = vector.broadcast %cst_161 : f32 to vector<2x1xf32>
    %399 = arith.divf %397, %398 : vector<2x1xf32>
    %400 = vector.broadcast %399 : vector<2x1xf32> to vector<2x32xf32>
    %401 = arith.subf %393, %400 : vector<2x32xf32>
    %402 = arith.mulf %401, %401 : vector<2x32xf32>
    %cst_162 = arith.constant dense<0.000000e+00> : vector<2xf32>
    %403 = vector.multi_reduction <add>, %402, %cst_162 [1] : vector<2x32xf32> to vector<2xf32>
    %404 = vector.shape_cast %403 : vector<2xf32> to vector<2x1xf32>
    %cst_163 = arith.constant 3.200000e+01 : f32
    %405 = vector.broadcast %cst_163 : f32 to vector<2x1xf32>
    %406 = arith.divf %404, %405 : vector<2x1xf32>
    %cst_164 = arith.constant 9.99999997E-7 : f32
    %407 = vector.broadcast %cst_164 : f32 to vector<2x1xf32>
    %408 = arith.addf %406, %407 : vector<2x1xf32>
    %409 = math.rsqrt %408 : vector<2x1xf32>
    %410 = vector.broadcast %409 : vector<2x1xf32> to vector<2x32xf32>
    %411 = arith.mulf %401, %410 : vector<2x32xf32>
    %412 = vector.broadcast %394 : vector<1x32xf32> to vector<2x32xf32>
    %413 = arith.mulf %411, %412 : vector<2x32xf32>
    %414 = vector.broadcast %395 : vector<1x32xf32> to vector<2x32xf32>
    %415 = arith.addf %413, %414 : vector<2x32xf32>
    %c0_165 = arith.constant 0 : index
    %c0_166 = arith.constant 0 : index
    %416 = vector.load %arg19[%c0_165, %c0_166] : memref<32x128xbf16, #tpu.memory_space<vmem>>, vector<32x128xbf16>
    %c0_167 = arith.constant 0 : index
    %c0_168 = arith.constant 0 : index
    %417 = vector.load %arg20[%c0_167, %c0_168] : memref<1x128xf32, #tpu.memory_space<vmem>>, vector<1x128xf32>
    %418 = arith.truncf %415 : vector<2x32xf32> to vector<2x32xbf16>
    %cst_169 = arith.constant dense<0.000000e+00> : vector<2x128xf32>
    %419 = tpu.matmul %418, %416, %cst_169 {dimension_numbers = #tpu.dot_dimension_numbers<[1], [0], [0], [1], [0, 0, 1, 1], [], []>} : vector<2x32xbf16>, vector<32x128xbf16>, vector<2x128xf32> -> vector<2x128xf32>
    %420 = vector.broadcast %417 : vector<1x128xf32> to vector<2x128xf32>
    %421 = arith.addf %419, %420 : vector<2x128xf32>
    %c0_170 = arith.constant 0 : index
    %c0_171 = arith.constant 0 : index
    %422 = vector.load %arg21[%c0_170, %c0_171] : memref<2x128xf32, #tpu.memory_space<vmem>>, vector<2x128xf32>
    tpu.vector_store %arg21[%c0_170, %c0_171], %421 {strides = array<i32>} : memref<2x128xf32, #tpu.memory_space<vmem>>, vector<2x128xf32>,
    return
  }
  func.func @transform_0(%arg0: i32) -> (i32, i32, i32) {
    %c0_i32 = arith.constant 0 : i32
    %c0_i32_0 = arith.constant 0 : i32
    %c0_i32_1 = arith.constant 0 : i32
    %c0_i32_2 = arith.constant 0 : i32
    return %c0_i32, %c0_i32_0, %c0_i32_1 : i32, i32, i32
  }
  func.func @transform_1(%arg0: i32) -> (i32, i32) {
    %c0_i32 = arith.constant 0 : i32
    %c0_i32_0 = arith.constant 0 : i32
    %c0_i32_1 = arith.constant 0 : i32
    return %c0_i32, %c0_i32_0 : i32, i32
  }
  func.func @transform_2(%arg0: i32) -> (i32, i32) {
    %c0_i32 = arith.constant 0 : i32
    %c0_i32_0 = arith.constant 0 : i32
    %c0_i32_1 = arith.constant 0 : i32
    return %c0_i32, %c0_i32_0 : i32, i32
  }
  func.func @transform_3(%arg0: i32) -> (i32, i32, i32) {
    %c0_i32 = arith.constant 0 : i32
    %c0_i32_0 = arith.constant 0 : i32
    %c0_i32_1 = arith.constant 0 : i32
    %c0_i32_2 = arith.constant 0 : i32
    return %c0_i32, %c0_i32_0, %c0_i32_1 : i32, i32, i32
  }
  func.func @transform_4(%arg0: i32) -> (i32, i32, i32) {
    %c0_i32 = arith.constant 0 : i32
    %c0_i32_0 = arith.constant 0 : i32
    %c0_i32_1 = arith.constant 0 : i32
    %c0_i32_2 = arith.constant 0 : i32
    return %c0_i32, %c0_i32_0, %c0_i32_1 : i32, i32, i32
  }
  func.func @transform_5(%arg0: i32) -> (i32, i32, i32) {
    %c0_i32 = arith.constant 0 : i32
    %c0_i32_0 = arith.constant 0 : i32
    %c0_i32_1 = arith.constant 0 : i32
    %c0_i32_2 = arith.constant 0 : i32
    return %c0_i32, %c0_i32_0, %c0_i32_1 : i32, i32, i32
  }
  func.func @transform_6(%arg0: i32) -> (i32, i32, i32) {
    %c0_i32 = arith.constant 0 : i32
    %c0_i32_0 = arith.constant 0 : i32
    %c0_i32_1 = arith.constant 0 : i32
    %c0_i32_2 = arith.constant 0 : i32
    return %c0_i32, %c0_i32_0, %c0_i32_1 : i32, i32, i32
  }
  func.func @transform_7(%arg0: i32) -> (i32, i32, i32) {
    %c0_i32 = arith.constant 0 : i32
    %c0_i32_0 = arith.constant 0 : i32
    %c0_i32_1 = arith.constant 0 : i32
    %c0_i32_2 = arith.constant 0 : i32
    return %c0_i32, %c0_i32_0, %c0_i32_1 : i32, i32, i32
  }
  func.func @transform_8(%arg0: i32) -> (i32, i32, i32) {
    %c0_i32 = arith.constant 0 : i32
    %c0_i32_0 = arith.constant 0 : i32
    %c0_i32_1 = arith.constant 0 : i32
    %c0_i32_2 = arith.constant 0 : i32
    return %c0_i32, %c0_i32_0, %c0_i32_1 : i32, i32, i32
  }
  func.func @transform_9(%arg0: i32) -> (i32, i32, i32) {
    %c0_i32 = arith.constant 0 : i32
    %c0_i32_0 = arith.constant 0 : i32
    %c0_i32_1 = arith.constant 0 : i32
    %c0_i32_2 = arith.constant 0 : i32
    return %c0_i32, %c0_i32_0, %c0_i32_1 : i32, i32, i32
  }
  func.func @transform_10(%arg0: i32) -> (i32, i32, i32) {
    %c0_i32 = arith.constant 0 : i32
    %c0_i32_0 = arith.constant 0 : i32
    %c0_i32_1 = arith.constant 0 : i32
    %c0_i32_2 = arith.constant 0 : i32
    return %c0_i32, %c0_i32_0, %c0_i32_1 : i32, i32, i32
  }
  func.func @transform_11(%arg0: i32) -> (i32, i32, i32) {
    %c0_i32 = arith.constant 0 : i32
    %c0_i32_0 = arith.constant 0 : i32
    %c0_i32_1 = arith.constant 0 : i32
    %c0_i32_2 = arith.constant 0 : i32
    return %c0_i32, %c0_i32_0, %c0_i32_1 : i32, i32, i32
  }
  func.func @transform_12(%arg0: i32) -> (i32, i32, i32) {
    %c0_i32 = arith.constant 0 : i32
    %c0_i32_0 = arith.constant 0 : i32
    %c0_i32_1 = arith.constant 0 : i32
    %c0_i32_2 = arith.constant 0 : i32
    return %c0_i32, %c0_i32_0, %c0_i32_1 : i32, i32, i32
  }
  func.func @transform_13(%arg0: i32) -> (i32, i32, i32) {
    %c0_i32 = arith.constant 0 : i32
    %c0_i32_0 = arith.constant 0 : i32
    %c0_i32_1 = arith.constant 0 : i32
    %c0_i32_2 = arith.constant 0 : i32
    return %c0_i32, %c0_i32_0, %c0_i32_1 : i32, i32, i32
  }
  func.func @transform_14(%arg0: i32) -> (i32, i32, i32) {
    %c0_i32 = arith.constant 0 : i32
    %c0_i32_0 = arith.constant 0 : i32
    %c0_i32_1 = arith.constant 0 : i32
    %c0_i32_2 = arith.constant 0 : i32
    return %c0_i32, %c0_i32_0, %c0_i32_1 : i32, i32, i32
  }
  func.func @transform_15(%arg0: i32) -> (i32, i32, i32) {
    %c0_i32 = arith.constant 0 : i32
    %c0_i32_0 = arith.constant 0 : i32
    %c0_i32_1 = arith.constant 0 : i32
    %c0_i32_2 = arith.constant 0 : i32
    return %c0_i32, %c0_i32_0, %c0_i32_1 : i32, i32, i32
  }
  func.func @transform_16(%arg0: i32) -> (i32, i32) {
    %c0_i32 = arith.constant 0 : i32
    %c0_i32_0 = arith.constant 0 : i32
    %c0_i32_1 = arith.constant 0 : i32
    return %c0_i32, %c0_i32_0 : i32, i32
  }
  func.func @transform_17(%arg0: i32) -> (i32, i32) {
    %c0_i32 = arith.constant 0 : i32
    %c0_i32_0 = arith.constant 0 : i32
    %c0_i32_1 = arith.constant 0 : i32
    return %c0_i32, %c0_i32_0 : i32, i32
  }
  func.func @transform_18(%arg0: i32) -> (i32, i32) {
    %c0_i32 = arith.constant 0 : i32
    %c0_i32_0 = arith.constant 0 : i32
    %c0_i32_1 = arith.constant 0 : i32
    return %c0_i32, %c0_i32_0 : i32, i32
  }
  func.func @transform_19(%arg0: i32) -> (i32, i32) {
    %c0_i32 = arith.constant 0 : i32
    %c0_i32_0 = arith.constant 0 : i32
    %c0_i32_1 = arith.constant 0 : i32
    return %c0_i32, %c0_i32_0 : i32, i32
  }
  func.func @transform_20(%arg0: i32) -> (i32, i32) {
    %c0_i32 = arith.constant 0 : i32
    %c0_i32_0 = arith.constant 0 : i32
    %c0_i32_1 = arith.constant 0 : i32
    return %c0_i32, %c0_i32_0 : i32, i32
  }
}

</mosaic_0001>

<llo_original>
// kernel: vit_forward.1
$region0: #{vit_forward.1}
  #allocation0 [shape = 'u32[]', space=smem, size = 0x4, offset = 0x4, fixed_abs, tag = 'smem constant byte address 0x4 - core index']
  #allocation1 [shape = 'u32[144,128]{1,0:T(1,128)}', space=vmem, size = 0x12000, scoped, tag = 'internal scratch']
  %s0 = inlined_call_operand.vmem [shape: f32[2,24,64], index: 0, kind: input, shape index: {}]
  %s1 = inlined_call_operand.vmem [shape: f32[1,24], index: 1, kind: input, shape index: {}]
  %s2 = inlined_call_operand.vmem [shape: bf16[64,32], index: 2, kind: input, shape index: {}]
  %s3 = inlined_call_operand.vmem [shape: f32[1,24,32], index: 3, kind: input, shape index: {}]
  %s4 = inlined_call_operand.vmem [shape: f32[2,1,32], index: 4, kind: input, shape index: {}]
  %s5 = inlined_call_operand.vmem [shape: f32[2,1,32], index: 5, kind: input, shape index: {}]
  %s6 = inlined_call_operand.vmem [shape: bf16[2,32,96], index: 6, kind: input, shape index: {}]
  %s7 = inlined_call_operand.vmem [shape: f32[2,1,96], index: 7, kind: input, shape index: {}]
  %s8 = inlined_call_operand.vmem [shape: bf16[2,32,32], index: 8, kind: input, shape index: {}]
  %s9 = inlined_call_operand.vmem [shape: f32[2,1,32], index: 9, kind: input, shape index: {}]
  %s10 = inlined_call_operand.vmem [shape: f32[2,1,32], index: 10, kind: input, shape index: {}]
  %s11 = inlined_call_operand.vmem [shape: f32[2,1,32], index: 11, kind: input, shape index: {}]
  %s12 = inlined_call_operand.vmem [shape: bf16[2,32,64], index: 12, kind: input, shape index: {}]
  %s13 = inlined_call_operand.vmem [shape: f32[2,1,64], index: 13, kind: input, shape index: {}]
  %s14 = inlined_call_operand.vmem [shape: bf16[2,64,32], index: 14, kind: input, shape index: {}]
  %s15 = inlined_call_operand.vmem [shape: f32[2,1,32], index: 15, kind: input, shape index: {}]
  %s16 = inlined_call_operand.vmem [shape: f32[1,32], index: 16, kind: input, shape index: {}]
  %s17 = inlined_call_operand.vmem [shape: f32[1,32], index: 17, kind: input, shape index: {}]
  %s18 = inlined_call_operand.vmem [shape: bf16[32,128], index: 18, kind: input, shape index: {}]
  %s19 = inlined_call_operand.vmem [shape: f32[1,128], index: 19, kind: input, shape index: {}]
  %s20 = inlined_call_operand.hbm [shape: f32[2,128], index: 20, kind: output, shape index: {}]
  %s21 = sld [smem:[#allocation0]]
  $region90: #{vit_forward.1} parent=0
    _
  %s23 = ssub.s32 1, %s21
  %s24 = scalar_select 0, %s23, %s21
  $region1: #{vit_forward.1} parent=0
    #allocation2 [shape = 'u8[1024]{0}', space=vmem, size = 0x400, scoped, tag = 'output window, operand 0, single buffered']
    #allocation3 [shape = 's32[1]{0}', space=sflag, size = 0x4, scoped, tag = 'scoped memory for vit_forward.1']
    %25 = vsyncpa [#allocation3], 0
    // Predicated region
    $region2: #{vit_forward.1} parent=1 // pred_check
      _
    $region3: #{vit_forward.1} parent=1 // pred_check_branch
      %27 = sbr.rel (0) target = $region5
    $region4: #{vit_forward.1} parent=1 // pred_region
      _
    $region5: #{vit_forward.1} parent=1 // pred_fallthru
      _
    // Predicated region
    $region6: #{vit_forward.1} parent=1 // pred_check
      _
    $region7: #{vit_forward.1} parent=1 // pred_check_branch
      %29 = sbr.rel (0) target = $region9
    $region8: #{vit_forward.1} parent=1 // pred_region
      _
    $region9: #{vit_forward.1} parent=1 // pred_fallthru
      _
    // Predicated region
    $region10: #{vit_forward.1} parent=1 // pred_check
      _
    $region11: #{vit_forward.1} parent=1 // pred_check_branch
      %31 = sbr.rel (0) target = $region13
    $region12: #{vit_forward.1} parent=1 // pred_region
      _
    $region13: #{vit_forward.1} parent=1 // pred_fallthru
      _
    // Predicated region
    $region14: #{vit_forward.1} parent=1 // pred_check
      _
    $region15: #{vit_forward.1} parent=1 // pred_check_branch
      %33 = sbr.rel (0) target = $region17
    $region16: #{vit_forward.1} parent=1 // pred_region
      _
    $region17: #{vit_forward.1} parent=1 // pred_fallthru
      _
    // Predicated region
    $region18: #{vit_forward.1} parent=1 // pred_check
      _
    $region19: #{vit_forward.1} parent=1 // pred_check_branch
      %35 = sbr.rel (0) target = $region21
    $region20: #{vit_forward.1} parent=1 // pred_region
      _
    $region21: #{vit_forward.1} parent=1 // pred_fallthru
      _
    // Predicated region
    $region22: #{vit_forward.1} parent=1 // pred_check
      _
    $region23: #{vit_forward.1} parent=1 // pred_check_branch
      %37 = sbr.rel (0) target = $region25
    $region24: #{vit_forward.1} parent=1 // pred_region
      _
    $region25: #{vit_forward.1} parent=1 // pred_fallthru
      _
    // Predicated region
    $region26: #{vit_forward.1} parent=1 // pred_check
      _
    $region27: #{vit_forward.1} parent=1 // pred_check_branch
      %39 = sbr.rel (0) target = $region29
    $region28: #{vit_forward.1} parent=1 // pred_region
      _
    $region29: #{vit_forward.1} parent=1 // pred_fallthru
      _
    // Predicated region
    $region30: #{vit_forward.1} parent=1 // pred_check
      _
    $region31: #{vit_forward.1} parent=1 // pred_check_branch
      %41 = sbr.rel (0) target = $region33
    $region32: #{vit_forward.1} parent=1 // pred_region
      _
    $region33: #{vit_forward.1} parent=1 // pred_fallthru
      _
    // Predicated region
    $region34: #{vit_forward.1} parent=1 // pred_check
      _
    $region35: #{vit_forward.1} parent=1 // pred_check_branch
      %43 = sbr.rel (0) target = $region37
    $region36: #{vit_forward.1} parent=1 // pred_region
      _
    $region37: #{vit_forward.1} parent=1 // pred_fallthru
      _
    // Predicated region
    $region38: #{vit_forward.1} parent=1 // pred_check
      _
    $region39: #{vit_forward.1} parent=1 // pred_check_branch
      %45 = sbr.rel (0) target = $region41
    $region40: #{vit_forward.1} parent=1 // pred_region
      _
    $region41: #{vit_forward.1} parent=1 // pred_fallthru
      _
    // Predicated region
    $region42: #{vit_forward.1} parent=1 // pred_check
      _
    $region43: #{vit_forward.1} parent=1 // pred_check_branch
      %47 = sbr.rel (0) target = $region45
    $region44: #{vit_forward.1} parent=1 // pred_region
      _
    $region45: #{vit_forward.1} parent=1 // pred_fallthru
      _
    // Predicated region
    $region46: #{vit_forward.1} parent=1 // pred_check
      _
    $region47: #{vit_forward.1} parent=1 // pred_check_branch
      %49 = sbr.rel (0) target = $region49
    $region48: #{vit_forward.1} parent=1 // pred_region
      _
    $region49: #{vit_forward.1} parent=1 // pred_fallthru
      _
    // Predicated region
    $region50: #{vit_forward.1} parent=1 // pred_check
      _
    $region51: #{vit_forward.1} parent=1 // pred_check_branch
      %51 = sbr.rel (0) target = $region53
    $region52: #{vit_forward.1} parent=1 // pred_region
      _
    $region53: #{vit_forward.1} parent=1 // pred_fallthru
      _
    // Predicated region
    $region54: #{vit_forward.1} parent=1 // pred_check
      _
    $region55: #{vit_forward.1} parent=1 // pred_check_branch
      %53 = sbr.rel (0) target = $region57
    $region56: #{vit_forward.1} parent=1 // pred_region
      _
    $region57: #{vit_forward.1} parent=1 // pred_fallthru
      _
    // Predicated region
    $region58: #{vit_forward.1} parent=1 // pred_check
      _
    $region59: #{vit_forward.1} parent=1 // pred_check_branch
      %55 = sbr.rel (0) target = $region61
    $region60: #{vit_forward.1} parent=1 // pred_region
      _
    $region61: #{vit_forward.1} parent=1 // pred_fallthru
      _
    // Predicated region
    $region62: #{vit_forward.1} parent=1 // pred_check
      _
    $region63: #{vit_forward.1} parent=1 // pred_check_branch
      %57 = sbr.rel (0) target = $region65
    $region64: #{vit_forward.1} parent=1 // pred_region
      _
    $region65: #{vit_forward.1} parent=1 // pred_fallthru
      _
    // Predicated region
    $region66: #{vit_forward.1} parent=1 // pred_check
      _
    $region67: #{vit_forward.1} parent=1 // pred_check_branch
      %59 = sbr.rel (0) target = $region69
    $region68: #{vit_forward.1} parent=1 // pred_region
      _
    $region69: #{vit_forward.1} parent=1 // pred_fallthru
      _
    // Predicated region
    $region70: #{vit_forward.1} parent=1 // pred_check
      _
    $region71: #{vit_forward.1} parent=1 // pred_check_branch
      %61 = sbr.rel (0) target = $region73
    $region72: #{vit_forward.1} parent=1 // pred_region
      _
    $region73: #{vit_forward.1} parent=1 // pred_fallthru
      _
    // Predicated region
    $region74: #{vit_forward.1} parent=1 // pred_check
      _
    $region75: #{vit_forward.1} parent=1 // pred_check_branch
      %63 = sbr.rel (0) target = $region77
    $region76: #{vit_forward.1} parent=1 // pred_region
      _
    $region77: #{vit_forward.1} parent=1 // pred_fallthru
      _
    // Predicated region
    $region78: #{vit_forward.1} parent=1 // pred_check
      _
    $region79: #{vit_forward.1} parent=1 // pred_check_branch
      %65 = sbr.rel (0) target = $region81
    $region80: #{vit_forward.1} parent=1 // pred_region
      _
    $region81: #{vit_forward.1} parent=1 // pred_fallthru
      _
    %v67 = vld [vmem:[%s1] sm:$0x1]
    %v68 = vld [vmem:[%s0] sm:$0xff]
    %v69 = vld [vmem:[%s0 + $0x8] sm:$0xff]
    %v70 = vld [vmem:[%s0 + $0x10] sm:$0xff]
    %v71 = vld [vmem:[%s0 + $0x18] sm:$0xff]
    %v72 = vld [vmem:[%s0 + $0x20] sm:$0xff]
    %v73 = vld [vmem:[%s0 + $0x28] sm:$0xff]
    %v74 = vld [vmem:[%s2] sm:$0xf]
    %v75 = vld [vmem:[%s2 + $0x4] sm:$0xf]
    %v76 = vld [vmem:[%s2 + $0x8] sm:$0xf]
    %v77 = vld [vmem:[%s2 + $0xc] sm:$0xf]
    %v78 = vld [vmem:[%s2 + $0x10] sm:$0xf]
    %v79 = vld [vmem:[%s2 + $0x14] sm:$0xf]
    %v80 = vld [vmem:[%s2 + $0x18] sm:$0xf]
    %v81 = vld [vmem:[%s2 + $0x1c] sm:$0xf]
    %v82 = vpack.c.bf16 %v69, %v68
    %v83 = vpack.c.bf16 %v71, %v70
    %v84 = vpack.c.bf16 %v73, %v72
    %v93 = vunpack.c.l.b16 %v74
    %v94 = vunpack.c.l.b16 %v75
    %v95 = vunpack.c.l.b16 %v76
    %v96 = vunpack.c.l.b16 %v77
    %v97 = vunpack.c.l.b16 %v78
    %v98 = vunpack.c.l.b16 %v79
    %v99 = vunpack.c.l.b16 %v80
    %v100 = vunpack.c.l.b16 %v81
    %v101 = vpack.c.b16 %v94, %v93
    %v102 = vpack.c.b16 %v96, %v95
    %v103 = vpack.c.b16 %v98, %v97
    %v104 = vpack.c.b16 %v100, %v99
    %vm109 = vcmask 523264
    %v111 = vsel %vm109, %v82, 0
    %v114 = vsel %vm109, %v83, 0
    %v117 = vsel %vm109, %v84, 0
    %119 = vmatprep.subr.bf16.mxu0 0
    %120 = vmatpush1.bf16.msra.mxu0 %v101
    %121 = vmatprep.subr.bf16.mxu0 0
    %122 = vmatpush1.bf16.msra.mxu0 %v102
    %123 = vmatprep.subr.bf16.mxu0 0
    %124 = vmatpush1.bf16.msra.mxu0 %v103
    %125 = vmatprep.subr.bf16.mxu0 0
    %126 = vmatpush1.bf16.msra.mxu0 %v104
    %127 = vmatprep.subr.bf16.mxu0 0
    %128 = vmatpush1.bf16.msra.mxu0 0
    %129 = vmatprep.subr.bf16.mxu0 0
    %130 = vmatpush1.bf16.msra.mxu0 0
    %131 = vmatprep.subr.bf16.mxu0 0
    %132 = vmatpush1.bf16.msra.mxu0 0
    %133 = vmatprep.subr.bf16.mxu0 0
    %134 = vmatpush1.bf16.msra.mxu0 0
    %135 = vmatprep.subr.bf16.mxu0 0
    %136 = vmatpush1.bf16.msra.mxu0 0
    %137 = vmatprep.subr.bf16.mxu0 0
    %138 = vmatpush1.bf16.msra.mxu0 0
    %139 = vmatprep.subr.bf16.mxu0 0
    %140 = vmatpush1.bf16.msra.mxu0 0
    %141 = vmatprep.subr.bf16.mxu0 0
    %142 = vmatpush1.bf16.msra.mxu0 0
    %143 = vmatprep.subr.bf16.mxu0 0
    %144 = vmatpush1.bf16.msra.mxu0 0
    %145 = vmatprep.subr.bf16.mxu0 0
    %146 = vmatpush1.bf16.msra.mxu0 0
    %147 = vmatprep.subr.bf16.mxu0 0
    %148 = vmatpush1.bf16.msra.mxu0 0
    %149 = vmatprep.subr.bf16.mxu0 0
    %150 = vmatpush1.bf16.msra.mxu0 0
    %151 = vmatprep.mubr.bf16.mxu0 0
    %152 = vmatmul.mubr.bf16.gmra.mrb[0].mxu0 %v111
    %v153 = vpop.f32.mrb[0].mxu0
    %v154 = vadd.f32 0.0, %v153
    %v155 = vpop.f32.mrb[0].mxu0
    %v156 = vpop.f32.mrb[0].mxu0
    %v157 = vadd.f32 0.0, %v156
    %v158 = vpop.f32.mrb[0].mxu0
    %159 = vmatprep.mubr.bf16.mxu0 0
    %160 = vmatmul.mubr.bf16.gmra.mrb[0].mxu0 %v114
    %v161 = vpop.f32.mrb[0].mxu0
    %v162 = vadd.f32 0.0, %v161
    %v163 = vpop.f32.mrb[0].mxu0
    %v164 = vpop.f32.mrb[0].mxu0
    %v165 = vadd.f32 0.0, %v164
    %v166 = vpop.f32.mrb[0].mxu0
    %167 = vmatprep.mubr.bf16.mxu0 0
    %168 = vmatmul.mubr.bf16.gmra.mrb[0].mxu0 %v117
    %v169 = vpop.f32.mrb[0].mxu0
    %v170 = vadd.f32 0.0, %v169
    %v171 = vpop.f32.mrb[0].mxu0
    %v172 = vpop.f32.mrb[0].mxu0
    %v173 = vadd.f32 0.0, %v172
    %v174 = vpop.f32.mrb[0].mxu0
    %175 = vdwg.mxu0
    %v176 = vld [vmem:[%s3] sm:$0xff]
    %v177 = vld [vmem:[%s3 + $0x8] sm:$0xff]
    %v178 = vld [vmem:[%s3 + $0x10] sm:$0xff]
    %v179 = vadd.f32 %v154, %v176
    %v180 = vadd.f32 %v157, %v177
    %v181 = vadd.f32 %v162, %v178
    %v182 = vadd.f32 %v165, %v176
    %v183 = vadd.f32 %v170, %v177
    %v184 = vadd.f32 %v173, %v178
    %v185 = vld [vmem:[%s4] sm:$0x1]
    %v186 = vld [vmem:[%s5] sm:$0x1]
    %vm187 = vcmask 261120
    %v188 = vsel %vm187, %v179, 0.0
    %189 = vadd.xlane.f32.xlu0 %v188
    %v190 = vpop.xlane.xlu0 %189
    %v191 = vsel %vm187, %v180, 0.0
    %192 = vadd.xlane.f32.xlu0 %v191
    %v193 = vpop.xlane.xlu0 %192
    %v194 = vsel %vm187, %v181, 0.0
    %195 = vadd.xlane.f32.xlu0 %v194
    %v196 = vpop.xlane.xlu0 %195
    %v197 = vsel %vm187, %v182, 0.0
    %198 = vadd.xlane.f32.xlu0 %v197
    %v199 = vpop.xlane.xlu0 %198
    %v200 = vsel %vm187, %v183, 0.0
    %201 = vadd.xlane.f32.xlu0 %v200
    %v202 = vpop.xlane.xlu0 %201
    %v203 = vsel %vm187, %v184, 0.0
    %204 = vadd.xlane.f32.xlu0 %v203
    %v205 = vpop.xlane.xlu0 %204
    %v206 = vrcp.pop 32.0
    %v207 = vmul.f32 %v190, %v206
    %v208 = vmul.f32 %v193, %v206
    %v209 = vmul.f32 %v196, %v206
    %v210 = vmul.f32 %v199, %v206
    %v211 = vmul.f32 %v202, %v206
    %v212 = vmul.f32 %v205, %v206
    %v213 = vsub.f32 %v179, %v207
    %v214 = vsub.f32 %v180, %v208
    %v215 = vsub.f32 %v181, %v209
    %v216 = vsub.f32 %v182, %v210
    %v217 = vsub.f32 %v183, %v211
    %v218 = vsub.f32 %v184, %v212
    %v219 = vmul.f32 %v213, %v213
    %v220 = vmul.f32 %v214, %v214
    %v221 = vmul.f32 %v215, %v215
    %v222 = vmul.f32 %v216, %v216
    %v223 = vmul.f32 %v217, %v217
    %v224 = vmul.f32 %v218, %v218
    %v225 = vsel %vm187, %v219, 0.0
    %226 = vadd.xlane.f32.xlu0 %v225
    %v227 = vpop.xlane.xlu0 %226
    %v228 = vsel %vm187, %v220, 0.0
    %229 = vadd.xlane.f32.xlu0 %v228
    %v230 = vpop.xlane.xlu0 %229
    %v231 = vsel %vm187, %v221, 0.0
    %232 = vadd.xlane.f32.xlu0 %v231
    %v233 = vpop.xlane.xlu0 %232
    %v234 = vsel %vm187, %v222, 0.0
    %235 = vadd.xlane.f32.xlu0 %v234
    %v236 = vpop.xlane.xlu0 %235
    %v237 = vsel %vm187, %v223, 0.0
    %238 = vadd.xlane.f32.xlu0 %v237
    %v239 = vpop.xlane.xlu0 %238
    %v240 = vsel %vm187, %v224, 0.0
    %241 = vadd.xlane.f32.xlu0 %v240
    %v242 = vpop.xlane.xlu0 %241
    %v243 = vmul.f32 %v227, %v206
    %v244 = vmul.f32 %v230, %v206
    %v245 = vmul.f32 %v233, %v206
    %v246 = vmul.f32 %v236, %v206
    %v247 = vmul.f32 %v239, %v206
    %v248 = vmul.f32 %v242, %v206
    %v249 = vadd.f32 %v243, 1e-06
    %v250 = vadd.f32 %v244, 1e-06
    %v251 = vadd.f32 %v245, 1e-06
    %v252 = vadd.f32 %v246, 1e-06
    %v253 = vadd.f32 %v247, 1e-06
    %v254 = vadd.f32 %v248, 1e-06
    %v255 = vrsqrt.pop %v249
    %v256 = vrsqrt.pop %v250
    %v257 = vrsqrt.pop %v251
    %v258 = vrsqrt.pop %v252
    %v259 = vrsqrt.pop %v253
    %v260 = vrsqrt.pop %v254
    %v261 = vmul.f32 %v213, %v255
    %v262 = vmul.f32 %v214, %v256
    %v263 = vmul.f32 %v215, %v257
    %v264 = vmul.f32 %v216, %v258
    %v265 = vmul.f32 %v217, %v259
    %v266 = vmul.f32 %v218, %v260
    %v268 = vlaneseq
    %v269 = vshrl.u32 %v268, 7
    %v270 = vsub.s32 0, %v269
    %v271 = vrot.slane %v185, %v270
    %v273 = vmul.f32 %v261, %v271
    %v274 = vmul.f32 %v262, %v271
    %v275 = vmul.f32 %v263, %v271
    %v276 = vmul.f32 %v264, %v271
    %v277 = vmul.f32 %v265, %v271
    %v278 = vmul.f32 %v266, %v271
    %v280 = vlaneseq
    %v281 = vshrl.u32 %v280, 7
    %v282 = vsub.s32 0, %v281
    %v283 = vrot.slane %v186, %v282
    %v285 = vadd.f32 %v273, %v283
    %v286 = vadd.f32 %v274, %v283
    %v287 = vadd.f32 %v275, %v283
    %v288 = vadd.f32 %v276, %v283
    %v289 = vadd.f32 %v277, %v283
    %v290 = vadd.f32 %v278, %v283
    %v291 = vld [vmem:[%s6] sm:$0xf]
    %v292 = vld [vmem:[%s6 + $0x4] sm:$0xf]
    %v293 = vld [vmem:[%s6 + $0x8] sm:$0xf]
    %v294 = vld [vmem:[%s6 + $0xc] sm:$0xf]
    %v295 = vld [vmem:[%s7] sm:$0x1]
    %v296 = vpack.c.bf16 %v286, %v285
    %v297 = vpack.c.bf16 %v288, %v287
    %v298 = vpack.c.bf16 %v290, %v289
    %v300 = vlaneseq
    %v301 = vshrl.u32 %v300, 7
    %v302 = vsub.s32 0, %v301
    %v303 = vrot.slane %v295, %v302
    %v309 = vunpack.c.l.b16 %v291
    %v310 = vunpack.c.l.b16 %v292
    %v311 = vunpack.c.l.b16 %v293
    %v312 = vunpack.c.l.b16 %v294
    %v313 = vpack.c.b16 %v310, %v309
    %v314 = vpack.c.b16 %v312, %v311
    %v318 = vsel %vm187, %v296, 0
    %v321 = vsel %vm187, %v297, 0
    %v324 = vsel %vm187, %v298, 0
    %326 = vmatprep.subr.bf16.mxu0 0
    %327 = vmatpush1.bf16.msra.mxu0 %v313
    %328 = vmatprep.subr.bf16.mxu0 0
    %329 = vmatpush1.bf16.msra.mxu0 %v314
    %330 = vmatprep.subr.bf16.mxu0 0
    %331 = vmatpush1.bf16.msra.mxu0 0
    %332 = vmatprep.subr.bf16.mxu0 0
    %333 = vmatpush1.bf16.msra.mxu0 0
    %334 = vmatprep.subr.bf16.mxu0 0
    %335 = vmatpush1.bf16.msra.mxu0 0
    %336 = vmatprep.subr.bf16.mxu0 0
    %337 = vmatpush1.bf16.msra.mxu0 0
    %338 = vmatprep.subr.bf16.mxu0 0
    %339 = vmatpush1.bf16.msra.mxu0 0
    %340 = vmatprep.subr.bf16.mxu0 0
    %341 = vmatpush1.bf16.msra.mxu0 0
    %342 = vmatprep.subr.bf16.mxu0 0
    %343 = vmatpush1.bf16.msra.mxu0 0
    %344 = vmatprep.subr.bf16.mxu0 0
    %345 = vmatpush1.bf16.msra.mxu0 0
    %346 = vmatprep.subr.bf16.mxu0 0
    %347 = vmatpush1.bf16.msra.mxu0 0
    %348 = vmatprep.subr.bf16.mxu0 0
    %349 = vmatpush1.bf16.msra.mxu0 0
    %350 = vmatprep.subr.bf16.mxu0 0
    %351 = vmatpush1.bf16.msra.mxu0 0
    %352 = vmatprep.subr.bf16.mxu0 0
    %353 = vmatpush1.bf16.msra.mxu0 0
    %354 = vmatprep.subr.bf16.mxu0 0
    %355 = vmatpush1.bf16.msra.mxu0 0
    %356 = vmatprep.subr.bf16.mxu0 0
    %357 = vmatpush1.bf16.msra.mxu0 0
    %358 = vmatprep.mubr.bf16.mxu0 0
    %359 = vmatmul.mubr.bf16.gmra.mrb[0].mxu0 %v318
    %v360 = vpop.f32.mrb[0].mxu0
    %v361 = vadd.f32 %v303, %v360
    %v362 = vpop.f32.mrb[0].mxu0
    %v363 = vpop.f32.mrb[0].mxu0
    %v364 = vadd.f32 %v303, %v363
    %v365 = vpop.f32.mrb[0].mxu0
    %366 = vmatprep.mubr.bf16.mxu0 0
    %367 = vmatmul.mubr.bf16.gmra.mrb[0].mxu0 %v321
    %v368 = vpop.f32.mrb[0].mxu0
    %v369 = vadd.f32 %v303, %v368
    %v370 = vpop.f32.mrb[0].mxu0
    %v371 = vpop.f32.mrb[0].mxu0
    %v372 = vadd.f32 %v303, %v371
    %v373 = vpop.f32.mrb[0].mxu0
    %374 = vmatprep.mubr.bf16.mxu0 0
    %375 = vmatmul.mubr.bf16.gmra.mrb[0].mxu0 %v324
    %v376 = vpop.f32.mrb[0].mxu0
    %v377 = vadd.f32 %v303, %v376
    %v378 = vpop.f32.mrb[0].mxu0
    %v379 = vpop.f32.mrb[0].mxu0
    %v380 = vadd.f32 %v303, %v379
    %v381 = vpop.f32.mrb[0].mxu0
    %382 = vdwg.mxu0
    %v383 = vpack.c.bf16 %v364, %v361
    %v384 = vpack.c.bf16 %v369, %v369
    %v385 = vpack.c.bf16 %v377, %v372
    %v386 = vpack.c.bf16 %v380, %v380
    %389 = vrot.lane.b32.xlu0 %v383, 96
    %v390 = vpop.permute.xlu0 %389
    %391 = vrot.lane.b32.xlu0 %v384, 96
    %v392 = vpop.permute.xlu0 %391
    %vm393 = vcmask 64512
    %v395 = vsel %vm393, %v383, 0
    %v398 = vsel %vm393, %v384, 0
    %v401 = vsel %vm393, %v390, 0
    %v404 = vsel %vm393, %v392, 0
    %406 = vmatprep.subr.bf16.mxu0 0
    %407 = vmatpush1.bf16.xpose.msra.mxu0 %v401
    %408 = vmatprep.subr.bf16.mxu0 0
    %409 = vmatpush1.bf16.xpose.msra.mxu0 %v404
    %410 = vmatprep.subr.bf16.mxu0 0
    %411 = vmatpush1.bf16.xpose.msra.mxu0 0
    %412 = vmatprep.subr.bf16.mxu0 0
    %413 = vmatpush1.bf16.xpose.msra.mxu0 0
    %414 = vmatprep.subr.bf16.mxu0 0
    %415 = vmatpush1.bf16.xpose.msra.mxu0 0
    %416 = vmatprep.subr.bf16.mxu0 0
    %417 = vmatpush1.bf16.xpose.msra.mxu0 0
    %418 = vmatprep.subr.bf16.mxu0 0
    %419 = vmatpush1.bf16.xpose.msra.mxu0 0
    %420 = vmatprep.subr.bf16.mxu0 0
    %421 = vmatpush1.bf16.xpose.msra.mxu0 0
    %422 = vmatprep.subr.bf16.mxu0 0
    %423 = vmatpush1.bf16.xpose.msra.mxu0 0
    %424 = vmatprep.subr.bf16.mxu0 0
    %425 = vmatpush1.bf16.xpose.msra.mxu0 0
    %426 = vmatprep.subr.bf16.mxu0 0
    %427 = vmatpush1.bf16.xpose.msra.mxu0 0
    %428 = vmatprep.subr.bf16.mxu0 0
    %429 = vmatpush1.bf16.xpose.msra.mxu0 0
    %430 = vmatprep.subr.bf16.mxu0 0
    %431 = vmatpush1.bf16.xpose.msra.mxu0 0
    %432 = vmatprep.subr.bf16.mxu0 0
    %433 = vmatpush1.bf16.xpose.msra.mxu0 0
    %434 = vmatprep.subr.bf16.mxu0 0
    %435 = vmatpush1.bf16.xpose.msra.mxu0 0
    %436 = vmatprep.subr.bf16.mxu0 0
    %437 = vmatpush1.bf16.xpose.msra.mxu0 0
    %438 = vmatprep.mubr.bf16.mxu0 0
    %439 = vmatmul.mubr.bf16.gmra.mrb[0].mxu0 %v395
    %v440 = vpop.f32.mrb[0].mxu0
    %v441 = vadd.f32 0.0, %v440
    %v442 = vpop.f32.mrb[0].mxu0
    %v443 = vpop.f32.mrb[0].mxu0
    %v444 = vadd.f32 0.0, %v443
    %v445 = vpop.f32.mrb[0].mxu0
    %446 = vmatprep.mubr.bf16.mxu0 0
    %447 = vmatmul.mubr.bf16.gmra.mrb[0].mxu0 %v398
    %v448 = vpop.f32.mrb[0].mxu0
    %v449 = vadd.f32 0.0, %v448
    %v450 = vpop.f32.mrb[0].mxu0
    %v451 = vpop.f32.mrb[0].mxu0
    %v452 = vpop.f32.mrb[0].mxu0
    %453 = vdwg.mxu0
    %456 = vrot.lane.b32.xlu0 %v385, 96
    %v457 = vpop.permute.xlu0 %456
    %458 = vrot.lane.b32.xlu0 %v386, 96
    %v459 = vpop.permute.xlu0 %458
    %v461 = vsel %vm393, %v385, 0
    %v464 = vsel %vm393, %v386, 0
    %v467 = vsel %vm393, %v457, 0
    %v470 = vsel %vm393, %v459, 0
    %472 = vmatprep.subr.bf16.mxu0 0
    %473 = vmatpush1.bf16.xpose.msra.mxu0 %v467
    %474 = vmatprep.subr.bf16.mxu0 0
    %475 = vmatpush1.bf16.xpose.msra.mxu0 %v470
    %476 = vmatprep.subr.bf16.mxu0 0
    %477 = vmatpush1.bf16.xpose.msra.mxu0 0
    %478 = vmatprep.subr.bf16.mxu0 0
    %479 = vmatpush1.bf16.xpose.msra.mxu0 0
    %480 = vmatprep.subr.bf16.mxu0 0
    %481 = vmatpush1.bf16.xpose.msra.mxu0 0
    %482 = vmatprep.subr.bf16.mxu0 0
    %483 = vmatpush1.bf16.xpose.msra.mxu0 0
    %484 = vmatprep.subr.bf16.mxu0 0
    %485 = vmatpush1.bf16.xpose.msra.mxu0 0
    %486 = vmatprep.subr.bf16.mxu0 0
    %487 = vmatpush1.bf16.xpose.msra.mxu0 0
    %488 = vmatprep.subr.bf16.mxu0 0
    %489 = vmatpush1.bf16.xpose.msra.mxu0 0
    %490 = vmatprep.subr.bf16.mxu0 0
    %491 = vmatpush1.bf16.xpose.msra.mxu0 0
    %492 = vmatprep.subr.bf16.mxu0 0
    %493 = vmatpush1.bf16.xpose.msra.mxu0 0
    %494 = vmatprep.subr.bf16.mxu0 0
    %495 = vmatpush1.bf16.xpose.msra.mxu0 0
    %496 = vmatprep.subr.bf16.mxu0 0
    %497 = vmatpush1.bf16.xpose.msra.mxu0 0
    %498 = vmatprep.subr.bf16.mxu0 0
    %499 = vmatpush1.bf16.xpose.msra.mxu0 0
    %500 = vmatprep.subr.bf16.mxu0 0
    %501 = vmatpush1.bf16.xpose.msra.mxu0 0
    %502 = vmatprep.subr.bf16.mxu0 0
    %503 = vmatpush1.bf16.xpose.msra.mxu0 0
    %504 = vmatprep.mubr.bf16.mxu0 0
    %505 = vmatmul.mubr.bf16.gmra.mrb[0].mxu0 %v461
    %v506 = vpop.f32.mrb[0].mxu0
    %v507 = vadd.f32 0.0, %v506
    %v508 = vpop.f32.mrb[0].mxu0
    %v509 = vpop.f32.mrb[0].mxu0
    %v510 = vadd.f32 0.0, %v509
    %v511 = vpop.f32.mrb[0].mxu0
    %512 = vmatprep.mubr.bf16.mxu0 0
    %513 = vmatmul.mubr.bf16.gmra.mrb[0].mxu0 %v464
    %v514 = vpop.f32.mrb[0].mxu0
    %v515 = vadd.f32 0.0, %v514
    %v516 = vpop.f32.mrb[0].mxu0
    %v517 = vpop.f32.mrb[0].mxu0
    %v518 = vpop.f32.mrb[0].mxu0
    %519 = vdwg.mxu0
    %v520 = vmul.f32 %v441, 0.35355338
    %v521 = vmul.f32 %v444, 0.35355338
    %v522 = vmul.f32 %v449, 0.35355338
    %v523 = vmul.f32 %v507, 0.35355338
    %v524 = vmul.f32 %v510, 0.35355338
    %v525 = vmul.f32 %v515, 0.35355338
    %v527 = vlaneseq
    %v528 = vshrl.u32 %v527, 7
    %v529 = vsub.s32 0, %v528
    %v530 = vrot.slane %v67, %v529
    %v532 = vadd.f32 %v520, %v530
    %v533 = vadd.f32 %v521, %v530
    %v534 = vadd.f32 %v522, %v530
    %v535 = vadd.f32 %v523, %v530
    %v536 = vadd.f32 %v524, %v530
    %v537 = vadd.f32 %v525, %v530
    %vm538 = vcmask 195584
    %v539 = vsel %vm538, %v532, -inf
    %540 = vmax.xlane.f32.xlu0 %v539
    %v541 = vpop.xlane.xlu0 %540
    %v542 = vsel %vm538, %v533, -inf
    %543 = vmax.xlane.f32.xlu0 %v542
    %v544 = vpop.xlane.xlu0 %543
    %v545 = vsel %vm538, %v534, -inf
    %546 = vmax.xlane.f32.xlu0 %v545
    %v547 = vpop.xlane.xlu0 %546
    %v548 = vsel %vm538, %v535, -inf
    %549 = vmax.xlane.f32.xlu0 %v548
    %v550 = vpop.xlane.xlu0 %549
    %v551 = vsel %vm538, %v536, -inf
    %552 = vmax.xlane.f32.xlu0 %v551
    %v553 = vpop.xlane.xlu0 %552
    %v554 = vsel %vm538, %v537, -inf
    %555 = vmax.xlane.f32.xlu0 %v554
    %v556 = vpop.xlane.xlu0 %555
    %v557 = vsub.f32 %v532, %v541
    %v558 = vsub.f32 %v533, %v544
    %v559 = vsub.f32 %v534, %v547
    %v560 = vsub.f32 %v535, %v550
    %v561 = vsub.f32 %v536, %v553
    %v562 = vsub.f32 %v537, %v556
    %v563 = vmul.f32 %v557, 1.442695
    %v564 = vpow.pop %v563
    %v565 = vmul.f32 %v558, 1.442695
    %v566 = vpow.pop %v565
    %v567 = vmul.f32 %v559, 1.442695
    %v568 = vpow.pop %v567
    %v569 = vmul.f32 %v560, 1.442695
    %v570 = vpow.pop %v569
    %v571 = vmul.f32 %v561, 1.442695
    %v572 = vpow.pop %v571
    %v573 = vmul.f32 %v562, 1.442695
    %v574 = vpow.pop %v573
    %v575 = vsel %vm538, %v564, 0.0
    %576 = vadd.xlane.f32.xlu0 %v575
    %v577 = vpop.xlane.xlu0 %576
    %v578 = vsel %vm538, %v566, 0.0
    %579 = vadd.xlane.f32.xlu0 %v578
    %v580 = vpop.xlane.xlu0 %579
    %v581 = vsel %vm538, %v568, 0.0
    %582 = vadd.xlane.f32.xlu0 %v581
    %v583 = vpop.xlane.xlu0 %582
    %v584 = vsel %vm538, %v570, 0.0
    %585 = vadd.xlane.f32.xlu0 %v584
    %v586 = vpop.xlane.xlu0 %585
    %v587 = vsel %vm538, %v572, 0.0
    %588 = vadd.xlane.f32.xlu0 %v587
    %v589 = vpop.xlane.xlu0 %588
    %v590 = vsel %vm538, %v574, 0.0
    %591 = vadd.xlane.f32.xlu0 %v590
    %v592 = vpop.xlane.xlu0 %591
    %v593 = vrcp.pop %v577
    %v594 = vrcp.pop %v580
    %v595 = vrcp.pop %v583
    %v596 = vrcp.pop %v586
    %v597 = vrcp.pop %v589
    %v598 = vrcp.pop %v592
    %v599 = vmul.f32 %v564, %v593
    %v600 = vmul.f32 %v566, %v594
    %v601 = vmul.f32 %v568, %v595
    %v602 = vmul.f32 %v570, %v596
    %v603 = vmul.f32 %v572, %v597
    %v604 = vmul.f32 %v574, %v598
    %v605 = vpack.c.bf16 %v600, %v599
    %v606 = vpack.c.bf16 %v601, %v601
    %v607 = vpack.c.bf16 %v603, %v602
    %v608 = vpack.c.bf16 %v604, %v604
    %609 = vrot.lane.b32.xlu0 %v383, 64
    %v610 = vpop.permute.xlu0 %609
    %611 = vrot.lane.b32.xlu0 %v384, 64
    %v612 = vpop.permute.xlu0 %611
    %v615 = vsel %vm538, %v605, 0
    %v618 = vsel %vm538, %v606, 0
    %vm620 = vcmask 1043456
    %v622 = vsel %vm620, %v612, 0
    %624 = vmatprep.subr.bf16.mxu0 0
    %625 = vmatpush1.bf16.msra.mxu0 %v610
    %626 = vmatprep.subr.bf16.mxu0 0
    %627 = vmatpush1.bf16.msra.mxu0 %v622
    %628 = vmatprep.subr.bf16.mxu0 0
    %629 = vmatpush1.bf16.msra.mxu0 0
    %630 = vmatprep.subr.bf16.mxu0 0
    %631 = vmatpush1.bf16.msra.mxu0 0
    %632 = vmatprep.subr.bf16.mxu0 0
    %633 = vmatpush1.bf16.msra.mxu0 0
    %634 = vmatprep.subr.bf16.mxu0 0
    %635 = vmatpush1.bf16.msra.mxu0 0
    %636 = vmatprep.subr.bf16.mxu0 0
    %637 = vmatpush1.bf16.msra.mxu0 0
    %638 = vmatprep.subr.bf16.mxu0 0
    %639 = vmatpush1.bf16.msra.mxu0 0
    %640 = vmatprep.subr.bf16.mxu0 0
    %641 = vmatpush1.bf16.msra.mxu0 0
    %642 = vmatprep.subr.bf16.mxu0 0
    %643 = vmatpush1.bf16.msra.mxu0 0
    %644 = vmatprep.subr.bf16.mxu0 0
    %645 = vmatpush1.bf16.msra.mxu0 0
    %646 = vmatprep.subr.bf16.mxu0 0
    %647 = vmatpush1.bf16.msra.mxu0 0
    %648 = vmatprep.subr.bf16.mxu0 0
    %649 = vmatpush1.bf16.msra.mxu0 0
    %650 = vmatprep.subr.bf16.mxu0 0
    %651 = vmatpush1.bf16.msra.mxu0 0
    %652 = vmatprep.subr.bf16.mxu0 0
    %653 = vmatpush1.bf16.msra.mxu0 0
    %654 = vmatprep.subr.bf16.mxu0 0
    %655 = vmatpush1.bf16.msra.mxu0 0
    %656 = vmatprep.mubr.bf16.mxu0 0
    %657 = vmatmul.mubr.bf16.gmra.mrb[0].mxu0 %v615
    %v658 = vpop.f32.mrb[0].mxu0
    %v659 = vadd.f32 0.0, %v658
    %v660 = vpop.f32.mrb[0].mxu0
    %v661 = vpop.f32.mrb[0].mxu0
    %v662 = vadd.f32 0.0, %v661
    %v663 = vpop.f32.mrb[0].mxu0
    %664 = vmatprep.mubr.bf16.mxu0 0
    %665 = vmatmul.mubr.bf16.gmra.mrb[0].mxu0 %v618
    %v666 = vpop.f32.mrb[0].mxu0
    %v667 = vadd.f32 0.0, %v666
    %v668 = vpop.f32.mrb[0].mxu0
    %v669 = vpop.f32.mrb[0].mxu0
    %v670 = vpop.f32.mrb[0].mxu0
    %671 = vdwg.mxu0
    %672 = vrot.lane.b32.xlu0 %v385, 64
    %v673 = vpop.permute.xlu0 %672
    %674 = vrot.lane.b32.xlu0 %v386, 64
    %v675 = vpop.permute.xlu0 %674
    %v678 = vsel %vm538, %v607, 0
    %v681 = vsel %vm538, %v608, 0
    %v684 = vsel %vm620, %v675, 0
    %686 = vmatprep.subr.bf16.mxu0 0
    %687 = vmatpush1.bf16.msra.mxu0 %v673
    %688 = vmatprep.subr.bf16.mxu0 0
    %689 = vmatpush1.bf16.msra.mxu0 %v684
    %690 = vmatprep.subr.bf16.mxu0 0
    %691 = vmatpush1.bf16.msra.mxu0 0
    %692 = vmatprep.subr.bf16.mxu0 0
    %693 = vmatpush1.bf16.msra.mxu0 0
    %694 = vmatprep.subr.bf16.mxu0 0
    %695 = vmatpush1.bf16.msra.mxu0 0
    %696 = vmatprep.subr.bf16.mxu0 0
    %697 = vmatpush1.bf16.msra.mxu0 0
    %698 = vmatprep.subr.bf16.mxu0 0
    %699 = vmatpush1.bf16.msra.mxu0 0
    %700 = vmatprep.subr.bf16.mxu0 0
    %701 = vmatpush1.bf16.msra.mxu0 0
    %702 = vmatprep.subr.bf16.mxu0 0
    %703 = vmatpush1.bf16.msra.mxu0 0
    %704 = vmatprep.subr.bf16.mxu0 0
    %705 = vmatpush1.bf16.msra.mxu0 0
    %706 = vmatprep.subr.bf16.mxu0 0
    %707 = vmatpush1.bf16.msra.mxu0 0
    %708 = vmatprep.subr.bf16.mxu0 0
    %709 = vmatpush1.bf16.msra.mxu0 0
    %710 = vmatprep.subr.bf16.mxu0 0
    %711 = vmatpush1.bf16.msra.mxu0 0
    %712 = vmatprep.subr.bf16.mxu0 0
    %713 = vmatpush1.bf16.msra.mxu0 0
    %714 = vmatprep.subr.bf16.mxu0 0
    %715 = vmatpush1.bf16.msra.mxu0 0
    %716 = vmatprep.subr.bf16.mxu0 0
    %717 = vmatpush1.bf16.msra.mxu0 0
    %718 = vmatprep.mubr.bf16.mxu0 0
    %719 = vmatmul.mubr.bf16.gmra.mrb[0].mxu0 %v678
    %v720 = vpop.f32.mrb[0].mxu0
    %v721 = vadd.f32 0.0, %v720
    %v722 = vpop.f32.mrb[0].mxu0
    %v723 = vpop.f32.mrb[0].mxu0
    %v724 = vadd.f32 0.0, %v723
    %v725 = vpop.f32.mrb[0].mxu0
    %726 = vmatprep.mubr.bf16.mxu0 0
    %727 = vmatmul.mubr.bf16.gmra.mrb[0].mxu0 %v681
    %v728 = vpop.f32.mrb[0].mxu0
    %v729 = vadd.f32 0.0, %v728
    %v730 = vpop.f32.mrb[0].mxu0
    %v731 = vpop.f32.mrb[0].mxu0
    %v732 = vpop.f32.mrb[0].mxu0
    %733 = vdwg.mxu0
    %734 = vrot.lane.b32.xlu0 %v383, 120
    %v735 = vpop.permute.xlu0 %734
    %736 = vrot.lane.b32.xlu0 %v384, 120
    %v737 = vpop.permute.xlu0 %736
    %738 = vrot.lane.b32.xlu0 %v383, 88
    %v739 = vpop.permute.xlu0 %738
    %740 = vrot.lane.b32.xlu0 %v384, 88
    %v741 = vpop.permute.xlu0 %740
    %v743 = vsel %vm393, %v735, 0
    %v746 = vsel %vm393, %v737, 0
    %v749 = vsel %vm393, %v739, 0
    %v752 = vsel %vm393, %v741, 0
    %754 = vmatprep.subr.bf16.mxu0 0
    %755 = vmatpush1.bf16.xpose.msra.mxu0 %v749
    %756 = vmatprep.subr.bf16.mxu0 0
    %757 = vmatpush1.bf16.xpose.msra.mxu0 %v752
    %758 = vmatprep.subr.bf16.mxu0 0
    %759 = vmatpush1.bf16.xpose.msra.mxu0 0
    %760 = vmatprep.subr.bf16.mxu0 0
    %761 = vmatpush1.bf16.xpose.msra.mxu0 0
    %762 = vmatprep.subr.bf16.mxu0 0
    %763 = vmatpush1.bf16.xpose.msra.mxu0 0
    %764 = vmatprep.subr.bf16.mxu0 0
    %765 = vmatpush1.bf16.xpose.msra.mxu0 0
    %766 = vmatprep.subr.bf16.mxu0 0
    %767 = vmatpush1.bf16.xpose.msra.mxu0 0
    %768 = vmatprep.subr.bf16.mxu0 0
    %769 = vmatpush1.bf16.xpose.msra.mxu0 0
    %770 = vmatprep.subr.bf16.mxu0 0
    %771 = vmatpush1.bf16.xpose.msra.mxu0 0
    %772 = vmatprep.subr.bf16.mxu0 0
    %773 = vmatpush1.bf16.xpose.msra.mxu0 0
    %774 = vmatprep.subr.bf16.mxu0 0
    %775 = vmatpush1.bf16.xpose.msra.mxu0 0
    %776 = vmatprep.subr.bf16.mxu0 0
    %777 = vmatpush1.bf16.xpose.msra.mxu0 0
    %778 = vmatprep.subr.bf16.mxu0 0
    %779 = vmatpush1.bf16.xpose.msra.mxu0 0
    %780 = vmatprep.subr.bf16.mxu0 0
    %781 = vmatpush1.bf16.xpose.msra.mxu0 0
    %782 = vmatprep.subr.bf16.mxu0 0
    %783 = vmatpush1.bf16.xpose.msra.mxu0 0
    %784 = vmatprep.subr.bf16.mxu0 0
    %785 = vmatpush1.bf16.xpose.msra.mxu0 0
    %786 = vmatprep.mubr.bf16.mxu0 0
    %787 = vmatmul.mubr.bf16.gmra.mrb[0].mxu0 %v743
    %v788 = vpop.f32.mrb[0].mxu0
    %v789 = vadd.f32 0.0, %v788
    %v790 = vpop.f32.mrb[0].mxu0
    %v791 = vpop.f32.mrb[0].mxu0
    %v792 = vadd.f32 0.0, %v791
    %v793 = vpop.f32.mrb[0].mxu0
    %794 = vmatprep.mubr.bf16.mxu0 0
    %795 = vmatmul.mubr.bf16.gmra.mrb[0].mxu0 %v746
    %v796 = vpop.f32.mrb[0].mxu0
    %v797 = vadd.f32 0.0, %v796
    %v798 = vpop.f32.mrb[0].mxu0
    %v799 = vpop.f32.mrb[0].mxu0
    %v800 = vpop.f32.mrb[0].mxu0
    %801 = vdwg.mxu0
    %802 = vrot.lane.b32.xlu0 %v385, 120
    %v803 = vpop.permute.xlu0 %802
    %804 = vrot.lane.b32.xlu0 %v386, 120
    %v805 = vpop.permute.xlu0 %804
    %806 = vrot.lane.b32.xlu0 %v385, 88
    %v807 = vpop.permute.xlu0 %806
    %808 = vrot.lane.b32.xlu0 %v386, 88
    %v809 = vpop.permute.xlu0 %808
    %v811 = vsel %vm393, %v803, 0
    %v814 = vsel %vm393, %v805, 0
    %v817 = vsel %vm393, %v807, 0
    %v820 = vsel %vm393, %v809, 0
    %822 = vmatprep.subr.bf16.mxu0 0
    %823 = vmatpush1.bf16.xpose.msra.mxu0 %v817
    %824 = vmatprep.subr.bf16.mxu0 0
    %825 = vmatpush1.bf16.xpose.msra.mxu0 %v820
    %826 = vmatprep.subr.bf16.mxu0 0
    %827 = vmatpush1.bf16.xpose.msra.mxu0 0
    %828 = vmatprep.subr.bf16.mxu0 0
    %829 = vmatpush1.bf16.xpose.msra.mxu0 0
    %830 = vmatprep.subr.bf16.mxu0 0
    %831 = vmatpush1.bf16.xpose.msra.mxu0 0
    %832 = vmatprep.subr.bf16.mxu0 0
    %833 = vmatpush1.bf16.xpose.msra.mxu0 0
    %834 = vmatprep.subr.bf16.mxu0 0
    %835 = vmatpush1.bf16.xpose.msra.mxu0 0
    %836 = vmatprep.subr.bf16.mxu0 0
    %837 = vmatpush1.bf16.xpose.msra.mxu0 0
    %838 = vmatprep.subr.bf16.mxu0 0
    %839 = vmatpush1.bf16.xpose.msra.mxu0 0
    %840 = vmatprep.subr.bf16.mxu0 0
    %841 = vmatpush1.bf16.xpose.msra.mxu0 0
    %842 = vmatprep.subr.bf16.mxu0 0
    %843 = vmatpush1.bf16.xpose.msra.mxu0 0
    %844 = vmatprep.subr.bf16.mxu0 0
    %845 = vmatpush1.bf16.xpose.msra.mxu0 0
    %846 = vmatprep.subr.bf16.mxu0 0
    %847 = vmatpush1.bf16.xpose.msra.mxu0 0
    %848 = vmatprep.subr.bf16.mxu0 0
    %849 = vmatpush1.bf16.xpose.msra.mxu0 0
    %850 = vmatprep.subr.bf16.mxu0 0
    %851 = vmatpush1.bf16.xpose.msra.mxu0 0
    %852 = vmatprep.subr.bf16.mxu0 0
    %853 = vmatpush1.bf16.xpose.msra.mxu0 0
    %854 = vmatprep.mubr.bf16.mxu0 0
    %855 = vmatmul.mubr.bf16.gmra.mrb[0].mxu0 %v811
    %v856 = vpop.f32.mrb[0].mxu0
    %v857 = vadd.f32 0.0, %v856
    %v858 = vpop.f32.mrb[0].mxu0
    %v859 = vpop.f32.mrb[0].mxu0
    %v860 = vadd.f32 0.0, %v859
    %v861 = vpop.f32.mrb[0].mxu0
    %862 = vmatprep.mubr.bf16.mxu0 0
    %863 = vmatmul.mubr.bf16.gmra.mrb[0].mxu0 %v814
    %v864 = vpop.f32.mrb[0].mxu0
    %v865 = vadd.f32 0.0, %v864
    %v866 = vpop.f32.mrb[0].mxu0
    %v867 = vpop.f32.mrb[0].mxu0
    %v868 = vpop.f32.mrb[0].mxu0
    %869 = vdwg.mxu0
    %v870 = vmul.f32 %v789, 0.35355338
    %v871 = vmul.f32 %v792, 0.35355338
    %v872 = vmul.f32 %v797, 0.35355338
    %v873 = vmul.f32 %v857, 0.35355338
    %v874 = vmul.f32 %v860, 0.35355338
    %v875 = vmul.f32 %v865, 0.35355338
    %v876 = vadd.f32 %v870, %v530
    %v877 = vadd.f32 %v871, %v530
    %v878 = vadd.f32 %v872, %v530
    %v879 = vadd.f32 %v873, %v530
    %v880 = vadd.f32 %v874, %v530
    %v881 = vadd.f32 %v875, %v530
    %v882 = vsel %vm538, %v876, -inf
    %883 = vmax.xlane.f32.xlu0 %v882
    %v884 = vpop.xlane.xlu0 %883
    %v885 = vsel %vm538, %v877, -inf
    %886 = vmax.xlane.f32.xlu0 %v885
    %v887 = vpop.xlane.xlu0 %886
    %v888 = vsel %vm538, %v878, -inf
    %889 = vmax.xlane.f32.xlu0 %v888
    %v890 = vpop.xlane.xlu0 %889
    %v891 = vsel %vm538, %v879, -inf
    %892 = vmax.xlane.f32.xlu0 %v891
    %v893 = vpop.xlane.xlu0 %892
    %v894 = vsel %vm538, %v880, -inf
    %895 = vmax.xlane.f32.xlu0 %v894
    %v896 = vpop.xlane.xlu0 %895
    %v897 = vsel %vm538, %v881, -inf
    %898 = vmax.xlane.f32.xlu0 %v897
    %v899 = vpop.xlane.xlu0 %898
    %v900 = vsub.f32 %v876, %v884
    %v901 = vsub.f32 %v877, %v887
    %v902 = vsub.f32 %v878, %v890
    %v903 = vsub.f32 %v879, %v893
    %v904 = vsub.f32 %v880, %v896
    %v905 = vsub.f32 %v881, %v899
    %v906 = vmul.f32 %v900, 1.442695
    %v907 = vpow.pop %v906
    %v908 = vmul.f32 %v901, 1.442695
    %v909 = vpow.pop %v908
    %v910 = vmul.f32 %v902, 1.442695
    %v911 = vpow.pop %v910
    %v912 = vmul.f32 %v903, 1.442695
    %v913 = vpow.pop %v912
    %v914 = vmul.f32 %v904, 1.442695
    %v915 = vpow.pop %v914
    %v916 = vmul.f32 %v905, 1.442695
    %v917 = vpow.pop %v916
    %v918 = vsel %vm538, %v907, 0.0
    %919 = vadd.xlane.f32.xlu0 %v918
    %v920 = vpop.xlane.xlu0 %919
    %v921 = vsel %vm538, %v909, 0.0
    %922 = vadd.xlane.f32.xlu0 %v921
    %v923 = vpop.xlane.xlu0 %922
    %v924 = vsel %vm538, %v911, 0.0
    %925 = vadd.xlane.f32.xlu0 %v924
    %v926 = vpop.xlane.xlu0 %925
    %v927 = vsel %vm538, %v913, 0.0
    %928 = vadd.xlane.f32.xlu0 %v927
    %v929 = vpop.xlane.xlu0 %928
    %v930 = vsel %vm538, %v915, 0.0
    %931 = vadd.xlane.f32.xlu0 %v930
    %v932 = vpop.xlane.xlu0 %931
    %v933 = vsel %vm538, %v917, 0.0
    %934 = vadd.xlane.f32.xlu0 %v933
    %v935 = vpop.xlane.xlu0 %934
    %v936 = vrcp.pop %v920
    %v937 = vrcp.pop %v923
    %v938 = vrcp.pop %v926
    %v939 = vrcp.pop %v929
    %v940 = vrcp.pop %v932
    %v941 = vrcp.pop %v935
    %v942 = vmul.f32 %v907, %v936
    %v943 = vmul.f32 %v909, %v937
    %v944 = vmul.f32 %v911, %v938
    %v945 = vmul.f32 %v913, %v939
    %v946 = vmul.f32 %v915, %v940
    %v947 = vmul.f32 %v917, %v941
    %v948 = vpack.c.bf16 %v943, %v942
    %v949 = vpack.c.bf16 %v944, %v944
    %v950 = vpack.c.bf16 %v946, %v945
    %v951 = vpack.c.bf16 %v947, %v947
    %952 = vrot.lane.b32.xlu0 %v383, 56
    %v953 = vpop.permute.xlu0 %952
    %954 = vrot.lane.b32.xlu0 %v384, 56
    %v955 = vpop.permute.xlu0 %954
    %v958 = vsel %vm538, %v948, 0
    %v961 = vsel %vm538, %v949, 0
    %v964 = vsel %vm620, %v955, 0
    %966 = vmatprep.subr.bf16.mxu0 0
    %967 = vmatpush1.bf16.msra.mxu0 %v953
    %968 = vmatprep.subr.bf16.mxu0 0
    %969 = vmatpush1.bf16.msra.mxu0 %v964
    %970 = vmatprep.subr.bf16.mxu0 0
    %971 = vmatpush1.bf16.msra.mxu0 0
    %972 = vmatprep.subr.bf16.mxu0 0
    %973 = vmatpush1.bf16.msra.mxu0 0
    %974 = vmatprep.subr.bf16.mxu0 0
    %975 = vmatpush1.bf16.msra.mxu0 0
    %976 = vmatprep.subr.bf16.mxu0 0
    %977 = vmatpush1.bf16.msra.mxu0 0
    %978 = vmatprep.subr.bf16.mxu0 0
    %979 = vmatpush1.bf16.msra.mxu0 0
    %980 = vmatprep.subr.bf16.mxu0 0
    %981 = vmatpush1.bf16.msra.mxu0 0
    %982 = vmatprep.subr.bf16.mxu0 0
    %983 = vmatpush1.bf16.msra.mxu0 0
    %984 = vmatprep.subr.bf16.mxu0 0
    %985 = vmatpush1.bf16.msra.mxu0 0
    %986 = vmatprep.subr.bf16.mxu0 0
    %987 = vmatpush1.bf16.msra.mxu0 0
    %988 = vmatprep.subr.bf16.mxu0 0
    %989 = vmatpush1.bf16.msra.mxu0 0
    %990 = vmatprep.subr.bf16.mxu0 0
    %991 = vmatpush1.bf16.msra.mxu0 0
    %992 = vmatprep.subr.bf16.mxu0 0
    %993 = vmatpush1.bf16.msra.mxu0 0
    %994 = vmatprep.subr.bf16.mxu0 0
    %995 = vmatpush1.bf16.msra.mxu0 0
    %996 = vmatprep.subr.bf16.mxu0 0
    %997 = vmatpush1.bf16.msra.mxu0 0
    %998 = vmatprep.mubr.bf16.mxu0 0
    %999 = vmatmul.mubr.bf16.gmra.mrb[0].mxu0 %v958
    %v1000 = vpop.f32.mrb[0].mxu0
    %v1001 = vadd.f32 0.0, %v1000
    %v1002 = vpop.f32.mrb[0].mxu0
    %v1003 = vpop.f32.mrb[0].mxu0
    %v1004 = vadd.f32 0.0, %v1003
    %v1005 = vpop.f32.mrb[0].mxu0
    %1006 = vmatprep.mubr.bf16.mxu0 0
    %1007 = vmatmul.mubr.bf16.gmra.mrb[0].mxu0 %v961
    %v1008 = vpop.f32.mrb[0].mxu0
    %v1009 = vadd.f32 0.0, %v1008
    %v1010 = vpop.f32.mrb[0].mxu0
    %v1011 = vpop.f32.mrb[0].mxu0
    %v1012 = vpop.f32.mrb[0].mxu0
    %1013 = vdwg.mxu0
    %1014 = vrot.lane.b32.xlu0 %v385, 56
    %v1015 = vpop.permute.xlu0 %1014
    %1016 = vrot.lane.b32.xlu0 %v386, 56
    %v1017 = vpop.permute.xlu0 %1016
    %v1020 = vsel %vm538, %v950, 0
    %v1023 = vsel %vm538, %v951, 0
    %v1026 = vsel %vm620, %v1017, 0
    %1028 = vmatprep.subr.bf16.mxu0 0
    %1029 = vmatpush1.bf16.msra.mxu0 %v1015
    %1030 = vmatprep.subr.bf16.mxu0 0
    %1031 = vmatpush1.bf16.msra.mxu0 %v1026
    %1032 = vmatprep.subr.bf16.mxu0 0
    %1033 = vmatpush1.bf16.msra.mxu0 0
    %1034 = vmatprep.subr.bf16.mxu0 0
    %1035 = vmatpush1.bf16.msra.mxu0 0
    %1036 = vmatprep.subr.bf16.mxu0 0
    %1037 = vmatpush1.bf16.msra.mxu0 0
    %1038 = vmatprep.subr.bf16.mxu0 0
    %1039 = vmatpush1.bf16.msra.mxu0 0
    %1040 = vmatprep.subr.bf16.mxu0 0
    %1041 = vmatpush1.bf16.msra.mxu0 0
    %1042 = vmatprep.subr.bf16.mxu0 0
    %1043 = vmatpush1.bf16.msra.mxu0 0
    %1044 = vmatprep.subr.bf16.mxu0 0
    %1045 = vmatpush1.bf16.msra.mxu0 0
    %1046 = vmatprep.subr.bf16.mxu0 0
    %1047 = vmatpush1.bf16.msra.mxu0 0
    %1048 = vmatprep.subr.bf16.mxu0 0
    %1049 = vmatpush1.bf16.msra.mxu0 0
    %1050 = vmatprep.subr.bf16.mxu0 0
    %1051 = vmatpush1.bf16.msra.mxu0 0
    %1052 = vmatprep.subr.bf16.mxu0 0
    %1053 = vmatpush1.bf16.msra.mxu0 0
    %1054 = vmatprep.subr.bf16.mxu0 0
    %1055 = vmatpush1.bf16.msra.mxu0 0
    %1056 = vmatprep.subr.bf16.mxu0 0
    %1057 = vmatpush1.bf16.msra.mxu0 0
    %1058 = vmatprep.subr.bf16.mxu0 0
    %1059 = vmatpush1.bf16.msra.mxu0 0
    %1060 = vmatprep.mubr.bf16.mxu0 0
    %1061 = vmatmul.mubr.bf16.gmra.mrb[0].mxu0 %v1020
    %v1062 = vpop.f32.mrb[0].mxu0
    %v1063 = vadd.f32 0.0, %v1062
    %v1064 = vpop.f32.mrb[0].mxu0
    %v1065 = vpop.f32.mrb[0].mxu0
    %v1066 = vadd.f32 0.0, %v1065
    %v1067 = vpop.f32.mrb[0].mxu0
    %1068 = vmatprep.mubr.bf16.mxu0 0
    %1069 = vmatmul.mubr.bf16.gmra.mrb[0].mxu0 %v1023
    %v1070 = vpop.f32.mrb[0].mxu0
    %v1071 = vadd.f32 0.0, %v1070
    %v1072 = vpop.f32.mrb[0].mxu0
    %v1073 = vpop.f32.mrb[0].mxu0
    %v1074 = vpop.f32.mrb[0].mxu0
    %1075 = vdwg.mxu0
    %1076 = vrot.lane.b32.xlu0 %v383, 112
    %v1077 = vpop.permute.xlu0 %1076
    %1078 = vrot.lane.b32.xlu0 %v384, 112
    %v1079 = vpop.permute.xlu0 %1078
    %1080 = vrot.lane.b32.xlu0 %v383, 80
    %v1081 = vpop.permute.xlu0 %1080
    %1082 = vrot.lane.b32.xlu0 %v384, 80
    %v1083 = vpop.permute.xlu0 %1082
    %v1085 = vsel %vm393, %v1077, 0
    %v1088 = vsel %vm393, %v1079, 0
    %v1091 = vsel %vm393, %v1081, 0
    %v1094 = vsel %vm393, %v1083, 0
    %1096 = vmatprep.subr.bf16.mxu0 0
    %1097 = vmatpush1.bf16.xpose.msra.mxu0 %v1091
    %1098 = vmatprep.subr.bf16.mxu0 0
    %1099 = vmatpush1.bf16.xpose.msra.mxu0 %v1094
    %1100 = vmatprep.subr.bf16.mxu0 0
    %1101 = vmatpush1.bf16.xpose.msra.mxu0 0
    %1102 = vmatprep.subr.bf16.mxu0 0
    %1103 = vmatpush1.bf16.xpose.msra.mxu0 0
    %1104 = vmatprep.subr.bf16.mxu0 0
    %1105 = vmatpush1.bf16.xpose.msra.mxu0 0
    %1106 = vmatprep.subr.bf16.mxu0 0
    %1107 = vmatpush1.bf16.xpose.msra.mxu0 0
    %1108 = vmatprep.subr.bf16.mxu0 0
    %1109 = vmatpush1.bf16.xpose.msra.mxu0 0
    %1110 = vmatprep.subr.bf16.mxu0 0
    %1111 = vmatpush1.bf16.xpose.msra.mxu0 0
    %1112 = vmatprep.subr.bf16.mxu0 0
    %1113 = vmatpush1.bf16.xpose.msra.mxu0 0
    %1114 = vmatprep.subr.bf16.mxu0 0
    %1115 = vmatpush1.bf16.xpose.msra.mxu0 0
    %1116 = vmatprep.subr.bf16.mxu0 0
    %1117 = vmatpush1.bf16.xpose.msra.mxu0 0
    %1118 = vmatprep.subr.bf16.mxu0 0
    %1119 = vmatpush1.bf16.xpose.msra.mxu0 0
    %1120 = vmatprep.subr.bf16.mxu0 0
    %1121 = vmatpush1.bf16.xpose.msra.mxu0 0
    %1122 = vmatprep.subr.bf16.mxu0 0
    %1123 = vmatpush1.bf16.xpose.msra.mxu0 0
    %1124 = vmatprep.subr.bf16.mxu0 0
    %1125 = vmatpush1.bf16.xpose.msra.mxu0 0
    %1126 = vmatprep.subr.bf16.mxu0 0
    %1127 = vmatpush1.bf16.xpose.msra.mxu0 0
    %1128 = vmatprep.mubr.bf16.mxu0 0
    %1129 = vmatmul.mubr.bf16.gmra.mrb[0].mxu0 %v1085
    %v1130 = vpop.f32.mrb[0].mxu0
    %v1131 = vadd.f32 0.0, %v1130
    %v1132 = vpop.f32.mrb[0].mxu0
    %v1133 = vpop.f32.mrb[0].mxu0
    %v1134 = vadd.f32 0.0, %v1133
    %v1135 = vpop.f32.mrb[0].mxu0
    %1136 = vmatprep.mubr.bf16.mxu0 0
    %1137 = vmatmul.mubr.bf16.gmra.mrb[0].mxu0 %v1088
    %v1138 = vpop.f32.mrb[0].mxu0
    %v1139 = vadd.f32 0.0, %v1138
    %v1140 = vpop.f32.mrb[0].mxu0
    %v1141 = vpop.f32.mrb[0].mxu0
    %v1142 = vpop.f32.mrb[0].mxu0
    %1143 = vdwg.mxu0
    %1144 = vrot.lane.b32.xlu0 %v385, 112
    %v1145 = vpop.permute.xlu0 %1144
    %1146 = vrot.lane.b32.xlu0 %v386, 112
    %v1147 = vpop.permute.xlu0 %1146
    %1148 = vrot.lane.b32.xlu0 %v385, 80
    %v1149 = vpop.permute.xlu0 %1148
    %1150 = vrot.lane.b32.xlu0 %v386, 80
    %v1151 = vpop.permute.xlu0 %1150
    %v1153 = vsel %vm393, %v1145, 0
    %v1156 = vsel %vm393, %v1147, 0
    %v1159 = vsel %vm393, %v1149, 0
    %v1162 = vsel %vm393, %v1151, 0
    %1164 = vmatprep.subr.bf16.mxu0 0
    %1165 = vmatpush1.bf16.xpose.msra.mxu0 %v1159
    %1166 = vmatprep.subr.bf16.mxu0 0
    %1167 = vmatpush1.bf16.xpose.msra.mxu0 %v1162
    %1168 = vmatprep.subr.bf16.mxu0 0
    %1169 = vmatpush1.bf16.xpose.msra.mxu0 0
    %1170 = vmatprep.subr.bf16.mxu0 0
    %1171 = vmatpush1.bf16.xpose.msra.mxu0 0
    %1172 = vmatprep.subr.bf16.mxu0 0
    %1173 = vmatpush1.bf16.xpose.msra.mxu0 0
    %1174 = vmatprep.subr.bf16.mxu0 0
    %1175 = vmatpush1.bf16.xpose.msra.mxu0 0
    %1176 = vmatprep.subr.bf16.mxu0 0
    %1177 = vmatpush1.bf16.xpose.msra.mxu0 0
    %1178 = vmatprep.subr.bf16.mxu0 0
    %1179 = vmatpush1.bf16.xpose.msra.mxu0 0
    %1180 = vmatprep.subr.bf16.mxu0 0
    %1181 = vmatpush1.bf16.xpose.msra.mxu0 0
    %1182 = vmatprep.subr.bf16.mxu0 0
    %1183 = vmatpush1.bf16.xpose.msra.mxu0 0
    %1184 = vmatprep.subr.bf16.mxu0 0
    %1185 = vmatpush1.bf16.xpose.msra.mxu0 0
    %1186 = vmatprep.subr.bf16.mxu0 0
    %1187 = vmatpush1.bf16.xpose.msra.mxu0 0
    %1188 = vmatprep.subr.bf16.mxu0 0
    %1189 = vmatpush1.bf16.xpose.msra.mxu0 0
    %1190 = vmatprep.subr.bf16.mxu0 0
    %1191 = vmatpush1.bf16.xpose.msra.mxu0 0
    %1192 = vmatprep.subr.bf16.mxu0 0
    %1193 = vmatpush1.bf16.xpose.msra.mxu0 0
    %1194 = vmatprep.subr.bf16.mxu0 0
    %1195 = vmatpush1.bf16.xpose.msra.mxu0 0
    %1196 = vmatprep.mubr.bf16.mxu0 0
    %1197 = vmatmul.mubr.bf16.gmra.mrb[0].mxu0 %v1153
    %v1198 = vpop.f32.mrb[0].mxu0
    %v1199 = vadd.f32 0.0, %v1198
    %v1200 = vpop.f32.mrb[0].mxu0
    %v1201 = vpop.f32.mrb[0].mxu0
    %v1202 = vadd.f32 0.0, %v1201
    %v1203 = vpop.f32.mrb[0].mxu0
    %1204 = vmatprep.mubr.bf16.mxu0 0
    %1205 = vmatmul.mubr.bf16.gmra.mrb[0].mxu0 %v1156
    %v1206 = vpop.f32.mrb[0].mxu0
    %v1207 = vadd.f32 0.0, %v1206
    %v1208 = vpop.f32.mrb[0].mxu0
    %v1209 = vpop.f32.mrb[0].mxu0
    %v1210 = vpop.f32.mrb[0].mxu0
    %1211 = vdwg.mxu0
    %v1212 = vmul.f32 %v1131, 0.35355338
    %v1213 = vmul.f32 %v1134, 0.35355338
    %v1214 = vmul.f32 %v1139, 0.35355338
    %v1215 = vmul.f32 %v1199, 0.35355338
    %v1216 = vmul.f32 %v1202, 0.35355338
    %v1217 = vmul.f32 %v1207, 0.35355338
    %v1218 = vadd.f32 %v1212, %v530
    %v1219 = vadd.f32 %v1213, %v530
    %v1220 = vadd.f32 %v1214, %v530
    %v1221 = vadd.f32 %v1215, %v530
    %v1222 = vadd.f32 %v1216, %v530
    %v1223 = vadd.f32 %v1217, %v530
    %v1224 = vsel %vm538, %v1218, -inf
    %1225 = vmax.xlane.f32.xlu0 %v1224
    %v1226 = vpop.xlane.xlu0 %1225
    %v1227 = vsel %vm538, %v1219, -inf
    %1228 = vmax.xlane.f32.xlu0 %v1227
    %v1229 = vpop.xlane.xlu0 %1228
    %v1230 = vsel %vm538, %v1220, -inf
    %1231 = vmax.xlane.f32.xlu0 %v1230
    %v1232 = vpop.xlane.xlu0 %1231
    %v1233 = vsel %vm538, %v1221, -inf
    %1234 = vmax.xlane.f32.xlu0 %v1233
    %v1235 = vpop.xlane.xlu0 %1234
    %v1236 = vsel %vm538, %v1222, -inf
    %1237 = vmax.xlane.f32.xlu0 %v1236
    %v1238 = vpop.xlane.xlu0 %1237
    %v1239 = vsel %vm538, %v1223, -inf
    %1240 = vmax.xlane.f32.xlu0 %v1239
    %v1241 = vpop.xlane.xlu0 %1240
    %v1242 = vsub.f32 %v1218, %v1226
    %v1243 = vsub.f32 %v1219, %v1229
    %v1244 = vsub.f32 %v1220, %v1232
    %v1245 = vsub.f32 %v1221, %v1235
    %v1246 = vsub.f32 %v1222, %v1238
    %v1247 = vsub.f32 %v1223, %v1241
    %v1248 = vmul.f32 %v1242, 1.442695
    %v1249 = vpow.pop %v1248
    %v1250 = vmul.f32 %v1243, 1.442695
    %v1251 = vpow.pop %v1250
    %v1252 = vmul.f32 %v1244, 1.442695
    %v1253 = vpow.pop %v1252
    %v1254 = vmul.f32 %v1245, 1.442695
    %v1255 = vpow.pop %v1254
    %v1256 = vmul.f32 %v1246, 1.442695
    %v1257 = vpow.pop %v1256
    %v1258 = vmul.f32 %v1247, 1.442695
    %v1259 = vpow.pop %v1258
    %v1260 = vsel %vm538, %v1249, 0.0
    %1261 = vadd.xlane.f32.xlu0 %v1260
    %v1262 = vpop.xlane.xlu0 %1261
    %v1263 = vsel %vm538, %v1251, 0.0
    %1264 = vadd.xlane.f32.xlu0 %v1263
    %v1265 = vpop.xlane.xlu0 %1264
    %v1266 = vsel %vm538, %v1253, 0.0
    %1267 = vadd.xlane.f32.xlu0 %v1266
    %v1268 = vpop.xlane.xlu0 %1267
    %v1269 = vsel %vm538, %v1255, 0.0
    %1270 = vadd.xlane.f32.xlu0 %v1269
    %v1271 = vpop.xlane.xlu0 %1270
    %v1272 = vsel %vm538, %v1257, 0.0
    %1273 = vadd.xlane.f32.xlu0 %v1272
    %v1274 = vpop.xlane.xlu0 %1273
    %v1275 = vsel %vm538, %v1259, 0.0
    %1276 = vadd.xlane.f32.xlu0 %v1275
    %v1277 = vpop.xlane.xlu0 %1276
    %v1278 = vrcp.pop %v1262
    %v1279 = vrcp.pop %v1265
    %v1280 = vrcp.pop %v1268
    %v1281 = vrcp.pop %v1271
    %v1282 = vrcp.pop %v1274
    %v1283 = vrcp.pop %v1277
    %v1284 = vmul.f32 %v1249, %v1278
    %v1285 = vmul.f32 %v1251, %v1279
    %v1286 = vmul.f32 %v1253, %v1280
    %v1287 = vmul.f32 %v1255, %v1281
    %v1288 = vmul.f32 %v1257, %v1282
    %v1289 = vmul.f32 %v1259, %v1283
    %v1290 = vpack.c.bf16 %v1285, %v1284
    %v1291 = vpack.c.bf16 %v1286, %v1286
    %v1292 = vpack.c.bf16 %v1288, %v1287
    %v1293 = vpack.c.bf16 %v1289, %v1289
    %1294 = vrot.lane.b32.xlu0 %v383, 48
    %v1295 = vpop.permute.xlu0 %1294
    %1296 = vrot.lane.b32.xlu0 %v384, 48
    %v1297 = vpop.permute.xlu0 %1296
    %v1300 = vsel %vm538, %v1290, 0
    %v1303 = vsel %vm538, %v1291, 0
    %v1306 = vsel %vm620, %v1297, 0
    %1308 = vmatprep.subr.bf16.mxu0 0
    %1309 = vmatpush1.bf16.msra.mxu0 %v1295
    %1310 = vmatprep.subr.bf16.mxu0 0
    %1311 = vmatpush1.bf16.msra.mxu0 %v1306
    %1312 = vmatprep.subr.bf16.mxu0 0
    %1313 = vmatpush1.bf16.msra.mxu0 0
    %1314 = vmatprep.subr.bf16.mxu0 0
    %1315 = vmatpush1.bf16.msra.mxu0 0
    %1316 = vmatprep.subr.bf16.mxu0 0
    %1317 = vmatpush1.bf16.msra.mxu0 0
    %1318 = vmatprep.subr.bf16.mxu0 0
    %1319 = vmatpush1.bf16.msra.mxu0 0
    %1320 = vmatprep.subr.bf16.mxu0 0
    %1321 = vmatpush1.bf16.msra.mxu0 0
    %1322 = vmatprep.subr.bf16.mxu0 0
    %1323 = vmatpush1.bf16.msra.mxu0 0
    %1324 = vmatprep.subr.bf16.mxu0 0
    %1325 = vmatpush1.bf16.msra.mxu0 0
    %1326 = vmatprep.subr.bf16.mxu0 0
    %1327 = vmatpush1.bf16.msra.mxu0 0
    %1328 = vmatprep.subr.bf16.mxu0 0
    %1329 = vmatpush1.bf16.msra.mxu0 0
    %1330 = vmatprep.subr.bf16.mxu0 0
    %1331 = vmatpush1.bf16.msra.mxu0 0
    %1332 = vmatprep.subr.bf16.mxu0 0
    %1333 = vmatpush1.bf16.msra.mxu0 0
    %1334 = vmatprep.subr.bf16.mxu0 0
    %1335 = vmatpush1.bf16.msra.mxu0 0
    %1336 = vmatprep.subr.bf16.mxu0 0
    %1337 = vmatpush1.bf16.msra.mxu0 0
    %1338 = vmatprep.subr.bf16.mxu0 0
    %1339 = vmatpush1.bf16.msra.mxu0 0
    %1340 = vmatprep.mubr.bf16.mxu0 0
    %1341 = vmatmul.mubr.bf16.gmra.mrb[0].mxu0 %v1300
    %v1342 = vpop.f32.mrb[0].mxu0
    %v1343 = vadd.f32 0.0, %v1342
    %v1344 = vpop.f32.mrb[0].mxu0
    %v1345 = vpop.f32.mrb[0].mxu0
    %v1346 = vadd.f32 0.0, %v1345
    %v1347 = vpop.f32.mrb[0].mxu0
    %1348 = vmatprep.mubr.bf16.mxu0 0
    %1349 = vmatmul.mubr.bf16.gmra.mrb[0].mxu0 %v1303
    %v1350 = vpop.f32.mrb[0].mxu0
    %v1351 = vadd.f32 0.0, %v1350
    %v1352 = vpop.f32.mrb[0].mxu0
    %v1353 = vpop.f32.mrb[0].mxu0
    %v1354 = vpop.f32.mrb[0].mxu0
    %1355 = vdwg.mxu0
    %1356 = vrot.lane.b32.xlu0 %v385, 48
    %v1357 = vpop.permute.xlu0 %1356
    %1358 = vrot.lane.b32.xlu0 %v386, 48
    %v1359 = vpop.permute.xlu0 %1358
    %v1362 = vsel %vm538, %v1292, 0
    %v1365 = vsel %vm538, %v1293, 0
    %v1368 = vsel %vm620, %v1359, 0
    %1370 = vmatprep.subr.bf16.mxu0 0
    %1371 = vmatpush1.bf16.msra.mxu0 %v1357
    %1372 = vmatprep.subr.bf16.mxu0 0
    %1373 = vmatpush1.bf16.msra.mxu0 %v1368
    %1374 = vmatprep.subr.bf16.mxu0 0
    %1375 = vmatpush1.bf16.msra.mxu0 0
    %1376 = vmatprep.subr.bf16.mxu0 0
    %1377 = vmatpush1.bf16.msra.mxu0 0
    %1378 = vmatprep.subr.bf16.mxu0 0
    %1379 = vmatpush1.bf16.msra.mxu0 0
    %1380 = vmatprep.subr.bf16.mxu0 0
    %1381 = vmatpush1.bf16.msra.mxu0 0
    %1382 = vmatprep.subr.bf16.mxu0 0
    %1383 = vmatpush1.bf16.msra.mxu0 0
    %1384 = vmatprep.subr.bf16.mxu0 0
    %1385 = vmatpush1.bf16.msra.mxu0 0
    %1386 = vmatprep.subr.bf16.mxu0 0
    %1387 = vmatpush1.bf16.msra.mxu0 0
    %1388 = vmatprep.subr.bf16.mxu0 0
    %1389 = vmatpush1.bf16.msra.mxu0 0
    %1390 = vmatprep.subr.bf16.mxu0 0
    %1391 = vmatpush1.bf16.msra.mxu0 0
    %1392 = vmatprep.subr.bf16.mxu0 0
    %1393 = vmatpush1.bf16.msra.mxu0 0
    %1394 = vmatprep.subr.bf16.mxu0 0
    %1395 = vmatpush1.bf16.msra.mxu0 0
    %1396 = vmatprep.subr.bf16.mxu0 0
    %1397 = vmatpush1.bf16.msra.mxu0 0
    %1398 = vmatprep.subr.bf16.mxu0 0
    %1399 = vmatpush1.bf16.msra.mxu0 0
    %1400 = vmatprep.subr.bf16.mxu0 0
    %1401 = vmatpush1.bf16.msra.mxu0 0
    %1402 = vmatprep.mubr.bf16.mxu0 0
    %1403 = vmatmul.mubr.bf16.gmra.mrb[0].mxu0 %v1362
    %v1404 = vpop.f32.mrb[0].mxu0
    %v1405 = vadd.f32 0.0, %v1404
    %v1406 = vpop.f32.mrb[0].mxu0
    %v1407 = vpop.f32.mrb[0].mxu0
    %v1408 = vadd.f32 0.0, %v1407
    %v1409 = vpop.f32.mrb[0].mxu0
    %1410 = vmatprep.mubr.bf16.mxu0 0
    %1411 = vmatmul.mubr.bf16.gmra.mrb[0].mxu0 %v1365
    %v1412 = vpop.f32.mrb[0].mxu0
    %v1413 = vadd.f32 0.0, %v1412
    %v1414 = vpop.f32.mrb[0].mxu0
    %v1415 = vpop.f32.mrb[0].mxu0
    %v1416 = vpop.f32.mrb[0].mxu0
    %1417 = vdwg.mxu0
    %1418 = vrot.lane.b32.xlu0 %v383, 104
    %v1419 = vpop.permute.xlu0 %1418
    %1420 = vrot.lane.b32.xlu0 %v384, 104
    %v1421 = vpop.permute.xlu0 %1420
    %1422 = vrot.lane.b32.xlu0 %v383, 72
    %v1423 = vpop.permute.xlu0 %1422
    %1424 = vrot.lane.b32.xlu0 %v384, 72
    %v1425 = vpop.permute.xlu0 %1424
    %v1427 = vsel %vm393, %v1419, 0
    %v1430 = vsel %vm393, %v1421, 0
    %v1433 = vsel %vm393, %v1423, 0
    %v1436 = vsel %vm393, %v1425, 0
    %1438 = vmatprep.subr.bf16.mxu0 0
    %1439 = vmatpush1.bf16.xpose.msra.mxu0 %v1433
    %1440 = vmatprep.subr.bf16.mxu0 0
    %1441 = vmatpush1.bf16.xpose.msra.mxu0 %v1436
    %1442 = vmatprep.subr.bf16.mxu0 0
    %1443 = vmatpush1.bf16.xpose.msra.mxu0 0
    %1444 = vmatprep.subr.bf16.mxu0 0
    %1445 = vmatpush1.bf16.xpose.msra.mxu0 0
    %1446 = vmatprep.subr.bf16.mxu0 0
    %1447 = vmatpush1.bf16.xpose.msra.mxu0 0
    %1448 = vmatprep.subr.bf16.mxu0 0
    %1449 = vmatpush1.bf16.xpose.msra.mxu0 0
    %1450 = vmatprep.subr.bf16.mxu0 0
    %1451 = vmatpush1.bf16.xpose.msra.mxu0 0
    %1452 = vmatprep.subr.bf16.mxu0 0
    %1453 = vmatpush1.bf16.xpose.msra.mxu0 0
    %1454 = vmatprep.subr.bf16.mxu0 0
    %1455 = vmatpush1.bf16.xpose.msra.mxu0 0
    %1456 = vmatprep.subr.bf16.mxu0 0
    %1457 = vmatpush1.bf16.xpose.msra.mxu0 0
    %1458 = vmatprep.subr.bf16.mxu0 0
    %1459 = vmatpush1.bf16.xpose.msra.mxu0 0
    %1460 = vmatprep.subr.bf16.mxu0 0
    %1461 = vmatpush1.bf16.xpose.msra.mxu0 0
    %1462 = vmatprep.subr.bf16.mxu0 0
    %1463 = vmatpush1.bf16.xpose.msra.mxu0 0
    %1464 = vmatprep.subr.bf16.mxu0 0
    %1465 = vmatpush1.bf16.xpose.msra.mxu0 0
    %1466 = vmatprep.subr.bf16.mxu0 0
    %1467 = vmatpush1.bf16.xpose.msra.mxu0 0
    %1468 = vmatprep.subr.bf16.mxu0 0
    %1469 = vmatpush1.bf16.xpose.msra.mxu0 0
    %1470 = vmatprep.mubr.bf16.mxu0 0
    %1471 = vmatmul.mubr.bf16.gmra.mrb[0].mxu0 %v1427
    %v1472 = vpop.f32.mrb[0].mxu0
    %v1473 = vadd.f32 0.0, %v1472
    %v1474 = vpop.f32.mrb[0].mxu0
    %v1475 = vpop.f32.mrb[0].mxu0
    %v1476 = vadd.f32 0.0, %v1475
    %v1477 = vpop.f32.mrb[0].mxu0
    %1478 = vmatprep.mubr.bf16.mxu0 0
    %1479 = vmatmul.mubr.bf16.gmra.mrb[0].mxu0 %v1430
    %v1480 = vpop.f32.mrb[0].mxu0
    %v1481 = vadd.f32 0.0, %v1480
    %v1482 = vpop.f32.mrb[0].mxu0
    %v1483 = vpop.f32.mrb[0].mxu0
    %v1484 = vpop.f32.mrb[0].mxu0
    %1485 = vdwg.mxu0
    %1486 = vrot.lane.b32.xlu0 %v385, 104
    %v1487 = vpop.permute.xlu0 %1486
    %1488 = vrot.lane.b32.xlu0 %v386, 104
    %v1489 = vpop.permute.xlu0 %1488
    %1490 = vrot.lane.b32.xlu0 %v385, 72
    %v1491 = vpop.permute.xlu0 %1490
    %1492 = vrot.lane.b32.xlu0 %v386, 72
    %v1493 = vpop.permute.xlu0 %1492
    %v1495 = vsel %vm393, %v1487, 0
    %v1498 = vsel %vm393, %v1489, 0
    %v1501 = vsel %vm393, %v1491, 0
    %v1504 = vsel %vm393, %v1493, 0
    %1506 = vmatprep.subr.bf16.mxu0 0
    %1507 = vmatpush1.bf16.xpose.msra.mxu0 %v1501
    %1508 = vmatprep.subr.bf16.mxu0 0
    %1509 = vmatpush1.bf16.xpose.msra.mxu0 %v1504
    %1510 = vmatprep.subr.bf16.mxu0 0
    %1511 = vmatpush1.bf16.xpose.msra.mxu0 0
    %1512 = vmatprep.subr.bf16.mxu0 0
    %1513 = vmatpush1.bf16.xpose.msra.mxu0 0
    %1514 = vmatprep.subr.bf16.mxu0 0
    %1515 = vmatpush1.bf16.xpose.msra.mxu0 0
    %1516 = vmatprep.subr.bf16.mxu0 0
    %1517 = vmatpush1.bf16.xpose.msra.mxu0 0
    %1518 = vmatprep.subr.bf16.mxu0 0
    %1519 = vmatpush1.bf16.xpose.msra.mxu0 0
    %1520 = vmatprep.subr.bf16.mxu0 0
    %1521 = vmatpush1.bf16.xpose.msra.mxu0 0
    %1522 = vmatprep.subr.bf16.mxu0 0
    %1523 = vmatpush1.bf16.xpose.msra.mxu0 0
    %1524 = vmatprep.subr.bf16.mxu0 0
    %1525 = vmatpush1.bf16.xpose.msra.mxu0 0
    %1526 = vmatprep.subr.bf16.mxu0 0
    %1527 = vmatpush1.bf16.xpose.msra.mxu0 0
    %1528 = vmatprep.subr.bf16.mxu0 0
    %1529 = vmatpush1.bf16.xpose.msra.mxu0 0
    %1530 = vmatprep.subr.bf16.mxu0 0
    %1531 = vmatpush1.bf16.xpose.msra.mxu0 0
    %1532 = vmatprep.subr.bf16.mxu0 0
    %1533 = vmatpush1.bf16.xpose.msra.mxu0 0
    %1534 = vmatprep.subr.bf16.mxu0 0
    %1535 = vmatpush1.bf16.xpose.msra.mxu0 0
    %1536 = vmatprep.subr.bf16.mxu0 0
    %1537 = vmatpush1.bf16.xpose.msra.mxu0 0
    %1538 = vmatprep.mubr.bf16.mxu0 0
    %1539 = vmatmul.mubr.bf16.gmra.mrb[0].mxu0 %v1495
    %v1540 = vpop.f32.mrb[0].mxu0
    %v1541 = vadd.f32 0.0, %v1540
    %v1542 = vpop.f32.mrb[0].mxu0
    %v1543 = vpop.f32.mrb[0].mxu0
    %v1544 = vadd.f32 0.0, %v1543
    %v1545 = vpop.f32.mrb[0].mxu0
    %1546 = vmatprep.mubr.bf16.mxu0 0
    %1547 = vmatmul.mubr.bf16.gmra.mrb[0].mxu0 %v1498
    %v1548 = vpop.f32.mrb[0].mxu0
    %v1549 = vadd.f32 0.0, %v1548
    %v1550 = vpop.f32.mrb[0].mxu0
    %v1551 = vpop.f32.mrb[0].mxu0
    %v1552 = vpop.f32.mrb[0].mxu0
    %1553 = vdwg.mxu0
    %v1554 = vmul.f32 %v1473, 0.35355338
    %v1555 = vmul.f32 %v1476, 0.35355338
    %v1556 = vmul.f32 %v1481, 0.35355338
    %v1557 = vmul.f32 %v1541, 0.35355338
    %v1558 = vmul.f32 %v1544, 0.35355338
    %v1559 = vmul.f32 %v1549, 0.35355338
    %v1560 = vadd.f32 %v1554, %v530
    %v1561 = vadd.f32 %v1555, %v530
    %v1562 = vadd.f32 %v1556, %v530
    %v1563 = vadd.f32 %v1557, %v530
    %v1564 = vadd.f32 %v1558, %v530
    %v1565 = vadd.f32 %v1559, %v530
    %v1566 = vsel %vm538, %v1560, -inf
    %1567 = vmax.xlane.f32.xlu0 %v1566
    %v1568 = vpop.xlane.xlu0 %1567
    %v1569 = vsel %vm538, %v1561, -inf
    %1570 = vmax.xlane.f32.xlu0 %v1569
    %v1571 = vpop.xlane.xlu0 %1570
    %v1572 = vsel %vm538, %v1562, -inf
    %1573 = vmax.xlane.f32.xlu0 %v1572
    %v1574 = vpop.xlane.xlu0 %1573
    %v1575 = vsel %vm538, %v1563, -inf
    %1576 = vmax.xlane.f32.xlu0 %v1575
    %v1577 = vpop.xlane.xlu0 %1576
    %v1578 = vsel %vm538, %v1564, -inf
    %1579 = vmax.xlane.f32.xlu0 %v1578
    %v1580 = vpop.xlane.xlu0 %1579
    %v1581 = vsel %vm538, %v1565, -inf
    %1582 = vmax.xlane.f32.xlu0 %v1581
    %v1583 = vpop.xlane.xlu0 %1582
    %v1584 = vsub.f32 %v1560, %v1568
    %v1585 = vsub.f32 %v1561, %v1571
    %v1586 = vsub.f32 %v1562, %v1574
    %v1587 = vsub.f32 %v1563, %v1577
    %v1588 = vsub.f32 %v1564, %v1580
    %v1589 = vsub.f32 %v1565, %v1583
    %v1590 = vmul.f32 %v1584, 1.442695
    %v1591 = vpow.pop %v1590
    %v1592 = vmul.f32 %v1585, 1.442695
    %v1593 = vpow.pop %v1592
    %v1594 = vmul.f32 %v1586, 1.442695
    %v1595 = vpow.pop %v1594
    %v1596 = vmul.f32 %v1587, 1.442695
    %v1597 = vpow.pop %v1596
    %v1598 = vmul.f32 %v1588, 1.442695
    %v1599 = vpow.pop %v1598
    %v1600 = vmul.f32 %v1589, 1.442695
    %v1601 = vpow.pop %v1600
    %v1602 = vsel %vm538, %v1591, 0.0
    %1603 = vadd.xlane.f32.xlu0 %v1602
    %v1604 = vpop.xlane.xlu0 %1603
    %v1605 = vsel %vm538, %v1593, 0.0
    %1606 = vadd.xlane.f32.xlu0 %v1605
    %v1607 = vpop.xlane.xlu0 %1606
    %v1608 = vsel %vm538, %v1595, 0.0
    %1609 = vadd.xlane.f32.xlu0 %v1608
    %v1610 = vpop.xlane.xlu0 %1609
    %v1611 = vsel %vm538, %v1597, 0.0
    %1612 = vadd.xlane.f32.xlu0 %v1611
    %v1613 = vpop.xlane.xlu0 %1612
    %v1614 = vsel %vm538, %v1599, 0.0
    %1615 = vadd.xlane.f32.xlu0 %v1614
    %v1616 = vpop.xlane.xlu0 %1615
    %v1617 = vsel %vm538, %v1601, 0.0
    %1618 = vadd.xlane.f32.xlu0 %v1617
    %v1619 = vpop.xlane.xlu0 %1618
    %v1620 = vrcp.pop %v1604
    %v1621 = vrcp.pop %v1607
    %v1622 = vrcp.pop %v1610
    %v1623 = vrcp.pop %v1613
    %v1624 = vrcp.pop %v1616
    %v1625 = vrcp.pop %v1619
    %v1626 = vmul.f32 %v1591, %v1620
    %v1627 = vmul.f32 %v1593, %v1621
    %v1628 = vmul.f32 %v1595, %v1622
    %v1629 = vmul.f32 %v1597, %v1623
    %v1630 = vmul.f32 %v1599, %v1624
    %v1631 = vmul.f32 %v1601, %v1625
    %v1632 = vpack.c.bf16 %v1627, %v1626
    %v1633 = vpack.c.bf16 %v1628, %v1628
    %v1634 = vpack.c.bf16 %v1630, %v1629
    %v1635 = vpack.c.bf16 %v1631, %v1631
    %1636 = vrot.lane.b32.xlu0 %v383, 40
    %v1637 = vpop.permute.xlu0 %1636
    %1638 = vrot.lane.b32.xlu0 %v384, 40
    %v1639 = vpop.permute.xlu0 %1638
    %v1642 = vsel %vm538, %v1632, 0
    %v1645 = vsel %vm538, %v1633, 0
    %v1648 = vsel %vm620, %v1639, 0
    %1650 = vmatprep.subr.bf16.mxu0 0
    %1651 = vmatpush1.bf16.msra.mxu0 %v1637
    %1652 = vmatprep.subr.bf16.mxu0 0
    %1653 = vmatpush1.bf16.msra.mxu0 %v1648
    %1654 = vmatprep.subr.bf16.mxu0 0
    %1655 = vmatpush1.bf16.msra.mxu0 0
    %1656 = vmatprep.subr.bf16.mxu0 0
    %1657 = vmatpush1.bf16.msra.mxu0 0
    %1658 = vmatprep.subr.bf16.mxu0 0
    %1659 = vmatpush1.bf16.msra.mxu0 0
    %1660 = vmatprep.subr.bf16.mxu0 0
    %1661 = vmatpush1.bf16.msra.mxu0 0
    %1662 = vmatprep.subr.bf16.mxu0 0
    %1663 = vmatpush1.bf16.msra.mxu0 0
    %1664 = vmatprep.subr.bf16.mxu0 0
    %1665 = vmatpush1.bf16.msra.mxu0 0
    %1666 = vmatprep.subr.bf16.mxu0 0
    %1667 = vmatpush1.bf16.msra.mxu0 0
    %1668 = vmatprep.subr.bf16.mxu0 0
    %1669 = vmatpush1.bf16.msra.mxu0 0
    %1670 = vmatprep.subr.bf16.mxu0 0
    %1671 = vmatpush1.bf16.msra.mxu0 0
    %1672 = vmatprep.subr.bf16.mxu0 0
    %1673 = vmatpush1.bf16.msra.mxu0 0
    %1674 = vmatprep.subr.bf16.mxu0 0
    %1675 = vmatpush1.bf16.msra.mxu0 0
    %1676 = vmatprep.subr.bf16.mxu0 0
    %1677 = vmatpush1.bf16.msra.mxu0 0
    %1678 = vmatprep.subr.bf16.mxu0 0
    %1679 = vmatpush1.bf16.msra.mxu0 0
    %1680 = vmatprep.subr.bf16.mxu0 0
    %1681 = vmatpush1.bf16.msra.mxu0 0
    %1682 = vmatprep.mubr.bf16.mxu0 0
    %1683 = vmatmul.mubr.bf16.gmra.mrb[0].mxu0 %v1642
    %v1684 = vpop.f32.mrb[0].mxu0
    %v1685 = vadd.f32 0.0, %v1684
    %v1686 = vpop.f32.mrb[0].mxu0
    %v1687 = vpop.f32.mrb[0].mxu0
    %v1688 = vadd.f32 0.0, %v1687
    %v1689 = vpop.f32.mrb[0].mxu0
    %1690 = vmatprep.mubr.bf16.mxu0 0
    %1691 = vmatmul.mubr.bf16.gmra.mrb[0].mxu0 %v1645
    %v1692 = vpop.f32.mrb[0].mxu0
    %v1693 = vadd.f32 0.0, %v1692
    %v1694 = vpop.f32.mrb[0].mxu0
    %v1695 = vpop.f32.mrb[0].mxu0
    %v1696 = vpop.f32.mrb[0].mxu0
    %1697 = vdwg.mxu0
    %1698 = vrot.lane.b32.xlu0 %v385, 40
    %v1699 = vpop.permute.xlu0 %1698
    %1700 = vrot.lane.b32.xlu0 %v386, 40
    %v1701 = vpop.permute.xlu0 %1700
    %v1704 = vsel %vm538, %v1634, 0
    %v1707 = vsel %vm538, %v1635, 0
    %v1710 = vsel %vm620, %v1701, 0
    %1712 = vmatprep.subr.bf16.mxu0 0
    %1713 = vmatpush1.bf16.msra.mxu0 %v1699
    %1714 = vmatprep.subr.bf16.mxu0 0
    %1715 = vmatpush1.bf16.msra.mxu0 %v1710
    %1716 = vmatprep.subr.bf16.mxu0 0
    %1717 = vmatpush1.bf16.msra.mxu0 0
    %1718 = vmatprep.subr.bf16.mxu0 0
    %1719 = vmatpush1.bf16.msra.mxu0 0
    %1720 = vmatprep.subr.bf16.mxu0 0
    %1721 = vmatpush1.bf16.msra.mxu0 0
    %1722 = vmatprep.subr.bf16.mxu0 0
    %1723 = vmatpush1.bf16.msra.mxu0 0
    %1724 = vmatprep.subr.bf16.mxu0 0
    %1725 = vmatpush1.bf16.msra.mxu0 0
    %1726 = vmatprep.subr.bf16.mxu0 0
    %1727 = vmatpush1.bf16.msra.mxu0 0
    %1728 = vmatprep.subr.bf16.mxu0 0
    %1729 = vmatpush1.bf16.msra.mxu0 0
    %1730 = vmatprep.subr.bf16.mxu0 0
    %1731 = vmatpush1.bf16.msra.mxu0 0
    %1732 = vmatprep.subr.bf16.mxu0 0
    %1733 = vmatpush1.bf16.msra.mxu0 0
    %1734 = vmatprep.subr.bf16.mxu0 0
    %1735 = vmatpush1.bf16.msra.mxu0 0
    %1736 = vmatprep.subr.bf16.mxu0 0
    %1737 = vmatpush1.bf16.msra.mxu0 0
    %1738 = vmatprep.subr.bf16.mxu0 0
    %1739 = vmatpush1.bf16.msra.mxu0 0
    %1740 = vmatprep.subr.bf16.mxu0 0
    %1741 = vmatpush1.bf16.msra.mxu0 0
    %1742 = vmatprep.subr.bf16.mxu0 0
    %1743 = vmatpush1.bf16.msra.mxu0 0
    %1744 = vmatprep.mubr.bf16.mxu0 0
    %1745 = vmatmul.mubr.bf16.gmra.mrb[0].mxu0 %v1704
    %v1746 = vpop.f32.mrb[0].mxu0
    %v1747 = vadd.f32 0.0, %v1746
    %v1748 = vpop.f32.mrb[0].mxu0
    %v1749 = vpop.f32.mrb[0].mxu0
    %v1750 = vadd.f32 0.0, %v1749
    %v1751 = vpop.f32.mrb[0].mxu0
    %1752 = vmatprep.mubr.bf16.mxu0 0
    %1753 = vmatmul.mubr.bf16.gmra.mrb[0].mxu0 %v1707
    %v1754 = vpop.f32.mrb[0].mxu0
    %v1755 = vadd.f32 0.0, %v1754
    %v1756 = vpop.f32.mrb[0].mxu0
    %v1757 = vpop.f32.mrb[0].mxu0
    %v1758 = vpop.f32.mrb[0].mxu0
    %1759 = vdwg.mxu0
    %1766 = vrot.lane.b32.xlu0 %v1001, 8
    %v1767 = vpop.permute.xlu0 %1766
    %1768 = vrot.lane.b32.xlu0 %v1004, 8
    %v1769 = vpop.permute.xlu0 %1768
    %1770 = vrot.lane.b32.xlu0 %v1009, 8
    %v1771 = vpop.permute.xlu0 %1770
    %1772 = vrot.lane.b32.xlu0 %v1063, 8
    %v1773 = vpop.permute.xlu0 %1772
    %1774 = vrot.lane.b32.xlu0 %v1066, 8
    %v1775 = vpop.permute.xlu0 %1774
    %1776 = vrot.lane.b32.xlu0 %v1071, 8
    %v1777 = vpop.permute.xlu0 %1776
    %1790 = vrot.lane.b32.xlu0 %v1343, 16
    %v1791 = vpop.permute.xlu0 %1790
    %1792 = vrot.lane.b32.xlu0 %v1346, 16
    %v1793 = vpop.permute.xlu0 %1792
    %1794 = vrot.lane.b32.xlu0 %v1351, 16
    %v1795 = vpop.permute.xlu0 %1794
    %1796 = vrot.lane.b32.xlu0 %v1405, 16
    %v1797 = vpop.permute.xlu0 %1796
    %1798 = vrot.lane.b32.xlu0 %v1408, 16
    %v1799 = vpop.permute.xlu0 %1798
    %1800 = vrot.lane.b32.xlu0 %v1413, 16
    %v1801 = vpop.permute.xlu0 %1800
    %1814 = vrot.lane.b32.xlu0 %v1685, 24
    %v1815 = vpop.permute.xlu0 %1814
    %1816 = vrot.lane.b32.xlu0 %v1688, 24
    %v1817 = vpop.permute.xlu0 %1816
    %1818 = vrot.lane.b32.xlu0 %v1693, 24
    %v1819 = vpop.permute.xlu0 %1818
    %1820 = vrot.lane.b32.xlu0 %v1747, 24
    %v1821 = vpop.permute.xlu0 %1820
    %1822 = vrot.lane.b32.xlu0 %v1750, 24
    %v1823 = vpop.permute.xlu0 %1822
    %1824 = vrot.lane.b32.xlu0 %v1755, 24
    %v1825 = vpop.permute.xlu0 %1824
    %v1832 = vsel %vm393, %v659, %v1767
    %v1833 = vsel %vm393, %v662, %v1769
    %v1834 = vsel %vm393, %v667, %v1771
    %v1835 = vsel %vm393, %v721, %v1773
    %v1836 = vsel %vm393, %v724, %v1775
    %v1837 = vsel %vm393, %v729, %v1777
    %vm1838 = vcmask 130048
    %v1839 = vsel %vm1838, %v1832, %v1791
    %v1840 = vsel %vm1838, %v1833, %v1793
    %v1841 = vsel %vm1838, %v1834, %v1795
    %v1842 = vsel %vm1838, %v1835, %v1797
    %v1843 = vsel %vm1838, %v1836, %v1799
    %v1844 = vsel %vm1838, %v1837, %v1801
    %v1845 = vsel %vm538, %v1839, %v1815
    %v1846 = vsel %vm538, %v1840, %v1817
    %v1847 = vsel %vm538, %v1841, %v1819
    %v1848 = vsel %vm538, %v1842, %v1821
    %v1849 = vsel %vm538, %v1843, %v1823
    %v1850 = vsel %vm538, %v1844, %v1825
    %v1851 = vld [vmem:[%s8] sm:$0xf]
    %v1852 = vld [vmem:[%s8 + $0x4] sm:$0xf]
    %v1853 = vld [vmem:[%s8 + $0x8] sm:$0xf]
    %v1854 = vld [vmem:[%s8 + $0xc] sm:$0xf]
    %v1855 = vld [vmem:[%s9] sm:$0x1]
    %v1856 = vpack.c.bf16 %v1846, %v1845
    %v1857 = vpack.c.bf16 %v1848, %v1847
    %v1858 = vpack.c.bf16 %v1850, %v1849
    %v1860 = vlaneseq
    %v1861 = vshrl.u32 %v1860, 7
    %v1862 = vsub.s32 0, %v1861
    %v1863 = vrot.slane %v1855, %v1862
    %v1869 = vunpack.c.l.b16 %v1851
    %v1870 = vunpack.c.l.b16 %v1852
    %v1871 = vunpack.c.l.b16 %v1853
    %v1872 = vunpack.c.l.b16 %v1854
    %v1873 = vpack.c.b16 %v1870, %v1869
    %v1874 = vpack.c.b16 %v1872, %v1871
    %v1878 = vsel %vm187, %v1856, 0
    %v1881 = vsel %vm187, %v1857, 0
    %v1884 = vsel %vm187, %v1858, 0
    %1886 = vmatprep.subr.bf16.mxu0 0
    %1887 = vmatpush1.bf16.msra.mxu0 %v1873
    %1888 = vmatprep.subr.bf16.mxu0 0
    %1889 = vmatpush1.bf16.msra.mxu0 %v1874
    %1890 = vmatprep.subr.bf16.mxu0 0
    %1891 = vmatpush1.bf16.msra.mxu0 0
    %1892 = vmatprep.subr.bf16.mxu0 0
    %1893 = vmatpush1.bf16.msra.mxu0 0
    %1894 = vmatprep.subr.bf16.mxu0 0
    %1895 = vmatpush1.bf16.msra.mxu0 0
    %1896 = vmatprep.subr.bf16.mxu0 0
    %1897 = vmatpush1.bf16.msra.mxu0 0
    %1898 = vmatprep.subr.bf16.mxu0 0
    %1899 = vmatpush1.bf16.msra.mxu0 0
    %1900 = vmatprep.subr.bf16.mxu0 0
    %1901 = vmatpush1.bf16.msra.mxu0 0
    %1902 = vmatprep.subr.bf16.mxu0 0
    %1903 = vmatpush1.bf16.msra.mxu0 0
    %1904 = vmatprep.subr.bf16.mxu0 0
    %1905 = vmatpush1.bf16.msra.mxu0 0
    %1906 = vmatprep.subr.bf16.mxu0 0
    %1907 = vmatpush1.bf16.msra.mxu0 0
    %1908 = vmatprep.subr.bf16.mxu0 0
    %1909 = vmatpush1.bf16.msra.mxu0 0
    %1910 = vmatprep.subr.bf16.mxu0 0
    %1911 = vmatpush1.bf16.msra.mxu0 0
    %1912 = vmatprep.subr.bf16.mxu0 0
    %1913 = vmatpush1.bf16.msra.mxu0 0
    %1914 = vmatprep.subr.bf16.mxu0 0
    %1915 = vmatpush1.bf16.msra.mxu0 0
    %1916 = vmatprep.subr.bf16.mxu0 0
    %1917 = vmatpush1.bf16.msra.mxu0 0
    %1918 = vmatprep.mubr.bf16.mxu0 0
    %1919 = vmatmul.mubr.bf16.gmra.mrb[0].mxu0 %v1878
    %v1920 = vpop.f32.mrb[0].mxu0
    %v1921 = vadd.f32 %v1863, %v1920
    %v1922 = vpop.f32.mrb[0].mxu0
    %v1923 = vpop.f32.mrb[0].mxu0
    %v1924 = vadd.f32 %v1863, %v1923
    %v1925 = vpop.f32.mrb[0].mxu0
    %1926 = vmatprep.mubr.bf16.mxu0 0
    %1927 = vmatmul.mubr.bf16.gmra.mrb[0].mxu0 %v1881
    %v1928 = vpop.f32.mrb[0].mxu0
    %v1929 = vadd.f32 %v1863, %v1928
    %v1930 = vpop.f32.mrb[0].mxu0
    %v1931 = vpop.f32.mrb[0].mxu0
    %v1932 = vadd.f32 %v1863, %v1931
    %v1933 = vpop.f32.mrb[0].mxu0
    %1934 = vmatprep.mubr.bf16.mxu0 0
    %1935 = vmatmul.mubr.bf16.gmra.mrb[0].mxu0 %v1884
    %v1936 = vpop.f32.mrb[0].mxu0
    %v1937 = vadd.f32 %v1863, %v1936
    %v1938 = vpop.f32.mrb[0].mxu0
    %v1939 = vpop.f32.mrb[0].mxu0
    %v1940 = vadd.f32 %v1863, %v1939
    %v1941 = vpop.f32.mrb[0].mxu0
    %1942 = vdwg.mxu0
    %v1943 = vadd.f32 %v179, %v1921
    %v1944 = vadd.f32 %v180, %v1924
    %v1945 = vadd.f32 %v181, %v1929
    %v1946 = vadd.f32 %v182, %v1932
    %v1947 = vadd.f32 %v183, %v1937
    %v1948 = vadd.f32 %v184, %v1940
    %v1949 = vld [vmem:[%s10] sm:$0x1]
    %v1950 = vld [vmem:[%s11] sm:$0x1]
    %v1951 = vsel %vm187, %v1943, 0.0
    %1952 = vadd.xlane.f32.xlu0 %v1951
    %v1953 = vpop.xlane.xlu0 %1952
    %v1954 = vsel %vm187, %v1944, 0.0
    %1955 = vadd.xlane.f32.xlu0 %v1954
    %v1956 = vpop.xlane.xlu0 %1955
    %v1957 = vsel %vm187, %v1945, 0.0
    %1958 = vadd.xlane.f32.xlu0 %v1957
    %v1959 = vpop.xlane.xlu0 %1958
    %v1960 = vsel %vm187, %v1946, 0.0
    %1961 = vadd.xlane.f32.xlu0 %v1960
    %v1962 = vpop.xlane.xlu0 %1961
    %v1963 = vsel %vm187, %v1947, 0.0
    %1964 = vadd.xlane.f32.xlu0 %v1963
    %v1965 = vpop.xlane.xlu0 %1964
    %v1966 = vsel %vm187, %v1948, 0.0
    %1967 = vadd.xlane.f32.xlu0 %v1966
    %v1968 = vpop.xlane.xlu0 %1967
    %v1969 = vmul.f32 %v1953, %v206
    %v1970 = vmul.f32 %v1956, %v206
    %v1971 = vmul.f32 %v1959, %v206
    %v1972 = vmul.f32 %v1962, %v206
    %v1973 = vmul.f32 %v1965, %v206
    %v1974 = vmul.f32 %v1968, %v206
    %v1975 = vsub.f32 %v1943, %v1969
    %v1976 = vsub.f32 %v1944, %v1970
    %v1977 = vsub.f32 %v1945, %v1971
    %v1978 = vsub.f32 %v1946, %v1972
    %v1979 = vsub.f32 %v1947, %v1973
    %v1980 = vsub.f32 %v1948, %v1974
    %v1981 = vmul.f32 %v1975, %v1975
    %v1982 = vmul.f32 %v1976, %v1976
    %v1983 = vmul.f32 %v1977, %v1977
    %v1984 = vmul.f32 %v1978, %v1978
    %v1985 = vmul.f32 %v1979, %v1979
    %v1986 = vmul.f32 %v1980, %v1980
    %v1987 = vsel %vm187, %v1981, 0.0
    %1988 = vadd.xlane.f32.xlu0 %v1987
    %v1989 = vpop.xlane.xlu0 %1988
    %v1990 = vsel %vm187, %v1982, 0.0
    %1991 = vadd.xlane.f32.xlu0 %v1990
    %v1992 = vpop.xlane.xlu0 %1991
    %v1993 = vsel %vm187, %v1983, 0.0
    %1994 = vadd.xlane.f32.xlu0 %v1993
    %v1995 = vpop.xlane.xlu0 %1994
    %v1996 = vsel %vm187, %v1984, 0.0
    %1997 = vadd.xlane.f32.xlu0 %v1996
    %v1998 = vpop.xlane.xlu0 %1997
    %v1999 = vsel %vm187, %v1985, 0.0
    %2000 = vadd.xlane.f32.xlu0 %v1999
    %v2001 = vpop.xlane.xlu0 %2000
    %v2002 = vsel %vm187, %v1986, 0.0
    %2003 = vadd.xlane.f32.xlu0 %v2002
    %v2004 = vpop.xlane.xlu0 %2003
    %v2005 = vmul.f32 %v1989, %v206
    %v2006 = vmul.f32 %v1992, %v206
    %v2007 = vmul.f32 %v1995, %v206
    %v2008 = vmul.f32 %v1998, %v206
    %v2009 = vmul.f32 %v2001, %v206
    %v2010 = vmul.f32 %v2004, %v206
    %v2011 = vadd.f32 %v2005, 1e-06
    %v2012 = vadd.f32 %v2006, 1e-06
    %v2013 = vadd.f32 %v2007, 1e-06
    %v2014 = vadd.f32 %v2008, 1e-06
    %v2015 = vadd.f32 %v2009, 1e-06
    %v2016 = vadd.f32 %v2010, 1e-06
    %v2017 = vrsqrt.pop %v2011
    %v2018 = vrsqrt.pop %v2012
    %v2019 = vrsqrt.pop %v2013
    %v2020 = vrsqrt.pop %v2014
    %v2021 = vrsqrt.pop %v2015
    %v2022 = vrsqrt.pop %v2016
    %v2023 = vmul.f32 %v1975, %v2017
    %v2024 = vmul.f32 %v1976, %v2018
    %v2025 = vmul.f32 %v1977, %v2019
    %v2026 = vmul.f32 %v1978, %v2020
    %v2027 = vmul.f32 %v1979, %v2021
    %v2028 = vmul.f32 %v1980, %v2022
    %v2030 = vlaneseq
    %v2031 = vshrl.u32 %v2030, 7
    %v2032 = vsub.s32 0, %v2031
    %v2033 = vrot.slane %v1949, %v2032
    %v2035 = vmul.f32 %v2023, %v2033
    %v2036 = vmul.f32 %v2024, %v2033
    %v2037 = vmul.f32 %v2025, %v2033
    %v2038 = vmul.f32 %v2026, %v2033
    %v2039 = vmul.f32 %v2027, %v2033
    %v2040 = vmul.f32 %v2028, %v2033
    %v2042 = vlaneseq
    %v2043 = vshrl.u32 %v2042, 7
    %v2044 = vsub.s32 0, %v2043
    %v2045 = vrot.slane %v1950, %v2044
    %v2047 = vadd.f32 %v2035, %v2045
    %v2048 = vadd.f32 %v2036, %v2045
    %v2049 = vadd.f32 %v2037, %v2045
    %v2050 = vadd.f32 %v2038, %v2045
    %v2051 = vadd.f32 %v2039, %v2045
    %v2052 = vadd.f32 %v2040, %v2045
    %v2053 = vld [vmem:[%s12] sm:$0xf]
    %v2054 = vld [vmem:[%s12 + $0x4] sm:$0xf]
    %v2055 = vld [vmem:[%s12 + $0x8] sm:$0xf]
    %v2056 = vld [vmem:[%s12 + $0xc] sm:$0xf]
    %v2057 = vld [vmem:[%s13] sm:$0x1]
    %v2058 = vpack.c.bf16 %v2048, %v2047
    %v2059 = vpack.c.bf16 %v2050, %v2049
    %v2060 = vpack.c.bf16 %v2052, %v2051
    %v2062 = vlaneseq
    %v2063 = vshrl.u32 %v2062, 7
    %v2064 = vsub.s32 0, %v2063
    %v2065 = vrot.slane %v2057, %v2064
    %v2071 = vunpack.c.l.b16 %v2053
    %v2072 = vunpack.c.l.b16 %v2054
    %v2073 = vunpack.c.l.b16 %v2055
    %v2074 = vunpack.c.l.b16 %v2056
    %v2075 = vpack.c.b16 %v2072, %v2071
    %v2076 = vpack.c.b16 %v2074, %v2073
    %v2080 = vsel %vm187, %v2058, 0
    %v2083 = vsel %vm187, %v2059, 0
    %v2086 = vsel %vm187, %v2060, 0
    %2088 = vmatprep.subr.bf16.mxu0 0
    %2089 = vmatpush1.bf16.msra.mxu0 %v2075
    %2090 = vmatprep.subr.bf16.mxu0 0
    %2091 = vmatpush1.bf16.msra.mxu0 %v2076
    %2092 = vmatprep.subr.bf16.mxu0 0
    %2093 = vmatpush1.bf16.msra.mxu0 0
    %2094 = vmatprep.subr.bf16.mxu0 0
    %2095 = vmatpush1.bf16.msra.mxu0 0
    %2096 = vmatprep.subr.bf16.mxu0 0
    %2097 = vmatpush1.bf16.msra.mxu0 0
    %2098 = vmatprep.subr.bf16.mxu0 0
    %2099 = vmatpush1.bf16.msra.mxu0 0
    %2100 = vmatprep.subr.bf16.mxu0 0
    %2101 = vmatpush1.bf16.msra.mxu0 0
    %2102 = vmatprep.subr.bf16.mxu0 0
    %2103 = vmatpush1.bf16.msra.mxu0 0
    %2104 = vmatprep.subr.bf16.mxu0 0
    %2105 = vmatpush1.bf16.msra.mxu0 0
    %2106 = vmatprep.subr.bf16.mxu0 0
    %2107 = vmatpush1.bf16.msra.mxu0 0
    %2108 = vmatprep.subr.bf16.mxu0 0
    %2109 = vmatpush1.bf16.msra.mxu0 0
    %2110 = vmatprep.subr.bf16.mxu0 0
    %2111 = vmatpush1.bf16.msra.mxu0 0
    %2112 = vmatprep.subr.bf16.mxu0 0
    %2113 = vmatpush1.bf16.msra.mxu0 0
    %2114 = vmatprep.subr.bf16.mxu0 0
    %2115 = vmatpush1.bf16.msra.mxu0 0
    %2116 = vmatprep.subr.bf16.mxu0 0
    %2117 = vmatpush1.bf16.msra.mxu0 0
    %2118 = vmatprep.subr.bf16.mxu0 0
    %2119 = vmatpush1.bf16.msra.mxu0 0
    %2120 = vmatprep.mubr.bf16.mxu0 0
    %2121 = vmatmul.mubr.bf16.gmra.mrb[0].mxu0 %v2080
    %v2122 = vpop.f32.mrb[0].mxu0
    %v2123 = vadd.f32 %v2065, %v2122
    %v2124 = vpop.f32.mrb[0].mxu0
    %v2125 = vpop.f32.mrb[0].mxu0
    %v2126 = vadd.f32 %v2065, %v2125
    %v2127 = vpop.f32.mrb[0].mxu0
    %2128 = vmatprep.mubr.bf16.mxu0 0
    %2129 = vmatmul.mubr.bf16.gmra.mrb[0].mxu0 %v2083
    %v2130 = vpop.f32.mrb[0].mxu0
    %v2131 = vadd.f32 %v2065, %v2130
    %v2132 = vpop.f32.mrb[0].mxu0
    %v2133 = vpop.f32.mrb[0].mxu0
    %v2134 = vadd.f32 %v2065, %v2133
    %v2135 = vpop.f32.mrb[0].mxu0
    %2136 = vmatprep.mubr.bf16.mxu0 0
    %2137 = vmatmul.mubr.bf16.gmra.mrb[0].mxu0 %v2086
    %v2138 = vpop.f32.mrb[0].mxu0
    %v2139 = vadd.f32 %v2065, %v2138
    %v2140 = vpop.f32.mrb[0].mxu0
    %v2141 = vpop.f32.mrb[0].mxu0
    %v2142 = vadd.f32 %v2065, %v2141
    %v2143 = vpop.f32.mrb[0].mxu0
    %2144 = vdwg.mxu0
    %v2145 = vmul.f32 %v2123, %v2123
    %v2146 = vmul.f32 %v2126, %v2126
    %v2147 = vmul.f32 %v2131, %v2131
    %v2148 = vmul.f32 %v2134, %v2134
    %v2149 = vmul.f32 %v2139, %v2139
    %v2150 = vmul.f32 %v2142, %v2142
    %v2151 = vmul.f32 %v2123, %v2145
    %v2152 = vmul.f32 %v2126, %v2146
    %v2153 = vmul.f32 %v2131, %v2147
    %v2154 = vmul.f32 %v2134, %v2148
    %v2155 = vmul.f32 %v2139, %v2149
    %v2156 = vmul.f32 %v2142, %v2150
    %v2157 = vmul.f32 %v2151, 0.044715
    %v2158 = vmul.f32 %v2152, 0.044715
    %v2159 = vmul.f32 %v2153, 0.044715
    %v2160 = vmul.f32 %v2154, 0.044715
    %v2161 = vmul.f32 %v2155, 0.044715
    %v2162 = vmul.f32 %v2156, 0.044715
    %v2163 = vadd.f32 %v2123, %v2157
    %v2164 = vadd.f32 %v2126, %v2158
    %v2165 = vadd.f32 %v2131, %v2159
    %v2166 = vadd.f32 %v2134, %v2160
    %v2167 = vadd.f32 %v2139, %v2161
    %v2168 = vadd.f32 %v2142, %v2162
    %v2169 = vmul.f32 %v2163, 0.7978846
    %v2170 = vmul.f32 %v2164, 0.7978846
    %v2171 = vmul.f32 %v2165, 0.7978846
    %v2172 = vmul.f32 %v2166, 0.7978846
    %v2173 = vmul.f32 %v2167, 0.7978846
    %v2174 = vmul.f32 %v2168, 0.7978846
    %v2175 = vtanh.pop %v2169
    %v2176 = vtanh.pop %v2170
    %v2177 = vtanh.pop %v2171
    %v2178 = vtanh.pop %v2172
    %v2179 = vtanh.pop %v2173
    %v2180 = vtanh.pop %v2174
    %v2181 = vadd.f32 %v2175, 1.0
    %v2182 = vadd.f32 %v2176, 1.0
    %v2183 = vadd.f32 %v2177, 1.0
    %v2184 = vadd.f32 %v2178, 1.0
    %v2185 = vadd.f32 %v2179, 1.0
    %v2186 = vadd.f32 %v2180, 1.0
    %v2187 = vmul.f32 %v2181, 0.5
    %v2188 = vmul.f32 %v2182, 0.5
    %v2189 = vmul.f32 %v2183, 0.5
    %v2190 = vmul.f32 %v2184, 0.5
    %v2191 = vmul.f32 %v2185, 0.5
    %v2192 = vmul.f32 %v2186, 0.5
    %v2193 = vmul.f32 %v2123, %v2187
    %v2194 = vmul.f32 %v2126, %v2188
    %v2195 = vmul.f32 %v2131, %v2189
    %v2196 = vmul.f32 %v2134, %v2190
    %v2197 = vmul.f32 %v2139, %v2191
    %v2198 = vmul.f32 %v2142, %v2192
    %v2199 = vld [vmem:[%s14] sm:$0xf]
    %v2200 = vld [vmem:[%s14 + $0x4] sm:$0xf]
    %v2201 = vld [vmem:[%s14 + $0x8] sm:$0xf]
    %v2202 = vld [vmem:[%s14 + $0xc] sm:$0xf]
    %v2203 = vld [vmem:[%s14 + $0x10] sm:$0xf]
    %v2204 = vld [vmem:[%s14 + $0x14] sm:$0xf]
    %v2205 = vld [vmem:[%s14 + $0x18] sm:$0xf]
    %v2206 = vld [vmem:[%s14 + $0x1c] sm:$0xf]
    %v2207 = vld [vmem:[%s15] sm:$0x1]
    %v2208 = vpack.c.bf16 %v2194, %v2193
    %v2209 = vpack.c.bf16 %v2196, %v2195
    %v2210 = vpack.c.bf16 %v2198, %v2197
    %v2212 = vlaneseq
    %v2213 = vshrl.u32 %v2212, 7
    %v2214 = vsub.s32 0, %v2213
    %v2215 = vrot.slane %v2207, %v2214
    %v2225 = vunpack.c.l.b16 %v2199
    %v2226 = vunpack.c.l.b16 %v2200
    %v2227 = vunpack.c.l.b16 %v2201
    %v2228 = vunpack.c.l.b16 %v2202
    %v2229 = vunpack.c.l.b16 %v2203
    %v2230 = vunpack.c.l.b16 %v2204
    %v2231 = vunpack.c.l.b16 %v2205
    %v2232 = vunpack.c.l.b16 %v2206
    %v2233 = vpack.c.b16 %v2226, %v2225
    %v2234 = vpack.c.b16 %v2228, %v2227
    %v2235 = vpack.c.b16 %v2230, %v2229
    %v2236 = vpack.c.b16 %v2232, %v2231
    %v2242 = vsel %vm109, %v2208, 0
    %v2245 = vsel %vm109, %v2209, 0
    %v2248 = vsel %vm109, %v2210, 0
    %2250 = vmatprep.subr.bf16.mxu0 0
    %2251 = vmatpush1.bf16.msra.mxu0 %v2233
    %2252 = vmatprep.subr.bf16.mxu0 0
    %2253 = vmatpush1.bf16.msra.mxu0 %v2234
    %2254 = vmatprep.subr.bf16.mxu0 0
    %2255 = vmatpush1.bf16.msra.mxu0 %v2235
    %2256 = vmatprep.subr.bf16.mxu0 0
    %2257 = vmatpush1.bf16.msra.mxu0 %v2236
    %2258 = vmatprep.subr.bf16.mxu0 0
    %2259 = vmatpush1.bf16.msra.mxu0 0
    %2260 = vmatprep.subr.bf16.mxu0 0
    %2261 = vmatpush1.bf16.msra.mxu0 0
    %2262 = vmatprep.subr.bf16.mxu0 0
    %2263 = vmatpush1.bf16.msra.mxu0 0
    %2264 = vmatprep.subr.bf16.mxu0 0
    %2265 = vmatpush1.bf16.msra.mxu0 0
    %2266 = vmatprep.subr.bf16.mxu0 0
    %2267 = vmatpush1.bf16.msra.mxu0 0
    %2268 = vmatprep.subr.bf16.mxu0 0
    %2269 = vmatpush1.bf16.msra.mxu0 0
    %2270 = vmatprep.subr.bf16.mxu0 0
    %2271 = vmatpush1.bf16.msra.mxu0 0
    %2272 = vmatprep.subr.bf16.mxu0 0
    %2273 = vmatpush1.bf16.msra.mxu0 0
    %2274 = vmatprep.subr.bf16.mxu0 0
    %2275 = vmatpush1.bf16.msra.mxu0 0
    %2276 = vmatprep.subr.bf16.mxu0 0
    %2277 = vmatpush1.bf16.msra.mxu0 0
    %2278 = vmatprep.subr.bf16.mxu0 0
    %2279 = vmatpush1.bf16.msra.mxu0 0
    %2280 = vmatprep.subr.bf16.mxu0 0
    %2281 = vmatpush1.bf16.msra.mxu0 0
    %2282 = vmatprep.mubr.bf16.mxu0 0
    %2283 = vmatmul.mubr.bf16.gmra.mrb[0].mxu0 %v2242
    %v2284 = vpop.f32.mrb[0].mxu0
    %v2285 = vadd.f32 %v2215, %v2284
    %v2286 = vpop.f32.mrb[0].mxu0
    %v2287 = vpop.f32.mrb[0].mxu0
    %v2288 = vadd.f32 %v2215, %v2287
    %v2289 = vpop.f32.mrb[0].mxu0
    %2290 = vmatprep.mubr.bf16.mxu0 0
    %2291 = vmatmul.mubr.bf16.gmra.mrb[0].mxu0 %v2245
    %v2292 = vpop.f32.mrb[0].mxu0
    %v2293 = vadd.f32 %v2215, %v2292
    %v2294 = vpop.f32.mrb[0].mxu0
    %v2295 = vpop.f32.mrb[0].mxu0
    %v2296 = vadd.f32 %v2215, %v2295
    %v2297 = vpop.f32.mrb[0].mxu0
    %2298 = vmatprep.mubr.bf16.mxu0 0
    %2299 = vmatmul.mubr.bf16.gmra.mrb[0].mxu0 %v2248
    %v2300 = vpop.f32.mrb[0].mxu0
    %v2301 = vadd.f32 %v2215, %v2300
    %v2302 = vpop.f32.mrb[0].mxu0
    %v2303 = vpop.f32.mrb[0].mxu0
    %v2304 = vadd.f32 %v2215, %v2303
    %v2305 = vpop.f32.mrb[0].mxu0
    %2306 = vdwg.mxu0
    %v2307 = vadd.f32 %v1943, %v2285
    %v2308 = vadd.f32 %v1944, %v2288
    %v2309 = vadd.f32 %v1945, %v2293
    %v2310 = vadd.f32 %v1946, %v2296
    %v2311 = vadd.f32 %v1947, %v2301
    %v2312 = vadd.f32 %v1948, %v2304
    %s2313 = scalar_lea.vmem %s4, 1
    %v2314 = vld [vmem:[%s2313] sm:$0x1]
    %s2315 = scalar_lea.vmem %s5, 1
    %v2316 = vld [vmem:[%s2315] sm:$0x1]
    %v2317 = vsel %vm187, %v2307, 0.0
    %2318 = vadd.xlane.f32.xlu0 %v2317
    %v2319 = vpop.xlane.xlu0 %2318
    %v2320 = vsel %vm187, %v2308, 0.0
    %2321 = vadd.xlane.f32.xlu0 %v2320
    %v2322 = vpop.xlane.xlu0 %2321
    %v2323 = vsel %vm187, %v2309, 0.0
    %2324 = vadd.xlane.f32.xlu0 %v2323
    %v2325 = vpop.xlane.xlu0 %2324
    %v2326 = vsel %vm187, %v2310, 0.0
    %2327 = vadd.xlane.f32.xlu0 %v2326
    %v2328 = vpop.xlane.xlu0 %2327
    %v2329 = vsel %vm187, %v2311, 0.0
    %2330 = vadd.xlane.f32.xlu0 %v2329
    %v2331 = vpop.xlane.xlu0 %2330
    %v2332 = vsel %vm187, %v2312, 0.0
    %2333 = vadd.xlane.f32.xlu0 %v2332
    %v2334 = vpop.xlane.xlu0 %2333
    %v2335 = vmul.f32 %v2319, %v206
    %v2336 = vmul.f32 %v2322, %v206
    %v2337 = vmul.f32 %v2325, %v206
    %v2338 = vmul.f32 %v2328, %v206
    %v2339 = vmul.f32 %v2331, %v206
    %v2340 = vmul.f32 %v2334, %v206
    %v2341 = vsub.f32 %v2307, %v2335
    %v2342 = vsub.f32 %v2308, %v2336
    %v2343 = vsub.f32 %v2309, %v2337
    %v2344 = vsub.f32 %v2310, %v2338
    %v2345 = vsub.f32 %v2311, %v2339
    %v2346 = vsub.f32 %v2312, %v2340
    %v2347 = vmul.f32 %v2341, %v2341
    %v2348 = vmul.f32 %v2342, %v2342
    %v2349 = vmul.f32 %v2343, %v2343
    %v2350 = vmul.f32 %v2344, %v2344
    %v2351 = vmul.f32 %v2345, %v2345
    %v2352 = vmul.f32 %v2346, %v2346
    %v2353 = vsel %vm187, %v2347, 0.0
    %2354 = vadd.xlane.f32.xlu0 %v2353
    %v2355 = vpop.xlane.xlu0 %2354
    %v2356 = vsel %vm187, %v2348, 0.0
    %2357 = vadd.xlane.f32.xlu0 %v2356
    %v2358 = vpop.xlane.xlu0 %2357
    %v2359 = vsel %vm187, %v2349, 0.0
    %2360 = vadd.xlane.f32.xlu0 %v2359
    %v2361 = vpop.xlane.xlu0 %2360
    %v2362 = vsel %vm187, %v2350, 0.0
    %2363 = vadd.xlane.f32.xlu0 %v2362
    %v2364 = vpop.xlane.xlu0 %2363
    %v2365 = vsel %vm187, %v2351, 0.0
    %2366 = vadd.xlane.f32.xlu0 %v2365
    %v2367 = vpop.xlane.xlu0 %2366
    %v2368 = vsel %vm187, %v2352, 0.0
    %2369 = vadd.xlane.f32.xlu0 %v2368
    %v2370 = vpop.xlane.xlu0 %2369
    %v2371 = vmul.f32 %v2355, %v206
    %v2372 = vmul.f32 %v2358, %v206
    %v2373 = vmul.f32 %v2361, %v206
    %v2374 = vmul.f32 %v2364, %v206
    %v2375 = vmul.f32 %v2367, %v206
    %v2376 = vmul.f32 %v2370, %v206
    %v2377 = vadd.f32 %v2371, 1e-06
    %v2378 = vadd.f32 %v2372, 1e-06
    %v2379 = vadd.f32 %v2373, 1e-06
    %v2380 = vadd.f32 %v2374, 1e-06
    %v2381 = vadd.f32 %v2375, 1e-06
    %v2382 = vadd.f32 %v2376, 1e-06
    %v2383 = vrsqrt.pop %v2377
    %v2384 = vrsqrt.pop %v2378
    %v2385 = vrsqrt.pop %v2379
    %v2386 = vrsqrt.pop %v2380
    %v2387 = vrsqrt.pop %v2381
    %v2388 = vrsqrt.pop %v2382
    %v2389 = vmul.f32 %v2341, %v2383
    %v2390 = vmul.f32 %v2342, %v2384
    %v2391 = vmul.f32 %v2343, %v2385
    %v2392 = vmul.f32 %v2344, %v2386
    %v2393 = vmul.f32 %v2345, %v2387
    %v2394 = vmul.f32 %v2346, %v2388
    %v2396 = vlaneseq
    %v2397 = vshrl.u32 %v2396, 7
    %v2398 = vsub.s32 0, %v2397
    %v2399 = vrot.slane %v2314, %v2398
    %v2401 = vmul.f32 %v2389, %v2399
    %v2402 = vmul.f32 %v2390, %v2399
    %v2403 = vmul.f32 %v2391, %v2399
    %v2404 = vmul.f32 %v2392, %v2399
    %v2405 = vmul.f32 %v2393, %v2399
    %v2406 = vmul.f32 %v2394, %v2399
    %v2408 = vlaneseq
    %v2409 = vshrl.u32 %v2408, 7
    %v2410 = vsub.s32 0, %v2409
    %v2411 = vrot.slane %v2316, %v2410
    %v2413 = vadd.f32 %v2401, %v2411
    %v2414 = vadd.f32 %v2402, %v2411
    %v2415 = vadd.f32 %v2403, %v2411
    %v2416 = vadd.f32 %v2404, %v2411
    %v2417 = vadd.f32 %v2405, %v2411
    %v2418 = vadd.f32 %v2406, %v2411
    %s2419 = scalar_lea.vmem %s6, 16
    %v2420 = vld [vmem:[%s2419] sm:$0xf]
    %v2421 = vld [vmem:[%s2419 + $0x4] sm:$0xf]
    %v2422 = vld [vmem:[%s2419 + $0x8] sm:$0xf]
    %v2423 = vld [vmem:[%s2419 + $0xc] sm:$0xf]
    %s2424 = scalar_lea.vmem %s7, 1
    %v2425 = vld [vmem:[%s2424] sm:$0x1]
    %v2426 = vpack.c.bf16 %v2414, %v2413
    %v2427 = vpack.c.bf16 %v2416, %v2415
    %v2428 = vpack.c.bf16 %v2418, %v2417
    %v2430 = vlaneseq
    %v2431 = vshrl.u32 %v2430, 7
    %v2432 = vsub.s32 0, %v2431
    %v2433 = vrot.slane %v2425, %v2432
    %v2439 = vunpack.c.l.b16 %v2420
    %v2440 = vunpack.c.l.b16 %v2421
    %v2441 = vunpack.c.l.b16 %v2422
    %v2442 = vunpack.c.l.b16 %v2423
    %v2443 = vpack.c.b16 %v2440, %v2439
    %v2444 = vpack.c.b16 %v2442, %v2441
    %v2448 = vsel %vm187, %v2426, 0
    %v2451 = vsel %vm187, %v2427, 0
    %v2454 = vsel %vm187, %v2428, 0
    %2456 = vmatprep.subr.bf16.mxu0 0
    %2457 = vmatpush1.bf16.msra.mxu0 %v2443
    %2458 = vmatprep.subr.bf16.mxu0 0
    %2459 = vmatpush1.bf16.msra.mxu0 %v2444
    %2460 = vmatprep.subr.bf16.mxu0 0
    %2461 = vmatpush1.bf16.msra.mxu0 0
    %2462 = vmatprep.subr.bf16.mxu0 0
    %2463 = vmatpush1.bf16.msra.mxu0 0
    %2464 = vmatprep.subr.bf16.mxu0 0
    %2465 = vmatpush1.bf16.msra.mxu0 0
    %2466 = vmatprep.subr.bf16.mxu0 0
    %2467 = vmatpush1.bf16.msra.mxu0 0
    %2468 = vmatprep.subr.bf16.mxu0 0
    %2469 = vmatpush1.bf16.msra.mxu0 0
    %2470 = vmatprep.subr.bf16.mxu0 0
    %2471 = vmatpush1.bf16.msra.mxu0 0
    %2472 = vmatprep.subr.bf16.mxu0 0
    %2473 = vmatpush1.bf16.msra.mxu0 0
    %2474 = vmatprep.subr.bf16.mxu0 0
    %2475 = vmatpush1.bf16.msra.mxu0 0
    %2476 = vmatprep.subr.bf16.mxu0 0
    %2477 = vmatpush1.bf16.msra.mxu0 0
    %2478 = vmatprep.subr.bf16.mxu0 0
    %2479 = vmatpush1.bf16.msra.mxu0 0
    %2480 = vmatprep.subr.bf16.mxu0 0
    %2481 = vmatpush1.bf16.msra.mxu0 0
    %2482 = vmatprep.subr.bf16.mxu0 0
    %2483 = vmatpush1.bf16.msra.mxu0 0
    %2484 = vmatprep.subr.bf16.mxu0 0
    %2485 = vmatpush1.bf16.msra.mxu0 0
    %2486 = vmatprep.subr.bf16.mxu0 0
    %2487 = vmatpush1.bf16.msra.mxu0 0
    %2488 = vmatprep.mubr.bf16.mxu0 0
    %2489 = vmatmul.mubr.bf16.gmra.mrb[0].mxu0 %v2448
    %v2490 = vpop.f32.mrb[0].mxu0
    %v2491 = vadd.f32 %v2433, %v2490
    %v2492 = vpop.f32.mrb[0].mxu0
    %v2493 = vpop.f32.mrb[0].mxu0
    %v2494 = vadd.f32 %v2433, %v2493
    %v2495 = vpop.f32.mrb[0].mxu0
    %2496 = vmatprep.mubr.bf16.mxu0 0
    %2497 = vmatmul.mubr.bf16.gmra.mrb[0].mxu0 %v2451
    %v2498 = vpop.f32.mrb[0].mxu0
    %v2499 = vadd.f32 %v2433, %v2498
    %v2500 = vpop.f32.mrb[0].mxu0
    %v2501 = vpop.f32.mrb[0].mxu0
    %v2502 = vadd.f32 %v2433, %v2501
    %v2503 = vpop.f32.mrb[0].mxu0
    %2504 = vmatprep.mubr.bf16.mxu0 0
    %2505 = vmatmul.mubr.bf16.gmra.mrb[0].mxu0 %v2454
    %v2506 = vpop.f32.mrb[0].mxu0
    %v2507 = vadd.f32 %v2433, %v2506
    %v2508 = vpop.f32.mrb[0].mxu0
    %v2509 = vpop.f32.mrb[0].mxu0
    %v2510 = vadd.f32 %v2433, %v2509
    %v2511 = vpop.f32.mrb[0].mxu0
    %2512 = vdwg.mxu0
    %v2513 = vpack.c.bf16 %v2494, %v2491
    %v2514 = vpack.c.bf16 %v2499, %v2499
    %v2515 = vpack.c.bf16 %v2507, %v2502
    %v2516 = vpack.c.bf16 %v2510, %v2510
    %2519 = vrot.lane.b32.xlu0 %v2513, 96
    %v2520 = vpop.permute.xlu0 %2519
    %2521 = vrot.lane.b32.xlu0 %v2514, 96
    %v2522 = vpop.permute.xlu0 %2521
    %v2524 = vsel %vm393, %v2513, 0
    %v2527 = vsel %vm393, %v2514, 0
    %v2530 = vsel %vm393, %v2520, 0
    %v2533 = vsel %vm393, %v2522, 0
    %2535 = vmatprep.subr.bf16.mxu0 0
    %2536 = vmatpush1.bf16.xpose.msra.mxu0 %v2530
    %2537 = vmatprep.subr.bf16.mxu0 0
    %2538 = vmatpush1.bf16.xpose.msra.mxu0 %v2533
    %2539 = vmatprep.subr.bf16.mxu0 0
    %2540 = vmatpush1.bf16.xpose.msra.mxu0 0
    %2541 = vmatprep.subr.bf16.mxu0 0
    %2542 = vmatpush1.bf16.xpose.msra.mxu0 0
    %2543 = vmatprep.subr.bf16.mxu0 0
    %2544 = vmatpush1.bf16.xpose.msra.mxu0 0
    %2545 = vmatprep.subr.bf16.mxu0 0
    %2546 = vmatpush1.bf16.xpose.msra.mxu0 0
    %2547 = vmatprep.subr.bf16.mxu0 0
    %2548 = vmatpush1.bf16.xpose.msra.mxu0 0
    %2549 = vmatprep.subr.bf16.mxu0 0
    %2550 = vmatpush1.bf16.xpose.msra.mxu0 0
    %2551 = vmatprep.subr.bf16.mxu0 0
    %2552 = vmatpush1.bf16.xpose.msra.mxu0 0
    %2553 = vmatprep.subr.bf16.mxu0 0
    %2554 = vmatpush1.bf16.xpose.msra.mxu0 0
    %2555 = vmatprep.subr.bf16.mxu0 0
    %2556 = vmatpush1.bf16.xpose.msra.mxu0 0
    %2557 = vmatprep.subr.bf16.mxu0 0
    %2558 = vmatpush1.bf16.xpose.msra.mxu0 0
    %2559 = vmatprep.subr.bf16.mxu0 0
    %2560 = vmatpush1.bf16.xpose.msra.mxu0 0
    %2561 = vmatprep.subr.bf16.mxu0 0
    %2562 = vmatpush1.bf16.xpose.msra.mxu0 0
    %2563 = vmatprep.subr.bf16.mxu0 0
    %2564 = vmatpush1.bf16.xpose.msra.mxu0 0
    %2565 = vmatprep.subr.bf16.mxu0 0
    %2566 = vmatpush1.bf16.xpose.msra.mxu0 0
    %2567 = vmatprep.mubr.bf16.mxu0 0
    %2568 = vmatmul.mubr.bf16.gmra.mrb[0].mxu0 %v2524
    %v2569 = vpop.f32.mrb[0].mxu0
    %v2570 = vadd.f32 0.0, %v2569
    %v2571 = vpop.f32.mrb[0].mxu0
    %v2572 = vpop.f32.mrb[0].mxu0
    %v2573 = vadd.f32 0.0, %v2572
    %v2574 = vpop.f32.mrb[0].mxu0
    %2575 = vmatprep.mubr.bf16.mxu0 0
    %2576 = vmatmul.mubr.bf16.gmra.mrb[0].mxu0 %v2527
    %v2577 = vpop.f32.mrb[0].mxu0
    %v2578 = vadd.f32 0.0, %v2577
    %v2579 = vpop.f32.mrb[0].mxu0
    %v2580 = vpop.f32.mrb[0].mxu0
    %v2581 = vpop.f32.mrb[0].mxu0
    %2582 = vdwg.mxu0
    %2585 = vrot.lane.b32.xlu0 %v2515, 96
    %v2586 = vpop.permute.xlu0 %2585
    %2587 = vrot.lane.b32.xlu0 %v2516, 96
    %v2588 = vpop.permute.xlu0 %2587
    %v2590 = vsel %vm393, %v2515, 0
    %v2593 = vsel %vm393, %v2516, 0
    %v2596 = vsel %vm393, %v2586, 0
    %v2599 = vsel %vm393, %v2588, 0
    %2601 = vmatprep.subr.bf16.mxu0 0
    %2602 = vmatpush1.bf16.xpose.msra.mxu0 %v2596
    %2603 = vmatprep.subr.bf16.mxu0 0
    %2604 = vmatpush1.bf16.xpose.msra.mxu0 %v2599
    %2605 = vmatprep.subr.bf16.mxu0 0
    %2606 = vmatpush1.bf16.xpose.msra.mxu0 0
    %2607 = vmatprep.subr.bf16.mxu0 0
    %2608 = vmatpush1.bf16.xpose.msra.mxu0 0
    %2609 = vmatprep.subr.bf16.mxu0 0
    %2610 = vmatpush1.bf16.xpose.msra.mxu0 0
    %2611 = vmatprep.subr.bf16.mxu0 0
    %2612 = vmatpush1.bf16.xpose.msra.mxu0 0
    %2613 = vmatprep.subr.bf16.mxu0 0
    %2614 = vmatpush1.bf16.xpose.msra.mxu0 0
    %2615 = vmatprep.subr.bf16.mxu0 0
    %2616 = vmatpush1.bf16.xpose.msra.mxu0 0
    %2617 = vmatprep.subr.bf16.mxu0 0
    %2618 = vmatpush1.bf16.xpose.msra.mxu0 0
    %2619 = vmatprep.subr.bf16.mxu0 0
    %2620 = vmatpush1.bf16.xpose.msra.mxu0 0
    %2621 = vmatprep.subr.bf16.mxu0 0
    %2622 = vmatpush1.bf16.xpose.msra.mxu0 0
    %2623 = vmatprep.subr.bf16.mxu0 0
    %2624 = vmatpush1.bf16.xpose.msra.mxu0 0
    %2625 = vmatprep.subr.bf16.mxu0 0
    %2626 = vmatpush1.bf16.xpose.msra.mxu0 0
    %2627 = vmatprep.subr.bf16.mxu0 0
    %2628 = vmatpush1.bf16.xpose.msra.mxu0 0
    %2629 = vmatprep.subr.bf16.mxu0 0
    %2630 = vmatpush1.bf16.xpose.msra.mxu0 0
    %2631 = vmatprep.subr.bf16.mxu0 0
    %2632 = vmatpush1.bf16.xpose.msra.mxu0 0
    %2633 = vmatprep.mubr.bf16.mxu0 0
    %2634 = vmatmul.mubr.bf16.gmra.mrb[0].mxu0 %v2590
    %v2635 = vpop.f32.mrb[0].mxu0
    %v2636 = vadd.f32 0.0, %v2635
    %v2637 = vpop.f32.mrb[0].mxu0
    %v2638 = vpop.f32.mrb[0].mxu0
    %v2639 = vadd.f32 0.0, %v2638
    %v2640 = vpop.f32.mrb[0].mxu0
    %2641 = vmatprep.mubr.bf16.mxu0 0
    %2642 = vmatmul.mubr.bf16.gmra.mrb[0].mxu0 %v2593
    %v2643 = vpop.f32.mrb[0].mxu0
    %v2644 = vadd.f32 0.0, %v2643
    %v2645 = vpop.f32.mrb[0].mxu0
    %v2646 = vpop.f32.mrb[0].mxu0
    %v2647 = vpop.f32.mrb[0].mxu0
    %2648 = vdwg.mxu0
    %v2649 = vmul.f32 %v2570, 0.35355338
    %v2650 = vmul.f32 %v2573, 0.35355338
    %v2651 = vmul.f32 %v2578, 0.35355338
    %v2652 = vmul.f32 %v2636, 0.35355338
    %v2653 = vmul.f32 %v2639, 0.35355338
    %v2654 = vmul.f32 %v2644, 0.35355338
    %v2655 = vadd.f32 %v2649, %v530
    %v2656 = vadd.f32 %v2650, %v530
    %v2657 = vadd.f32 %v2651, %v530
    %v2658 = vadd.f32 %v2652, %v530
    %v2659 = vadd.f32 %v2653, %v530
    %v2660 = vadd.f32 %v2654, %v530
    %v2661 = vsel %vm538, %v2655, -inf
    %2662 = vmax.xlane.f32.xlu0 %v2661
    %v2663 = vpop.xlane.xlu0 %2662
    %v2664 = vsel %vm538, %v2656, -inf
    %2665 = vmax.xlane.f32.xlu0 %v2664
    %v2666 = vpop.xlane.xlu0 %2665
    %v2667 = vsel %vm538, %v2657, -inf
    %2668 = vmax.xlane.f32.xlu0 %v2667
    %v2669 = vpop.xlane.xlu0 %2668
    %v2670 = vsel %vm538, %v2658, -inf
    %2671 = vmax.xlane.f32.xlu0 %v2670
    %v2672 = vpop.xlane.xlu0 %2671
    %v2673 = vsel %vm538, %v2659, -inf
    %2674 = vmax.xlane.f32.xlu0 %v2673
    %v2675 = vpop.xlane.xlu0 %2674
    %v2676 = vsel %vm538, %v2660, -inf
    %2677 = vmax.xlane.f32.xlu0 %v2676
    %v2678 = vpop.xlane.xlu0 %2677
    %v2679 = vsub.f32 %v2655, %v2663
    %v2680 = vsub.f32 %v2656, %v2666
    %v2681 = vsub.f32 %v2657, %v2669
    %v2682 = vsub.f32 %v2658, %v2672
    %v2683 = vsub.f32 %v2659, %v2675
    %v2684 = vsub.f32 %v2660, %v2678
    %v2685 = vmul.f32 %v2679, 1.442695
    %v2686 = vpow.pop %v2685
    %v2687 = vmul.f32 %v2680, 1.442695
    %v2688 = vpow.pop %v2687
    %v2689 = vmul.f32 %v2681, 1.442695
    %v2690 = vpow.pop %v2689
    %v2691 = vmul.f32 %v2682, 1.442695
    %v2692 = vpow.pop %v2691
    %v2693 = vmul.f32 %v2683, 1.442695
    %v2694 = vpow.pop %v2693
    %v2695 = vmul.f32 %v2684, 1.442695
    %v2696 = vpow.pop %v2695
    %v2697 = vsel %vm538, %v2686, 0.0
    %2698 = vadd.xlane.f32.xlu0 %v2697
    %v2699 = vpop.xlane.xlu0 %2698
    %v2700 = vsel %vm538, %v2688, 0.0
    %2701 = vadd.xlane.f32.xlu0 %v2700
    %v2702 = vpop.xlane.xlu0 %2701
    %v2703 = vsel %vm538, %v2690, 0.0
    %2704 = vadd.xlane.f32.xlu0 %v2703
    %v2705 = vpop.xlane.xlu0 %2704
    %v2706 = vsel %vm538, %v2692, 0.0
    %2707 = vadd.xlane.f32.xlu0 %v2706
    %v2708 = vpop.xlane.xlu0 %2707
    %v2709 = vsel %vm538, %v2694, 0.0
    %2710 = vadd.xlane.f32.xlu0 %v2709
    %v2711 = vpop.xlane.xlu0 %2710
    %v2712 = vsel %vm538, %v2696, 0.0
    %2713 = vadd.xlane.f32.xlu0 %v2712
    %v2714 = vpop.xlane.xlu0 %2713
    %v2715 = vrcp.pop %v2699
    %v2716 = vrcp.pop %v2702
    %v2717 = vrcp.pop %v2705
    %v2718 = vrcp.pop %v2708
    %v2719 = vrcp.pop %v2711
    %v2720 = vrcp.pop %v2714
    %v2721 = vmul.f32 %v2686, %v2715
    %v2722 = vmul.f32 %v2688, %v2716
    %v2723 = vmul.f32 %v2690, %v2717
    %v2724 = vmul.f32 %v2692, %v2718
    %v2725 = vmul.f32 %v2694, %v2719
    %v2726 = vmul.f32 %v2696, %v2720
    %v2727 = vpack.c.bf16 %v2722, %v2721
    %v2728 = vpack.c.bf16 %v2723, %v2723
    %v2729 = vpack.c.bf16 %v2725, %v2724
    %v2730 = vpack.c.bf16 %v2726, %v2726
    %2731 = vrot.lane.b32.xlu0 %v2513, 64
    %v2732 = vpop.permute.xlu0 %2731
    %2733 = vrot.lane.b32.xlu0 %v2514, 64
    %v2734 = vpop.permute.xlu0 %2733
    %v2737 = vsel %vm538, %v2727, 0
    %v2740 = vsel %vm538, %v2728, 0
    %v2743 = vsel %vm620, %v2734, 0
    %2745 = vmatprep.subr.bf16.mxu0 0
    %2746 = vmatpush1.bf16.msra.mxu0 %v2732
    %2747 = vmatprep.subr.bf16.mxu0 0
    %2748 = vmatpush1.bf16.msra.mxu0 %v2743
    %2749 = vmatprep.subr.bf16.mxu0 0
    %2750 = vmatpush1.bf16.msra.mxu0 0
    %2751 = vmatprep.subr.bf16.mxu0 0
    %2752 = vmatpush1.bf16.msra.mxu0 0
    %2753 = vmatprep.subr.bf16.mxu0 0
    %2754 = vmatpush1.bf16.msra.mxu0 0
    %2755 = vmatprep.subr.bf16.mxu0 0
    %2756 = vmatpush1.bf16.msra.mxu0 0
    %2757 = vmatprep.subr.bf16.mxu0 0
    %2758 = vmatpush1.bf16.msra.mxu0 0
    %2759 = vmatprep.subr.bf16.mxu0 0
    %2760 = vmatpush1.bf16.msra.mxu0 0
    %2761 = vmatprep.subr.bf16.mxu0 0
    %2762 = vmatpush1.bf16.msra.mxu0 0
    %2763 = vmatprep.subr.bf16.mxu0 0
    %2764 = vmatpush1.bf16.msra.mxu0 0
    %2765 = vmatprep.subr.bf16.mxu0 0
    %2766 = vmatpush1.bf16.msra.mxu0 0
    %2767 = vmatprep.subr.bf16.mxu0 0
    %2768 = vmatpush1.bf16.msra.mxu0 0
    %2769 = vmatprep.subr.bf16.mxu0 0
    %2770 = vmatpush1.bf16.msra.mxu0 0
    %2771 = vmatprep.subr.bf16.mxu0 0
    %2772 = vmatpush1.bf16.msra.mxu0 0
    %2773 = vmatprep.subr.bf16.mxu0 0
    %2774 = vmatpush1.bf16.msra.mxu0 0
    %2775 = vmatprep.subr.bf16.mxu0 0
    %2776 = vmatpush1.bf16.msra.mxu0 0
    %2777 = vmatprep.mubr.bf16.mxu0 0
    %2778 = vmatmul.mubr.bf16.gmra.mrb[0].mxu0 %v2737
    %v2779 = vpop.f32.mrb[0].mxu0
    %v2780 = vadd.f32 0.0, %v2779
    %v2781 = vpop.f32.mrb[0].mxu0
    %v2782 = vpop.f32.mrb[0].mxu0
    %v2783 = vadd.f32 0.0, %v2782
    %v2784 = vpop.f32.mrb[0].mxu0
    %2785 = vmatprep.mubr.bf16.mxu0 0
    %2786 = vmatmul.mubr.bf16.gmra.mrb[0].mxu0 %v2740
    %v2787 = vpop.f32.mrb[0].mxu0
    %v2788 = vadd.f32 0.0, %v2787
    %v2789 = vpop.f32.mrb[0].mxu0
    %v2790 = vpop.f32.mrb[0].mxu0
    %v2791 = vpop.f32.mrb[0].mxu0
    %2792 = vdwg.mxu0
    %2793 = vrot.lane.b32.xlu0 %v2515, 64
    %v2794 = vpop.permute.xlu0 %2793
    %2795 = vrot.lane.b32.xlu0 %v2516, 64
    %v2796 = vpop.permute.xlu0 %2795
    %v2799 = vsel %vm538, %v2729, 0
    %v2802 = vsel %vm538, %v2730, 0
    %v2805 = vsel %vm620, %v2796, 0
    %2807 = vmatprep.subr.bf16.mxu0 0
    %2808 = vmatpush1.bf16.msra.mxu0 %v2794
    %2809 = vmatprep.subr.bf16.mxu0 0
    %2810 = vmatpush1.bf16.msra.mxu0 %v2805
    %2811 = vmatprep.subr.bf16.mxu0 0
    %2812 = vmatpush1.bf16.msra.mxu0 0
    %2813 = vmatprep.subr.bf16.mxu0 0
    %2814 = vmatpush1.bf16.msra.mxu0 0
    %2815 = vmatprep.subr.bf16.mxu0 0
    %2816 = vmatpush1.bf16.msra.mxu0 0
    %2817 = vmatprep.subr.bf16.mxu0 0
    %2818 = vmatpush1.bf16.msra.mxu0 0
    %2819 = vmatprep.subr.bf16.mxu0 0
    %2820 = vmatpush1.bf16.msra.mxu0 0
    %2821 = vmatprep.subr.bf16.mxu0 0
    %2822 = vmatpush1.bf16.msra.mxu0 0
    %2823 = vmatprep.subr.bf16.mxu0 0
    %2824 = vmatpush1.bf16.msra.mxu0 0
    %2825 = vmatprep.subr.bf16.mxu0 0
    %2826 = vmatpush1.bf16.msra.mxu0 0
    %2827 = vmatprep.subr.bf16.mxu0 0
    %2828 = vmatpush1.bf16.msra.mxu0 0
    %2829 = vmatprep.subr.bf16.mxu0 0
    %2830 = vmatpush1.bf16.msra.mxu0 0
    %2831 = vmatprep.subr.bf16.mxu0 0
    %2832 = vmatpush1.bf16.msra.mxu0 0
    %2833 = vmatprep.subr.bf16.mxu0 0
    %2834 = vmatpush1.bf16.msra.mxu0 0
    %2835 = vmatprep.subr.bf16.mxu0 0
    %2836 = vmatpush1.bf16.msra.mxu0 0
    %2837 = vmatprep.subr.bf16.mxu0 0
    %2838 = vmatpush1.bf16.msra.mxu0 0
    %2839 = vmatprep.mubr.bf16.mxu0 0
    %2840 = vmatmul.mubr.bf16.gmra.mrb[0].mxu0 %v2799
    %v2841 = vpop.f32.mrb[0].mxu0
    %v2842 = vadd.f32 0.0, %v2841
    %v2843 = vpop.f32.mrb[0].mxu0
    %v2844 = vpop.f32.mrb[0].mxu0
    %v2845 = vadd.f32 0.0, %v2844
    %v2846 = vpop.f32.mrb[0].mxu0
    %2847 = vmatprep.mubr.bf16.mxu0 0
    %2848 = vmatmul.mubr.bf16.gmra.mrb[0].mxu0 %v2802
    %v2849 = vpop.f32.mrb[0].mxu0
    %v2850 = vadd.f32 0.0, %v2849
    %v2851 = vpop.f32.mrb[0].mxu0
    %v2852 = vpop.f32.mrb[0].mxu0
    %v2853 = vpop.f32.mrb[0].mxu0
    %2854 = vdwg.mxu0
    %2855 = vrot.lane.b32.xlu0 %v2513, 120
    %v2856 = vpop.permute.xlu0 %2855
    %2857 = vrot.lane.b32.xlu0 %v2514, 120
    %v2858 = vpop.permute.xlu0 %2857
    %2859 = vrot.lane.b32.xlu0 %v2513, 88
    %v2860 = vpop.permute.xlu0 %2859
    %2861 = vrot.lane.b32.xlu0 %v2514, 88
    %v2862 = vpop.permute.xlu0 %2861
    %v2864 = vsel %vm393, %v2856, 0
    %v2867 = vsel %vm393, %v2858, 0
    %v2870 = vsel %vm393, %v2860, 0
    %v2873 = vsel %vm393, %v2862, 0
    %2875 = vmatprep.subr.bf16.mxu0 0
    %2876 = vmatpush1.bf16.xpose.msra.mxu0 %v2870
    %2877 = vmatprep.subr.bf16.mxu0 0
    %2878 = vmatpush1.bf16.xpose.msra.mxu0 %v2873
    %2879 = vmatprep.subr.bf16.mxu0 0
    %2880 = vmatpush1.bf16.xpose.msra.mxu0 0
    %2881 = vmatprep.subr.bf16.mxu0 0
    %2882 = vmatpush1.bf16.xpose.msra.mxu0 0
    %2883 = vmatprep.subr.bf16.mxu0 0
    %2884 = vmatpush1.bf16.xpose.msra.mxu0 0
    %2885 = vmatprep.subr.bf16.mxu0 0
    %2886 = vmatpush1.bf16.xpose.msra.mxu0 0
    %2887 = vmatprep.subr.bf16.mxu0 0
    %2888 = vmatpush1.bf16.xpose.msra.mxu0 0
    %2889 = vmatprep.subr.bf16.mxu0 0
    %2890 = vmatpush1.bf16.xpose.msra.mxu0 0
    %2891 = vmatprep.subr.bf16.mxu0 0
    %2892 = vmatpush1.bf16.xpose.msra.mxu0 0
    %2893 = vmatprep.subr.bf16.mxu0 0
    %2894 = vmatpush1.bf16.xpose.msra.mxu0 0
    %2895 = vmatprep.subr.bf16.mxu0 0
    %2896 = vmatpush1.bf16.xpose.msra.mxu0 0
    %2897 = vmatprep.subr.bf16.mxu0 0
    %2898 = vmatpush1.bf16.xpose.msra.mxu0 0
    %2899 = vmatprep.subr.bf16.mxu0 0
    %2900 = vmatpush1.bf16.xpose.msra.mxu0 0
    %2901 = vmatprep.subr.bf16.mxu0 0
    %2902 = vmatpush1.bf16.xpose.msra.mxu0 0
    %2903 = vmatprep.subr.bf16.mxu0 0
    %2904 = vmatpush1.bf16.xpose.msra.mxu0 0
    %2905 = vmatprep.subr.bf16.mxu0 0
    %2906 = vmatpush1.bf16.xpose.msra.mxu0 0
    %2907 = vmatprep.mubr.bf16.mxu0 0
    %2908 = vmatmul.mubr.bf16.gmra.mrb[0].mxu0 %v2864
    %v2909 = vpop.f32.mrb[0].mxu0
    %v2910 = vadd.f32 0.0, %v2909
    %v2911 = vpop.f32.mrb[0].mxu0
    %v2912 = vpop.f32.mrb[0].mxu0
    %v2913 = vadd.f32 0.0, %v2912
    %v2914 = vpop.f32.mrb[0].mxu0
    %2915 = vmatprep.mubr.bf16.mxu0 0
    %2916 = vmatmul.mubr.bf16.gmra.mrb[0].mxu0 %v2867
    %v2917 = vpop.f32.mrb[0].mxu0
    %v2918 = vadd.f32 0.0, %v2917
    %v2919 = vpop.f32.mrb[0].mxu0
    %v2920 = vpop.f32.mrb[0].mxu0
    %v2921 = vpop.f32.mrb[0].mxu0
    %2922 = vdwg.mxu0
    %2923 = vrot.lane.b32.xlu0 %v2515, 120
    %v2924 = vpop.permute.xlu0 %2923
    %2925 = vrot.lane.b32.xlu0 %v2516, 120
    %v2926 = vpop.permute.xlu0 %2925
    %2927 = vrot.lane.b32.xlu0 %v2515, 88
    %v2928 = vpop.permute.xlu0 %2927
    %2929 = vrot.lane.b32.xlu0 %v2516, 88
    %v2930 = vpop.permute.xlu0 %2929
    %v2932 = vsel %vm393, %v2924, 0
    %v2935 = vsel %vm393, %v2926, 0
    %v2938 = vsel %vm393, %v2928, 0
    %v2941 = vsel %vm393, %v2930, 0
    %2943 = vmatprep.subr.bf16.mxu0 0
    %2944 = vmatpush1.bf16.xpose.msra.mxu0 %v2938
    %2945 = vmatprep.subr.bf16.mxu0 0
    %2946 = vmatpush1.bf16.xpose.msra.mxu0 %v2941
    %2947 = vmatprep.subr.bf16.mxu0 0
    %2948 = vmatpush1.bf16.xpose.msra.mxu0 0
    %2949 = vmatprep.subr.bf16.mxu0 0
    %2950 = vmatpush1.bf16.xpose.msra.mxu0 0
    %2951 = vmatprep.subr.bf16.mxu0 0
    %2952 = vmatpush1.bf16.xpose.msra.mxu0 0
    %2953 = vmatprep.subr.bf16.mxu0 0
    %2954 = vmatpush1.bf16.xpose.msra.mxu0 0
    %2955 = vmatprep.subr.bf16.mxu0 0
    %2956 = vmatpush1.bf16.xpose.msra.mxu0 0
    %2957 = vmatprep.subr.bf16.mxu0 0
    %2958 = vmatpush1.bf16.xpose.msra.mxu0 0
    %2959 = vmatprep.subr.bf16.mxu0 0
    %2960 = vmatpush1.bf16.xpose.msra.mxu0 0
    %2961 = vmatprep.subr.bf16.mxu0 0
    %2962 = vmatpush1.bf16.xpose.msra.mxu0 0
    %2963 = vmatprep.subr.bf16.mxu0 0
    %2964 = vmatpush1.bf16.xpose.msra.mxu0 0
    %2965 = vmatprep.subr.bf16.mxu0 0
    %2966 = vmatpush1.bf16.xpose.msra.mxu0 0
    %2967 = vmatprep.subr.bf16.mxu0 0
    %2968 = vmatpush1.bf16.xpose.msra.mxu0 0
    %2969 = vmatprep.subr.bf16.mxu0 0
    %2970 = vmatpush1.bf16.xpose.msra.mxu0 0
    %2971 = vmatprep.subr.bf16.mxu0 0
    %2972 = vmatpush1.bf16.xpose.msra.mxu0 0
    %2973 = vmatprep.subr.bf16.mxu0 0
    %2974 = vmatpush1.bf16.xpose.msra.mxu0 0
    %2975 = vmatprep.mubr.bf16.mxu0 0
    %2976 = vmatmul.mubr.bf16.gmra.mrb[0].mxu0 %v2932
    %v2977 = vpop.f32.mrb[0].mxu0
    %v2978 = vadd.f32 0.0, %v2977
    %v2979 = vpop.f32.mrb[0].mxu0
    %v2980 = vpop.f32.mrb[0].mxu0
    %v2981 = vadd.f32 0.0, %v2980
    %v2982 = vpop.f32.mrb[0].mxu0
    %2983 = vmatprep.mubr.bf16.mxu0 0
    %2984 = vmatmul.mubr.bf16.gmra.mrb[0].mxu0 %v2935
    %v2985 = vpop.f32.mrb[0].mxu0
    %v2986 = vadd.f32 0.0, %v2985
    %v2987 = vpop.f32.mrb[0].mxu0
    %v2988 = vpop.f32.mrb[0].mxu0
    %v2989 = vpop.f32.mrb[0].mxu0
    %2990 = vdwg.mxu0
    %v2991 = vmul.f32 %v2910, 0.35355338
    %v2992 = vmul.f32 %v2913, 0.35355338
    %v2993 = vmul.f32 %v2918, 0.35355338
    %v2994 = vmul.f32 %v2978, 0.35355338
    %v2995 = vmul.f32 %v2981, 0.35355338
    %v2996 = vmul.f32 %v2986, 0.35355338
    %v2997 = vadd.f32 %v2991, %v530
    %v2998 = vadd.f32 %v2992, %v530
    %v2999 = vadd.f32 %v2993, %v530
    %v3000 = vadd.f32 %v2994, %v530
    %v3001 = vadd.f32 %v2995, %v530
    %v3002 = vadd.f32 %v2996, %v530
    %v3003 = vsel %vm538, %v2997, -inf
    %3004 = vmax.xlane.f32.xlu0 %v3003
    %v3005 = vpop.xlane.xlu0 %3004
    %v3006 = vsel %vm538, %v2998, -inf
    %3007 = vmax.xlane.f32.xlu0 %v3006
    %v3008 = vpop.xlane.xlu0 %3007
    %v3009 = vsel %vm538, %v2999, -inf
    %3010 = vmax.xlane.f32.xlu0 %v3009
    %v3011 = vpop.xlane.xlu0 %3010
    %v3012 = vsel %vm538, %v3000, -inf
    %3013 = vmax.xlane.f32.xlu0 %v3012
    %v3014 = vpop.xlane.xlu0 %3013
    %v3015 = vsel %vm538, %v3001, -inf
    %3016 = vmax.xlane.f32.xlu0 %v3015
    %v3017 = vpop.xlane.xlu0 %3016
    %v3018 = vsel %vm538, %v3002, -inf
    %3019 = vmax.xlane.f32.xlu0 %v3018
    %v3020 = vpop.xlane.xlu0 %3019
    %v3021 = vsub.f32 %v2997, %v3005
    %v3022 = vsub.f32 %v2998, %v3008
    %v3023 = vsub.f32 %v2999, %v3011
    %v3024 = vsub.f32 %v3000, %v3014
    %v3025 = vsub.f32 %v3001, %v3017
    %v3026 = vsub.f32 %v3002, %v3020
    %v3027 = vmul.f32 %v3021, 1.442695
    %v3028 = vpow.pop %v3027
    %v3029 = vmul.f32 %v3022, 1.442695
    %v3030 = vpow.pop %v3029
    %v3031 = vmul.f32 %v3023, 1.442695
    %v3032 = vpow.pop %v3031
    %v3033 = vmul.f32 %v3024, 1.442695
    %v3034 = vpow.pop %v3033
    %v3035 = vmul.f32 %v3025, 1.442695
    %v3036 = vpow.pop %v3035
    %v3037 = vmul.f32 %v3026, 1.442695
    %v3038 = vpow.pop %v3037
    %v3039 = vsel %vm538, %v3028, 0.0
    %3040 = vadd.xlane.f32.xlu0 %v3039
    %v3041 = vpop.xlane.xlu0 %3040
    %v3042 = vsel %vm538, %v3030, 0.0
    %3043 = vadd.xlane.f32.xlu0 %v3042
    %v3044 = vpop.xlane.xlu0 %3043
    %v3045 = vsel %vm538, %v3032, 0.0
    %3046 = vadd.xlane.f32.xlu0 %v3045
    %v3047 = vpop.xlane.xlu0 %3046
    %v3048 = vsel %vm538, %v3034, 0.0
    %3049 = vadd.xlane.f32.xlu0 %v3048
    %v3050 = vpop.xlane.xlu0 %3049
    %v3051 = vsel %vm538, %v3036, 0.0
    %3052 = vadd.xlane.f32.xlu0 %v3051
    %v3053 = vpop.xlane.xlu0 %3052
    %v3054 = vsel %vm538, %v3038, 0.0
    %3055 = vadd.xlane.f32.xlu0 %v3054
    %v3056 = vpop.xlane.xlu0 %3055
    %v3057 = vrcp.pop %v3041
    %v3058 = vrcp.pop %v3044
    %v3059 = vrcp.pop %v3047
    %v3060 = vrcp.pop %v3050
    %v3061 = vrcp.pop %v3053
    %v3062 = vrcp.pop %v3056
    %v3063 = vmul.f32 %v3028, %v3057
    %v3064 = vmul.f32 %v3030, %v3058
    %v3065 = vmul.f32 %v3032, %v3059
    %v3066 = vmul.f32 %v3034, %v3060
    %v3067 = vmul.f32 %v3036, %v3061
    %v3068 = vmul.f32 %v3038, %v3062
    %v3069 = vpack.c.bf16 %v3064, %v3063
    %v3070 = vpack.c.bf16 %v3065, %v3065
    %v3071 = vpack.c.bf16 %v3067, %v3066
    %v3072 = vpack.c.bf16 %v3068, %v3068
    %3073 = vrot.lane.b32.xlu0 %v2513, 56
    %v3074 = vpop.permute.xlu0 %3073
    %3075 = vrot.lane.b32.xlu0 %v2514, 56
    %v3076 = vpop.permute.xlu0 %3075
    %v3079 = vsel %vm538, %v3069, 0
    %v3082 = vsel %vm538, %v3070, 0
    %v3085 = vsel %vm620, %v3076, 0
    %3087 = vmatprep.subr.bf16.mxu0 0
    %3088 = vmatpush1.bf16.msra.mxu0 %v3074
    %3089 = vmatprep.subr.bf16.mxu0 0
    %3090 = vmatpush1.bf16.msra.mxu0 %v3085
    %3091 = vmatprep.subr.bf16.mxu0 0
    %3092 = vmatpush1.bf16.msra.mxu0 0
    %3093 = vmatprep.subr.bf16.mxu0 0
    %3094 = vmatpush1.bf16.msra.mxu0 0
    %3095 = vmatprep.subr.bf16.mxu0 0
    %3096 = vmatpush1.bf16.msra.mxu0 0
    %3097 = vmatprep.subr.bf16.mxu0 0
    %3098 = vmatpush1.bf16.msra.mxu0 0
    %3099 = vmatprep.subr.bf16.mxu0 0
    %3100 = vmatpush1.bf16.msra.mxu0 0
    %3101 = vmatprep.subr.bf16.mxu0 0
    %3102 = vmatpush1.bf16.msra.mxu0 0
    %3103 = vmatprep.subr.bf16.mxu0 0
    %3104 = vmatpush1.bf16.msra.mxu0 0
    %3105 = vmatprep.subr.bf16.mxu0 0
    %3106 = vmatpush1.bf16.msra.mxu0 0
    %3107 = vmatprep.subr.bf16.mxu0 0
    %3108 = vmatpush1.bf16.msra.mxu0 0
    %3109 = vmatprep.subr.bf16.mxu0 0
    %3110 = vmatpush1.bf16.msra.mxu0 0
    %3111 = vmatprep.subr.bf16.mxu0 0
    %3112 = vmatpush1.bf16.msra.mxu0 0
    %3113 = vmatprep.subr.bf16.mxu0 0
    %3114 = vmatpush1.bf16.msra.mxu0 0
    %3115 = vmatprep.subr.bf16.mxu0 0
    %3116 = vmatpush1.bf16.msra.mxu0 0
    %3117 = vmatprep.subr.bf16.mxu0 0
    %3118 = vmatpush1.bf16.msra.mxu0 0
    %3119 = vmatprep.mubr.bf16.mxu0 0
    %3120 = vmatmul.mubr.bf16.gmra.mrb[0].mxu0 %v3079
    %v3121 = vpop.f32.mrb[0].mxu0
    %v3122 = vadd.f32 0.0, %v3121
    %v3123 = vpop.f32.mrb[0].mxu0
    %v3124 = vpop.f32.mrb[0].mxu0
    %v3125 = vadd.f32 0.0, %v3124
    %v3126 = vpop.f32.mrb[0].mxu0
    %3127 = vmatprep.mubr.bf16.mxu0 0
    %3128 = vmatmul.mubr.bf16.gmra.mrb[0].mxu0 %v3082
    %v3129 = vpop.f32.mrb[0].mxu0
    %v3130 = vadd.f32 0.0, %v3129
    %v3131 = vpop.f32.mrb[0].mxu0
    %v3132 = vpop.f32.mrb[0].mxu0
    %v3133 = vpop.f32.mrb[0].mxu0
    %3134 = vdwg.mxu0
    %3135 = vrot.lane.b32.xlu0 %v2515, 56
    %v3136 = vpop.permute.xlu0 %3135
    %3137 = vrot.lane.b32.xlu0 %v2516, 56
    %v3138 = vpop.permute.xlu0 %3137
    %v3141 = vsel %vm538, %v3071, 0
    %v3144 = vsel %vm538, %v3072, 0
    %v3147 = vsel %vm620, %v3138, 0
    %3149 = vmatprep.subr.bf16.mxu0 0
    %3150 = vmatpush1.bf16.msra.mxu0 %v3136
    %3151 = vmatprep.subr.bf16.mxu0 0
    %3152 = vmatpush1.bf16.msra.mxu0 %v3147
    %3153 = vmatprep.subr.bf16.mxu0 0
    %3154 = vmatpush1.bf16.msra.mxu0 0
    %3155 = vmatprep.subr.bf16.mxu0 0
    %3156 = vmatpush1.bf16.msra.mxu0 0
    %3157 = vmatprep.subr.bf16.mxu0 0
    %3158 = vmatpush1.bf16.msra.mxu0 0
    %3159 = vmatprep.subr.bf16.mxu0 0
    %3160 = vmatpush1.bf16.msra.mxu0 0
    %3161 = vmatprep.subr.bf16.mxu0 0
    %3162 = vmatpush1.bf16.msra.mxu0 0
    %3163 = vmatprep.subr.bf16.mxu0 0
    %3164 = vmatpush1.bf16.msra.mxu0 0
    %3165 = vmatprep.subr.bf16.mxu0 0
    %3166 = vmatpush1.bf16.msra.mxu0 0
    %3167 = vmatprep.subr.bf16.mxu0 0
    %3168 = vmatpush1.bf16.msra.mxu0 0
    %3169 = vmatprep.subr.bf16.mxu0 0
    %3170 = vmatpush1.bf16.msra.mxu0 0
    %3171 = vmatprep.subr.bf16.mxu0 0
    %3172 = vmatpush1.bf16.msra.mxu0 0
    %3173 = vmatprep.subr.bf16.mxu0 0
    %3174 = vmatpush1.bf16.msra.mxu0 0
    %3175 = vmatprep.subr.bf16.mxu0 0
    %3176 = vmatpush1.bf16.msra.mxu0 0
    %3177 = vmatprep.subr.bf16.mxu0 0
    %3178 = vmatpush1.bf16.msra.mxu0 0
    %3179 = vmatprep.subr.bf16.mxu0 0
    %3180 = vmatpush1.bf16.msra.mxu0 0
    %3181 = vmatprep.mubr.bf16.mxu0 0
    %3182 = vmatmul.mubr.bf16.gmra.mrb[0].mxu0 %v3141
    %v3183 = vpop.f32.mrb[0].mxu0
    %v3184 = vadd.f32 0.0, %v3183
    %v3185 = vpop.f32.mrb[0].mxu0
    %v3186 = vpop.f32.mrb[0].mxu0
    %v3187 = vadd.f32 0.0, %v3186
    %v3188 = vpop.f32.mrb[0].mxu0
    %3189 = vmatprep.mubr.bf16.mxu0 0
    %3190 = vmatmul.mubr.bf16.gmra.mrb[0].mxu0 %v3144
    %v3191 = vpop.f32.mrb[0].mxu0
    %v3192 = vadd.f32 0.0, %v3191
    %v3193 = vpop.f32.mrb[0].mxu0
    %v3194 = vpop.f32.mrb[0].mxu0
    %v3195 = vpop.f32.mrb[0].mxu0
    %3196 = vdwg.mxu0
    %3197 = vrot.lane.b32.xlu0 %v2513, 112
    %v3198 = vpop.permute.xlu0 %3197
    %3199 = vrot.lane.b32.xlu0 %v2514, 112
    %v3200 = vpop.permute.xlu0 %3199
    %3201 = vrot.lane.b32.xlu0 %v2513, 80
    %v3202 = vpop.permute.xlu0 %3201
    %3203 = vrot.lane.b32.xlu0 %v2514, 80
    %v3204 = vpop.permute.xlu0 %3203
    %v3206 = vsel %vm393, %v3198, 0
    %v3209 = vsel %vm393, %v3200, 0
    %v3212 = vsel %vm393, %v3202, 0
    %v3215 = vsel %vm393, %v3204, 0
    %3217 = vmatprep.subr.bf16.mxu0 0
    %3218 = vmatpush1.bf16.xpose.msra.mxu0 %v3212
    %3219 = vmatprep.subr.bf16.mxu0 0
    %3220 = vmatpush1.bf16.xpose.msra.mxu0 %v3215
    %3221 = vmatprep.subr.bf16.mxu0 0
    %3222 = vmatpush1.bf16.xpose.msra.mxu0 0
    %3223 = vmatprep.subr.bf16.mxu0 0
    %3224 = vmatpush1.bf16.xpose.msra.mxu0 0
    %3225 = vmatprep.subr.bf16.mxu0 0
    %3226 = vmatpush1.bf16.xpose.msra.mxu0 0
    %3227 = vmatprep.subr.bf16.mxu0 0
    %3228 = vmatpush1.bf16.xpose.msra.mxu0 0
    %3229 = vmatprep.subr.bf16.mxu0 0
    %3230 = vmatpush1.bf16.xpose.msra.mxu0 0
    %3231 = vmatprep.subr.bf16.mxu0 0
    %3232 = vmatpush1.bf16.xpose.msra.mxu0 0
    %3233 = vmatprep.subr.bf16.mxu0 0
    %3234 = vmatpush1.bf16.xpose.msra.mxu0 0
    %3235 = vmatprep.subr.bf16.mxu0 0
    %3236 = vmatpush1.bf16.xpose.msra.mxu0 0
    %3237 = vmatprep.subr.bf16.mxu0 0
    %3238 = vmatpush1.bf16.xpose.msra.mxu0 0
    %3239 = vmatprep.subr.bf16.mxu0 0
    %3240 = vmatpush1.bf16.xpose.msra.mxu0 0
    %3241 = vmatprep.subr.bf16.mxu0 0
    %3242 = vmatpush1.bf16.xpose.msra.mxu0 0
    %3243 = vmatprep.subr.bf16.mxu0 0
    %3244 = vmatpush1.bf16.xpose.msra.mxu0 0
    %3245 = vmatprep.subr.bf16.mxu0 0
    %3246 = vmatpush1.bf16.xpose.msra.mxu0 0
    %3247 = vmatprep.subr.bf16.mxu0 0
    %3248 = vmatpush1.bf16.xpose.msra.mxu0 0
    %3249 = vmatprep.mubr.bf16.mxu0 0
    %3250 = vmatmul.mubr.bf16.gmra.mrb[0].mxu0 %v3206
    %v3251 = vpop.f32.mrb[0].mxu0
    %v3252 = vadd.f32 0.0, %v3251
    %v3253 = vpop.f32.mrb[0].mxu0
    %v3254 = vpop.f32.mrb[0].mxu0
    %v3255 = vadd.f32 0.0, %v3254
    %v3256 = vpop.f32.mrb[0].mxu0
    %3257 = vmatprep.mubr.bf16.mxu0 0
    %3258 = vmatmul.mubr.bf16.gmra.mrb[0].mxu0 %v3209
    %v3259 = vpop.f32.mrb[0].mxu0
    %v3260 = vadd.f32 0.0, %v3259
    %v3261 = vpop.f32.mrb[0].mxu0
    %v3262 = vpop.f32.mrb[0].mxu0
    %v3263 = vpop.f32.mrb[0].mxu0
    %3264 = vdwg.mxu0
    %3265 = vrot.lane.b32.xlu0 %v2515, 112
    %v3266 = vpop.permute.xlu0 %3265
    %3267 = vrot.lane.b32.xlu0 %v2516, 112
    %v3268 = vpop.permute.xlu0 %3267
    %3269 = vrot.lane.b32.xlu0 %v2515, 80
    %v3270 = vpop.permute.xlu0 %3269
    %3271 = vrot.lane.b32.xlu0 %v2516, 80
    %v3272 = vpop.permute.xlu0 %3271
    %v3274 = vsel %vm393, %v3266, 0
    %v3277 = vsel %vm393, %v3268, 0
    %v3280 = vsel %vm393, %v3270, 0
    %v3283 = vsel %vm393, %v3272, 0
    %3285 = vmatprep.subr.bf16.mxu0 0
    %3286 = vmatpush1.bf16.xpose.msra.mxu0 %v3280
    %3287 = vmatprep.subr.bf16.mxu0 0
    %3288 = vmatpush1.bf16.xpose.msra.mxu0 %v3283
    %3289 = vmatprep.subr.bf16.mxu0 0
    %3290 = vmatpush1.bf16.xpose.msra.mxu0 0
    %3291 = vmatprep.subr.bf16.mxu0 0
    %3292 = vmatpush1.bf16.xpose.msra.mxu0 0
    %3293 = vmatprep.subr.bf16.mxu0 0
    %3294 = vmatpush1.bf16.xpose.msra.mxu0 0
    %3295 = vmatprep.subr.bf16.mxu0 0
    %3296 = vmatpush1.bf16.xpose.msra.mxu0 0
    %3297 = vmatprep.subr.bf16.mxu0 0
    %3298 = vmatpush1.bf16.xpose.msra.mxu0 0
    %3299 = vmatprep.subr.bf16.mxu0 0
    %3300 = vmatpush1.bf16.xpose.msra.mxu0 0
    %3301 = vmatprep.subr.bf16.mxu0 0
    %3302 = vmatpush1.bf16.xpose.msra.mxu0 0
    %3303 = vmatprep.subr.bf16.mxu0 0
    %3304 = vmatpush1.bf16.xpose.msra.mxu0 0
    %3305 = vmatprep.subr.bf16.mxu0 0
    %3306 = vmatpush1.bf16.xpose.msra.mxu0 0
    %3307 = vmatprep.subr.bf16.mxu0 0
    %3308 = vmatpush1.bf16.xpose.msra.mxu0 0
    %3309 = vmatprep.subr.bf16.mxu0 0
    %3310 = vmatpush1.bf16.xpose.msra.mxu0 0
    %3311 = vmatprep.subr.bf16.mxu0 0
    %3312 = vmatpush1.bf16.xpose.msra.mxu0 0
    %3313 = vmatprep.subr.bf16.mxu0 0
    %3314 = vmatpush1.bf16.xpose.msra.mxu0 0
    %3315 = vmatprep.subr.bf16.mxu0 0
    %3316 = vmatpush1.bf16.xpose.msra.mxu0 0
    %3317 = vmatprep.mubr.bf16.mxu0 0
    %3318 = vmatmul.mubr.bf16.gmra.mrb[0].mxu0 %v3274
    %v3319 = vpop.f32.mrb[0].mxu0
    %v3320 = vadd.f32 0.0, %v3319
    %v3321 = vpop.f32.mrb[0].mxu0
    %v3322 = vpop.f32.mrb[0].mxu0
    %v3323 = vadd.f32 0.0, %v3322
    %v3324 = vpop.f32.mrb[0].mxu0
    %3325 = vmatprep.mubr.bf16.mxu0 0
    %3326 = vmatmul.mubr.bf16.gmra.mrb[0].mxu0 %v3277
    %v3327 = vpop.f32.mrb[0].mxu0
    %v3328 = vadd.f32 0.0, %v3327
    %v3329 = vpop.f32.mrb[0].mxu0
    %v3330 = vpop.f32.mrb[0].mxu0
    %v3331 = vpop.f32.mrb[0].mxu0
    %3332 = vdwg.mxu0
    %v3333 = vmul.f32 %v3252, 0.35355338
    %v3334 = vmul.f32 %v3255, 0.35355338
    %v3335 = vmul.f32 %v3260, 0.35355338
    %v3336 = vmul.f32 %v3320, 0.35355338
    %v3337 = vmul.f32 %v3323, 0.35355338
    %v3338 = vmul.f32 %v3328, 0.35355338
    %v3339 = vadd.f32 %v3333, %v530
    %v3340 = vadd.f32 %v3334, %v530
    %v3341 = vadd.f32 %v3335, %v530
    %v3342 = vadd.f32 %v3336, %v530
    %v3343 = vadd.f32 %v3337, %v530
    %v3344 = vadd.f32 %v3338, %v530
    %v3345 = vsel %vm538, %v3339, -inf
    %3346 = vmax.xlane.f32.xlu0 %v3345
    %v3347 = vpop.xlane.xlu0 %3346
    %v3348 = vsel %vm538, %v3340, -inf
    %3349 = vmax.xlane.f32.xlu0 %v3348
    %v3350 = vpop.xlane.xlu0 %3349
    %v3351 = vsel %vm538, %v3341, -inf
    %3352 = vmax.xlane.f32.xlu0 %v3351
    %v3353 = vpop.xlane.xlu0 %3352
    %v3354 = vsel %vm538, %v3342, -inf
    %3355 = vmax.xlane.f32.xlu0 %v3354
    %v3356 = vpop.xlane.xlu0 %3355
    %v3357 = vsel %vm538, %v3343, -inf
    %3358 = vmax.xlane.f32.xlu0 %v3357
    %v3359 = vpop.xlane.xlu0 %3358
    %v3360 = vsel %vm538, %v3344, -inf
    %3361 = vmax.xlane.f32.xlu0 %v3360
    %v3362 = vpop.xlane.xlu0 %3361
    %v3363 = vsub.f32 %v3339, %v3347
    %v3364 = vsub.f32 %v3340, %v3350
    %v3365 = vsub.f32 %v3341, %v3353
    %v3366 = vsub.f32 %v3342, %v3356
    %v3367 = vsub.f32 %v3343, %v3359
    %v3368 = vsub.f32 %v3344, %v3362
    %v3369 = vmul.f32 %v3363, 1.442695
    %v3370 = vpow.pop %v3369
    %v3371 = vmul.f32 %v3364, 1.442695
    %v3372 = vpow.pop %v3371
    %v3373 = vmul.f32 %v3365, 1.442695
    %v3374 = vpow.pop %v3373
    %v3375 = vmul.f32 %v3366, 1.442695
    %v3376 = vpow.pop %v3375
    %v3377 = vmul.f32 %v3367, 1.442695
    %v3378 = vpow.pop %v3377
    %v3379 = vmul.f32 %v3368, 1.442695
    %v3380 = vpow.pop %v3379
    %v3381 = vsel %vm538, %v3370, 0.0
    %3382 = vadd.xlane.f32.xlu0 %v3381
    %v3383 = vpop.xlane.xlu0 %3382
    %v3384 = vsel %vm538, %v3372, 0.0
    %3385 = vadd.xlane.f32.xlu0 %v3384
    %v3386 = vpop.xlane.xlu0 %3385
    %v3387 = vsel %vm538, %v3374, 0.0
    %3388 = vadd.xlane.f32.xlu0 %v3387
    %v3389 = vpop.xlane.xlu0 %3388
    %v3390 = vsel %vm538, %v3376, 0.0
    %3391 = vadd.xlane.f32.xlu0 %v3390
    %v3392 = vpop.xlane.xlu0 %3391
    %v3393 = vsel %vm538, %v3378, 0.0
    %3394 = vadd.xlane.f32.xlu0 %v3393
    %v3395 = vpop.xlane.xlu0 %3394
    %v3396 = vsel %vm538, %v3380, 0.0
    %3397 = vadd.xlane.f32.xlu0 %v3396
    %v3398 = vpop.xlane.xlu0 %3397
    %v3399 = vrcp.pop %v3383
    %v3400 = vrcp.pop %v3386
    %v3401 = vrcp.pop %v3389
    %v3402 = vrcp.pop %v3392
    %v3403 = vrcp.pop %v3395
    %v3404 = vrcp.pop %v3398
    %v3405 = vmul.f32 %v3370, %v3399
    %v3406 = vmul.f32 %v3372, %v3400
    %v3407 = vmul.f32 %v3374, %v3401
    %v3408 = vmul.f32 %v3376, %v3402
    %v3409 = vmul.f32 %v3378, %v3403
    %v3410 = vmul.f32 %v3380, %v3404
    %v3411 = vpack.c.bf16 %v3406, %v3405
    %v3412 = vpack.c.bf16 %v3407, %v3407
    %v3413 = vpack.c.bf16 %v3409, %v3408
    %v3414 = vpack.c.bf16 %v3410, %v3410
    %3415 = vrot.lane.b32.xlu0 %v2513, 48
    %v3416 = vpop.permute.xlu0 %3415
    %3417 = vrot.lane.b32.xlu0 %v2514, 48
    %v3418 = vpop.permute.xlu0 %3417
    %v3421 = vsel %vm538, %v3411, 0
    %v3424 = vsel %vm538, %v3412, 0
    %v3427 = vsel %vm620, %v3418, 0
    %3429 = vmatprep.subr.bf16.mxu0 0
    %3430 = vmatpush1.bf16.msra.mxu0 %v3416
    %3431 = vmatprep.subr.bf16.mxu0 0
    %3432 = vmatpush1.bf16.msra.mxu0 %v3427
    %3433 = vmatprep.subr.bf16.mxu0 0
    %3434 = vmatpush1.bf16.msra.mxu0 0
    %3435 = vmatprep.subr.bf16.mxu0 0
    %3436 = vmatpush1.bf16.msra.mxu0 0
    %3437 = vmatprep.subr.bf16.mxu0 0
    %3438 = vmatpush1.bf16.msra.mxu0 0
    %3439 = vmatprep.subr.bf16.mxu0 0
    %3440 = vmatpush1.bf16.msra.mxu0 0
    %3441 = vmatprep.subr.bf16.mxu0 0
    %3442 = vmatpush1.bf16.msra.mxu0 0
    %3443 = vmatprep.subr.bf16.mxu0 0
    %3444 = vmatpush1.bf16.msra.mxu0 0
    %3445 = vmatprep.subr.bf16.mxu0 0
    %3446 = vmatpush1.bf16.msra.mxu0 0
    %3447 = vmatprep.subr.bf16.mxu0 0
    %3448 = vmatpush1.bf16.msra.mxu0 0
    %3449 = vmatprep.subr.bf16.mxu0 0
    %3450 = vmatpush1.bf16.msra.mxu0 0
    %3451 = vmatprep.subr.bf16.mxu0 0
    %3452 = vmatpush1.bf16.msra.mxu0 0
    %3453 = vmatprep.subr.bf16.mxu0 0
    %3454 = vmatpush1.bf16.msra.mxu0 0
    %3455 = vmatprep.subr.bf16.mxu0 0
    %3456 = vmatpush1.bf16.msra.mxu0 0
    %3457 = vmatprep.subr.bf16.mxu0 0
    %3458 = vmatpush1.bf16.msra.mxu0 0
    %3459 = vmatprep.subr.bf16.mxu0 0
    %3460 = vmatpush1.bf16.msra.mxu0 0
    %3461 = vmatprep.mubr.bf16.mxu0 0
    %3462 = vmatmul.mubr.bf16.gmra.mrb[0].mxu0 %v3421
    %v3463 = vpop.f32.mrb[0].mxu0
    %v3464 = vadd.f32 0.0, %v3463
    %v3465 = vpop.f32.mrb[0].mxu0
    %v3466 = vpop.f32.mrb[0].mxu0
    %v3467 = vadd.f32 0.0, %v3466
    %v3468 = vpop.f32.mrb[0].mxu0
    %3469 = vmatprep.mubr.bf16.mxu0 0
    %3470 = vmatmul.mubr.bf16.gmra.mrb[0].mxu0 %v3424
    %v3471 = vpop.f32.mrb[0].mxu0
    %v3472 = vadd.f32 0.0, %v3471
    %v3473 = vpop.f32.mrb[0].mxu0
    %v3474 = vpop.f32.mrb[0].mxu0
    %v3475 = vpop.f32.mrb[0].mxu0
    %3476 = vdwg.mxu0
    %3477 = vrot.lane.b32.xlu0 %v2515, 48
    %v3478 = vpop.permute.xlu0 %3477
    %3479 = vrot.lane.b32.xlu0 %v2516, 48
    %v3480 = vpop.permute.xlu0 %3479
    %v3483 = vsel %vm538, %v3413, 0
    %v3486 = vsel %vm538, %v3414, 0
    %v3489 = vsel %vm620, %v3480, 0
    %3491 = vmatprep.subr.bf16.mxu0 0
    %3492 = vmatpush1.bf16.msra.mxu0 %v3478
    %3493 = vmatprep.subr.bf16.mxu0 0
    %3494 = vmatpush1.bf16.msra.mxu0 %v3489
    %3495 = vmatprep.subr.bf16.mxu0 0
    %3496 = vmatpush1.bf16.msra.mxu0 0
    %3497 = vmatprep.subr.bf16.mxu0 0
    %3498 = vmatpush1.bf16.msra.mxu0 0
    %3499 = vmatprep.subr.bf16.mxu0 0
    %3500 = vmatpush1.bf16.msra.mxu0 0
    %3501 = vmatprep.subr.bf16.mxu0 0
    %3502 = vmatpush1.bf16.msra.mxu0 0
    %3503 = vmatprep.subr.bf16.mxu0 0
    %3504 = vmatpush1.bf16.msra.mxu0 0
    %3505 = vmatprep.subr.bf16.mxu0 0
    %3506 = vmatpush1.bf16.msra.mxu0 0
    %3507 = vmatprep.subr.bf16.mxu0 0
    %3508 = vmatpush1.bf16.msra.mxu0 0
    %3509 = vmatprep.subr.bf16.mxu0 0
    %3510 = vmatpush1.bf16.msra.mxu0 0
    %3511 = vmatprep.subr.bf16.mxu0 0
    %3512 = vmatpush1.bf16.msra.mxu0 0
    %3513 = vmatprep.subr.bf16.mxu0 0
    %3514 = vmatpush1.bf16.msra.mxu0 0
    %3515 = vmatprep.subr.bf16.mxu0 0
    %3516 = vmatpush1.bf16.msra.mxu0 0
    %3517 = vmatprep.subr.bf16.mxu0 0
    %3518 = vmatpush1.bf16.msra.mxu0 0
    %3519 = vmatprep.subr.bf16.mxu0 0
    %3520 = vmatpush1.bf16.msra.mxu0 0
    %3521 = vmatprep.subr.bf16.mxu0 0
    %3522 = vmatpush1.bf16.msra.mxu0 0
    %3523 = vmatprep.mubr.bf16.mxu0 0
    %3524 = vmatmul.mubr.bf16.gmra.mrb[0].mxu0 %v3483
    %v3525 = vpop.f32.mrb[0].mxu0
    %v3526 = vadd.f32 0.0, %v3525
    %v3527 = vpop.f32.mrb[0].mxu0
    %v3528 = vpop.f32.mrb[0].mxu0
    %v3529 = vadd.f32 0.0, %v3528
    %v3530 = vpop.f32.mrb[0].mxu0
    %3531 = vmatprep.mubr.bf16.mxu0 0
    %3532 = vmatmul.mubr.bf16.gmra.mrb[0].mxu0 %v3486
    %v3533 = vpop.f32.mrb[0].mxu0
    %v3534 = vadd.f32 0.0, %v3533
    %v3535 = vpop.f32.mrb[0].mxu0
    %v3536 = vpop.f32.mrb[0].mxu0
    %v3537 = vpop.f32.mrb[0].mxu0
    %3538 = vdwg.mxu0
    %3539 = vrot.lane.b32.xlu0 %v2513, 104
    %v3540 = vpop.permute.xlu0 %3539
    %3541 = vrot.lane.b32.xlu0 %v2514, 104
    %v3542 = vpop.permute.xlu0 %3541
    %3543 = vrot.lane.b32.xlu0 %v2513, 72
    %v3544 = vpop.permute.xlu0 %3543
    %3545 = vrot.lane.b32.xlu0 %v2514, 72
    %v3546 = vpop.permute.xlu0 %3545
    %v3548 = vsel %vm393, %v3540, 0
    %v3551 = vsel %vm393, %v3542, 0
    %v3554 = vsel %vm393, %v3544, 0
    %v3557 = vsel %vm393, %v3546, 0
    %3559 = vmatprep.subr.bf16.mxu0 0
    %3560 = vmatpush1.bf16.xpose.msra.mxu0 %v3554
    %3561 = vmatprep.subr.bf16.mxu0 0
    %3562 = vmatpush1.bf16.xpose.msra.mxu0 %v3557
    %3563 = vmatprep.subr.bf16.mxu0 0
    %3564 = vmatpush1.bf16.xpose.msra.mxu0 0
    %3565 = vmatprep.subr.bf16.mxu0 0
    %3566 = vmatpush1.bf16.xpose.msra.mxu0 0
    %3567 = vmatprep.subr.bf16.mxu0 0
    %3568 = vmatpush1.bf16.xpose.msra.mxu0 0
    %3569 = vmatprep.subr.bf16.mxu0 0
    %3570 = vmatpush1.bf16.xpose.msra.mxu0 0
    %3571 = vmatprep.subr.bf16.mxu0 0
    %3572 = vmatpush1.bf16.xpose.msra.mxu0 0
    %3573 = vmatprep.subr.bf16.mxu0 0
    %3574 = vmatpush1.bf16.xpose.msra.mxu0 0
    %3575 = vmatprep.subr.bf16.mxu0 0
    %3576 = vmatpush1.bf16.xpose.msra.mxu0 0
    %3577 = vmatprep.subr.bf16.mxu0 0
    %3578 = vmatpush1.bf16.xpose.msra.mxu0 0
    %3579 = vmatprep.subr.bf16.mxu0 0
    %3580 = vmatpush1.bf16.xpose.msra.mxu0 0
    %3581 = vmatprep.subr.bf16.mxu0 0
    %3582 = vmatpush1.bf16.xpose.msra.mxu0 0
    %3583 = vmatprep.subr.bf16.mxu0 0
    %3584 = vmatpush1.bf16.xpose.msra.mxu0 0
    %3585 = vmatprep.subr.bf16.mxu0 0
    %3586 = vmatpush1.bf16.xpose.msra.mxu0 0
    %3587 = vmatprep.subr.bf16.mxu0 0
    %3588 = vmatpush1.bf16.xpose.msra.mxu0 0
    %3589 = vmatprep.subr.bf16.mxu0 0
    %3590 = vmatpush1.bf16.xpose.msra.mxu0 0
    %3591 = vmatprep.mubr.bf16.mxu0 0
    %3592 = vmatmul.mubr.bf16.gmra.mrb[0].mxu0 %v3548
    %v3593 = vpop.f32.mrb[0].mxu0
    %v3594 = vadd.f32 0.0, %v3593
    %v3595 = vpop.f32.mrb[0].mxu0
    %v3596 = vpop.f32.mrb[0].mxu0
    %v3597 = vadd.f32 0.0, %v3596
    %v3598 = vpop.f32.mrb[0].mxu0
    %3599 = vmatprep.mubr.bf16.mxu0 0
    %3600 = vmatmul.mubr.bf16.gmra.mrb[0].mxu0 %v3551
    %v3601 = vpop.f32.mrb[0].mxu0
    %v3602 = vadd.f32 0.0, %v3601
    %v3603 = vpop.f32.mrb[0].mxu0
    %v3604 = vpop.f32.mrb[0].mxu0
    %v3605 = vpop.f32.mrb[0].mxu0
    %3606 = vdwg.mxu0
    %3607 = vrot.lane.b32.xlu0 %v2515, 104
    %v3608 = vpop.permute.xlu0 %3607
    %3609 = vrot.lane.b32.xlu0 %v2516, 104
    %v3610 = vpop.permute.xlu0 %3609
    %3611 = vrot.lane.b32.xlu0 %v2515, 72
    %v3612 = vpop.permute.xlu0 %3611
    %3613 = vrot.lane.b32.xlu0 %v2516, 72
    %v3614 = vpop.permute.xlu0 %3613
    %v3616 = vsel %vm393, %v3608, 0
    %v3619 = vsel %vm393, %v3610, 0
    %v3622 = vsel %vm393, %v3612, 0
    %v3625 = vsel %vm393, %v3614, 0
    %3627 = vmatprep.subr.bf16.mxu0 0
    %3628 = vmatpush1.bf16.xpose.msra.mxu0 %v3622
    %3629 = vmatprep.subr.bf16.mxu0 0
    %3630 = vmatpush1.bf16.xpose.msra.mxu0 %v3625
    %3631 = vmatprep.subr.bf16.mxu0 0
    %3632 = vmatpush1.bf16.xpose.msra.mxu0 0
    %3633 = vmatprep.subr.bf16.mxu0 0
    %3634 = vmatpush1.bf16.xpose.msra.mxu0 0
    %3635 = vmatprep.subr.bf16.mxu0 0
    %3636 = vmatpush1.bf16.xpose.msra.mxu0 0
    %3637 = vmatprep.subr.bf16.mxu0 0
    %3638 = vmatpush1.bf16.xpose.msra.mxu0 0
    %3639 = vmatprep.subr.bf16.mxu0 0
    %3640 = vmatpush1.bf16.xpose.msra.mxu0 0
    %3641 = vmatprep.subr.bf16.mxu0 0
    %3642 = vmatpush1.bf16.xpose.msra.mxu0 0
    %3643 = vmatprep.subr.bf16.mxu0 0
    %3644 = vmatpush1.bf16.xpose.msra.mxu0 0
    %3645 = vmatprep.subr.bf16.mxu0 0
    %3646 = vmatpush1.bf16.xpose.msra.mxu0 0
    %3647 = vmatprep.subr.bf16.mxu0 0
    %3648 = vmatpush1.bf16.xpose.msra.mxu0 0
    %3649 = vmatprep.subr.bf16.mxu0 0
    %3650 = vmatpush1.bf16.xpose.msra.mxu0 0
    %3651 = vmatprep.subr.bf16.mxu0 0
    %3652 = vmatpush1.bf16.xpose.msra.mxu0 0
    %3653 = vmatprep.subr.bf16.mxu0 0
    %3654 = vmatpush1.bf16.xpose.msra.mxu0 0
    %3655 = vmatprep.subr.bf16.mxu0 0
    %3656 = vmatpush1.bf16.xpose.msra.mxu0 0
    %3657 = vmatprep.subr.bf16.mxu0 0
    %3658 = vmatpush1.bf16.xpose.msra.mxu0 0
    %3659 = vmatprep.mubr.bf16.mxu0 0
    %3660 = vmatmul.mubr.bf16.gmra.mrb[0].mxu0 %v3616
    %v3661 = vpop.f32.mrb[0].mxu0
    %v3662 = vadd.f32 0.0, %v3661
    %v3663 = vpop.f32.mrb[0].mxu0
    %v3664 = vpop.f32.mrb[0].mxu0
    %v3665 = vadd.f32 0.0, %v3664
    %v3666 = vpop.f32.mrb[0].mxu0
    %3667 = vmatprep.mubr.bf16.mxu0 0
    %3668 = vmatmul.mubr.bf16.gmra.mrb[0].mxu0 %v3619
    %v3669 = vpop.f32.mrb[0].mxu0
    %v3670 = vadd.f32 0.0, %v3669
    %v3671 = vpop.f32.mrb[0].mxu0
    %v3672 = vpop.f32.mrb[0].mxu0
    %v3673 = vpop.f32.mrb[0].mxu0
    %3674 = vdwg.mxu0
    %v3675 = vmul.f32 %v3594, 0.35355338
    %v3676 = vmul.f32 %v3597, 0.35355338
    %v3677 = vmul.f32 %v3602, 0.35355338
    %v3678 = vmul.f32 %v3662, 0.35355338
    %v3679 = vmul.f32 %v3665, 0.35355338
    %v3680 = vmul.f32 %v3670, 0.35355338
    %v3681 = vadd.f32 %v3675, %v530
    %v3682 = vadd.f32 %v3676, %v530
    %v3683 = vadd.f32 %v3677, %v530
    %v3684 = vadd.f32 %v3678, %v530
    %v3685 = vadd.f32 %v3679, %v530
    %v3686 = vadd.f32 %v3680, %v530
    %v3687 = vsel %vm538, %v3681, -inf
    %3688 = vmax.xlane.f32.xlu0 %v3687
    %v3689 = vpop.xlane.xlu0 %3688
    %v3690 = vsel %vm538, %v3682, -inf
    %3691 = vmax.xlane.f32.xlu0 %v3690
    %v3692 = vpop.xlane.xlu0 %3691
    %v3693 = vsel %vm538, %v3683, -inf
    %3694 = vmax.xlane.f32.xlu0 %v3693
    %v3695 = vpop.xlane.xlu0 %3694
    %v3696 = vsel %vm538, %v3684, -inf
    %3697 = vmax.xlane.f32.xlu0 %v3696
    %v3698 = vpop.xlane.xlu0 %3697
    %v3699 = vsel %vm538, %v3685, -inf
    %3700 = vmax.xlane.f32.xlu0 %v3699
    %v3701 = vpop.xlane.xlu0 %3700
    %v3702 = vsel %vm538, %v3686, -inf
    %3703 = vmax.xlane.f32.xlu0 %v3702
    %v3704 = vpop.xlane.xlu0 %3703
    %v3705 = vsub.f32 %v3681, %v3689
    %v3706 = vsub.f32 %v3682, %v3692
    %v3707 = vsub.f32 %v3683, %v3695
    %v3708 = vsub.f32 %v3684, %v3698
    %v3709 = vsub.f32 %v3685, %v3701
    %v3710 = vsub.f32 %v3686, %v3704
    %v3711 = vmul.f32 %v3705, 1.442695
    %v3712 = vpow.pop %v3711
    %v3713 = vmul.f32 %v3706, 1.442695
    %v3714 = vpow.pop %v3713
    %v3715 = vmul.f32 %v3707, 1.442695
    %v3716 = vpow.pop %v3715
    %v3717 = vmul.f32 %v3708, 1.442695
    %v3718 = vpow.pop %v3717
    %v3719 = vmul.f32 %v3709, 1.442695
    %v3720 = vpow.pop %v3719
    %v3721 = vmul.f32 %v3710, 1.442695
    %v3722 = vpow.pop %v3721
    %v3723 = vsel %vm538, %v3712, 0.0
    %3724 = vadd.xlane.f32.xlu0 %v3723
    %v3725 = vpop.xlane.xlu0 %3724
    %v3726 = vsel %vm538, %v3714, 0.0
    %3727 = vadd.xlane.f32.xlu0 %v3726
    %v3728 = vpop.xlane.xlu0 %3727
    %v3729 = vsel %vm538, %v3716, 0.0
    %3730 = vadd.xlane.f32.xlu0 %v3729
    %v3731 = vpop.xlane.xlu0 %3730
    %v3732 = vsel %vm538, %v3718, 0.0
    %3733 = vadd.xlane.f32.xlu0 %v3732
    %v3734 = vpop.xlane.xlu0 %3733
    %v3735 = vsel %vm538, %v3720, 0.0
    %3736 = vadd.xlane.f32.xlu0 %v3735
    %v3737 = vpop.xlane.xlu0 %3736
    %v3738 = vsel %vm538, %v3722, 0.0
    %3739 = vadd.xlane.f32.xlu0 %v3738
    %v3740 = vpop.xlane.xlu0 %3739
    %v3741 = vrcp.pop %v3725
    %v3742 = vrcp.pop %v3728
    %v3743 = vrcp.pop %v3731
    %v3744 = vrcp.pop %v3734
    %v3745 = vrcp.pop %v3737
    %v3746 = vrcp.pop %v3740
    %v3747 = vmul.f32 %v3712, %v3741
    %v3748 = vmul.f32 %v3714, %v3742
    %v3749 = vmul.f32 %v3716, %v3743
    %v3750 = vmul.f32 %v3718, %v3744
    %v3751 = vmul.f32 %v3720, %v3745
    %v3752 = vmul.f32 %v3722, %v3746
    %v3753 = vpack.c.bf16 %v3748, %v3747
    %v3754 = vpack.c.bf16 %v3749, %v3749
    %v3755 = vpack.c.bf16 %v3751, %v3750
    %v3756 = vpack.c.bf16 %v3752, %v3752
    %3757 = vrot.lane.b32.xlu0 %v2513, 40
    %v3758 = vpop.permute.xlu0 %3757
    %3759 = vrot.lane.b32.xlu0 %v2514, 40
    %v3760 = vpop.permute.xlu0 %3759
    %v3763 = vsel %vm538, %v3753, 0
    %v3766 = vsel %vm538, %v3754, 0
    %v3769 = vsel %vm620, %v3760, 0
    %3771 = vmatprep.subr.bf16.mxu0 0
    %3772 = vmatpush1.bf16.msra.mxu0 %v3758
    %3773 = vmatprep.subr.bf16.mxu0 0
    %3774 = vmatpush1.bf16.msra.mxu0 %v3769
    %3775 = vmatprep.subr.bf16.mxu0 0
    %3776 = vmatpush1.bf16.msra.mxu0 0
    %3777 = vmatprep.subr.bf16.mxu0 0
    %3778 = vmatpush1.bf16.msra.mxu0 0
    %3779 = vmatprep.subr.bf16.mxu0 0
    %3780 = vmatpush1.bf16.msra.mxu0 0
    %3781 = vmatprep.subr.bf16.mxu0 0
    %3782 = vmatpush1.bf16.msra.mxu0 0
    %3783 = vmatprep.subr.bf16.mxu0 0
    %3784 = vmatpush1.bf16.msra.mxu0 0
    %3785 = vmatprep.subr.bf16.mxu0 0
    %3786 = vmatpush1.bf16.msra.mxu0 0
    %3787 = vmatprep.subr.bf16.mxu0 0
    %3788 = vmatpush1.bf16.msra.mxu0 0
    %3789 = vmatprep.subr.bf16.mxu0 0
    %3790 = vmatpush1.bf16.msra.mxu0 0
    %3791 = vmatprep.subr.bf16.mxu0 0
    %3792 = vmatpush1.bf16.msra.mxu0 0
    %3793 = vmatprep.subr.bf16.mxu0 0
    %3794 = vmatpush1.bf16.msra.mxu0 0
    %3795 = vmatprep.subr.bf16.mxu0 0
    %3796 = vmatpush1.bf16.msra.mxu0 0
    %3797 = vmatprep.subr.bf16.mxu0 0
    %3798 = vmatpush1.bf16.msra.mxu0 0
    %3799 = vmatprep.subr.bf16.mxu0 0
    %3800 = vmatpush1.bf16.msra.mxu0 0
    %3801 = vmatprep.subr.bf16.mxu0 0
    %3802 = vmatpush1.bf16.msra.mxu0 0
    %3803 = vmatprep.mubr.bf16.mxu0 0
    %3804 = vmatmul.mubr.bf16.gmra.mrb[0].mxu0 %v3763
    %v3805 = vpop.f32.mrb[0].mxu0
    %v3806 = vadd.f32 0.0, %v3805
    %v3807 = vpop.f32.mrb[0].mxu0
    %v3808 = vpop.f32.mrb[0].mxu0
    %v3809 = vadd.f32 0.0, %v3808
    %v3810 = vpop.f32.mrb[0].mxu0
    %3811 = vmatprep.mubr.bf16.mxu0 0
    %3812 = vmatmul.mubr.bf16.gmra.mrb[0].mxu0 %v3766
    %v3813 = vpop.f32.mrb[0].mxu0
    %v3814 = vadd.f32 0.0, %v3813
    %v3815 = vpop.f32.mrb[0].mxu0
    %v3816 = vpop.f32.mrb[0].mxu0
    %v3817 = vpop.f32.mrb[0].mxu0
    %3818 = vdwg.mxu0
    %3819 = vrot.lane.b32.xlu0 %v2515, 40
    %v3820 = vpop.permute.xlu0 %3819
    %3821 = vrot.lane.b32.xlu0 %v2516, 40
    %v3822 = vpop.permute.xlu0 %3821
    %v3825 = vsel %vm538, %v3755, 0
    %v3828 = vsel %vm538, %v3756, 0
    %v3831 = vsel %vm620, %v3822, 0
    %3833 = vmatprep.subr.bf16.mxu0 0
    %3834 = vmatpush1.bf16.msra.mxu0 %v3820
    %3835 = vmatprep.subr.bf16.mxu0 0
    %3836 = vmatpush1.bf16.msra.mxu0 %v3831
    %3837 = vmatprep.subr.bf16.mxu0 0
    %3838 = vmatpush1.bf16.msra.mxu0 0
    %3839 = vmatprep.subr.bf16.mxu0 0
    %3840 = vmatpush1.bf16.msra.mxu0 0
    %3841 = vmatprep.subr.bf16.mxu0 0
    %3842 = vmatpush1.bf16.msra.mxu0 0
    %3843 = vmatprep.subr.bf16.mxu0 0
    %3844 = vmatpush1.bf16.msra.mxu0 0
    %3845 = vmatprep.subr.bf16.mxu0 0
    %3846 = vmatpush1.bf16.msra.mxu0 0
    %3847 = vmatprep.subr.bf16.mxu0 0
    %3848 = vmatpush1.bf16.msra.mxu0 0
    %3849 = vmatprep.subr.bf16.mxu0 0
    %3850 = vmatpush1.bf16.msra.mxu0 0
    %3851 = vmatprep.subr.bf16.mxu0 0
    %3852 = vmatpush1.bf16.msra.mxu0 0
    %3853 = vmatprep.subr.bf16.mxu0 0
    %3854 = vmatpush1.bf16.msra.mxu0 0
    %3855 = vmatprep.subr.bf16.mxu0 0
    %3856 = vmatpush1.bf16.msra.mxu0 0
    %3857 = vmatprep.subr.bf16.mxu0 0
    %3858 = vmatpush1.bf16.msra.mxu0 0
    %3859 = vmatprep.subr.bf16.mxu0 0
    %3860 = vmatpush1.bf16.msra.mxu0 0
    %3861 = vmatprep.subr.bf16.mxu0 0
    %3862 = vmatpush1.bf16.msra.mxu0 0
    %3863 = vmatprep.subr.bf16.mxu0 0
    %3864 = vmatpush1.bf16.msra.mxu0 0
    %3865 = vmatprep.mubr.bf16.mxu0 0
    %3866 = vmatmul.mubr.bf16.gmra.mrb[0].mxu0 %v3825
    %v3867 = vpop.f32.mrb[0].mxu0
    %v3868 = vadd.f32 0.0, %v3867
    %v3869 = vpop.f32.mrb[0].mxu0
    %v3870 = vpop.f32.mrb[0].mxu0
    %v3871 = vadd.f32 0.0, %v3870
    %v3872 = vpop.f32.mrb[0].mxu0
    %3873 = vmatprep.mubr.bf16.mxu0 0
    %3874 = vmatmul.mubr.bf16.gmra.mrb[0].mxu0 %v3828
    %v3875 = vpop.f32.mrb[0].mxu0
    %v3876 = vadd.f32 0.0, %v3875
    %v3877 = vpop.f32.mrb[0].mxu0
    %v3878 = vpop.f32.mrb[0].mxu0
    %v3879 = vpop.f32.mrb[0].mxu0
    %3880 = vdwg.mxu0
    %3887 = vrot.lane.b32.xlu0 %v3122, 8
    %v3888 = vpop.permute.xlu0 %3887
    %3889 = vrot.lane.b32.xlu0 %v3125, 8
    %v3890 = vpop.permute.xlu0 %3889
    %3891 = vrot.lane.b32.xlu0 %v3130, 8
    %v3892 = vpop.permute.xlu0 %3891
    %3893 = vrot.lane.b32.xlu0 %v3184, 8
    %v3894 = vpop.permute.xlu0 %3893
    %3895 = vrot.lane.b32.xlu0 %v3187, 8
    %v3896 = vpop.permute.xlu0 %3895
    %3897 = vrot.lane.b32.xlu0 %v3192, 8
    %v3898 = vpop.permute.xlu0 %3897
    %3911 = vrot.lane.b32.xlu0 %v3464, 16
    %v3912 = vpop.permute.xlu0 %3911
    %3913 = vrot.lane.b32.xlu0 %v3467, 16
    %v3914 = vpop.permute.xlu0 %3913
    %3915 = vrot.lane.b32.xlu0 %v3472, 16
    %v3916 = vpop.permute.xlu0 %3915
    %3917 = vrot.lane.b32.xlu0 %v3526, 16
    %v3918 = vpop.permute.xlu0 %3917
    %3919 = vrot.lane.b32.xlu0 %v3529, 16
    %v3920 = vpop.permute.xlu0 %3919
    %3921 = vrot.lane.b32.xlu0 %v3534, 16
    %v3922 = vpop.permute.xlu0 %3921
    %3935 = vrot.lane.b32.xlu0 %v3806, 24
    %v3936 = vpop.permute.xlu0 %3935
    %3937 = vrot.lane.b32.xlu0 %v3809, 24
    %v3938 = vpop.permute.xlu0 %3937
    %3939 = vrot.lane.b32.xlu0 %v3814, 24
    %v3940 = vpop.permute.xlu0 %3939
    %3941 = vrot.lane.b32.xlu0 %v3868, 24
    %v3942 = vpop.permute.xlu0 %3941
    %3943 = vrot.lane.b32.xlu0 %v3871, 24
    %v3944 = vpop.permute.xlu0 %3943
    %3945 = vrot.lane.b32.xlu0 %v3876, 24
    %v3946 = vpop.permute.xlu0 %3945
    %v3953 = vsel %vm393, %v2780, %v3888
    %v3954 = vsel %vm393, %v2783, %v3890
    %v3955 = vsel %vm393, %v2788, %v3892
    %v3956 = vsel %vm393, %v2842, %v3894
    %v3957 = vsel %vm393, %v2845, %v3896
    %v3958 = vsel %vm393, %v2850, %v3898
    %v3959 = vsel %vm1838, %v3953, %v3912
    %v3960 = vsel %vm1838, %v3954, %v3914
    %v3961 = vsel %vm1838, %v3955, %v3916
    %v3962 = vsel %vm1838, %v3956, %v3918
    %v3963 = vsel %vm1838, %v3957, %v3920
    %v3964 = vsel %vm1838, %v3958, %v3922
    %v3965 = vsel %vm538, %v3959, %v3936
    %v3966 = vsel %vm538, %v3960, %v3938
    %v3967 = vsel %vm538, %v3961, %v3940
    %v3968 = vsel %vm538, %v3962, %v3942
    %v3969 = vsel %vm538, %v3963, %v3944
    %v3970 = vsel %vm538, %v3964, %v3946
    %s3971 = scalar_lea.vmem %s8, 16
    %v3972 = vld [vmem:[%s3971] sm:$0xf]
    %v3973 = vld [vmem:[%s3971 + $0x4] sm:$0xf]
    %v3974 = vld [vmem:[%s3971 + $0x8] sm:$0xf]
    %v3975 = vld [vmem:[%s3971 + $0xc] sm:$0xf]
    %s3976 = scalar_lea.vmem %s9, 1
    %v3977 = vld [vmem:[%s3976] sm:$0x1]
    %v3978 = vpack.c.bf16 %v3966, %v3965
    %v3979 = vpack.c.bf16 %v3968, %v3967
    %v3980 = vpack.c.bf16 %v3970, %v3969
    %v3982 = vlaneseq
    %v3983 = vshrl.u32 %v3982, 7
    %v3984 = vsub.s32 0, %v3983
    %v3985 = vrot.slane %v3977, %v3984
    %v3991 = vunpack.c.l.b16 %v3972
    %v3992 = vunpack.c.l.b16 %v3973
    %v3993 = vunpack.c.l.b16 %v3974
    %v3994 = vunpack.c.l.b16 %v3975
    %v3995 = vpack.c.b16 %v3992, %v3991
    %v3996 = vpack.c.b16 %v3994, %v3993
    %v4000 = vsel %vm187, %v3978, 0
    %v4003 = vsel %vm187, %v3979, 0
    %v4006 = vsel %vm187, %v3980, 0
    %4008 = vmatprep.subr.bf16.mxu0 0
    %4009 = vmatpush1.bf16.msra.mxu0 %v3995
    %4010 = vmatprep.subr.bf16.mxu0 0
    %4011 = vmatpush1.bf16.msra.mxu0 %v3996
    %4012 = vmatprep.subr.bf16.mxu0 0
    %4013 = vmatpush1.bf16.msra.mxu0 0
    %4014 = vmatprep.subr.bf16.mxu0 0
    %4015 = vmatpush1.bf16.msra.mxu0 0
    %4016 = vmatprep.subr.bf16.mxu0 0
    %4017 = vmatpush1.bf16.msra.mxu0 0
    %4018 = vmatprep.subr.bf16.mxu0 0
    %4019 = vmatpush1.bf16.msra.mxu0 0
    %4020 = vmatprep.subr.bf16.mxu0 0
    %4021 = vmatpush1.bf16.msra.mxu0 0
    %4022 = vmatprep.subr.bf16.mxu0 0
    %4023 = vmatpush1.bf16.msra.mxu0 0
    %4024 = vmatprep.subr.bf16.mxu0 0
    %4025 = vmatpush1.bf16.msra.mxu0 0
    %4026 = vmatprep.subr.bf16.mxu0 0
    %4027 = vmatpush1.bf16.msra.mxu0 0
    %4028 = vmatprep.subr.bf16.mxu0 0
    %4029 = vmatpush1.bf16.msra.mxu0 0
    %4030 = vmatprep.subr.bf16.mxu0 0
    %4031 = vmatpush1.bf16.msra.mxu0 0
    %4032 = vmatprep.subr.bf16.mxu0 0
    %4033 = vmatpush1.bf16.msra.mxu0 0
    %4034 = vmatprep.subr.bf16.mxu0 0
    %4035 = vmatpush1.bf16.msra.mxu0 0
    %4036 = vmatprep.subr.bf16.mxu0 0
    %4037 = vmatpush1.bf16.msra.mxu0 0
    %4038 = vmatprep.subr.bf16.mxu0 0
    %4039 = vmatpush1.bf16.msra.mxu0 0
    %4040 = vmatprep.mubr.bf16.mxu0 0
    %4041 = vmatmul.mubr.bf16.gmra.mrb[0].mxu0 %v4000
    %v4042 = vpop.f32.mrb[0].mxu0
    %v4043 = vadd.f32 %v3985, %v4042
    %v4044 = vpop.f32.mrb[0].mxu0
    %v4045 = vpop.f32.mrb[0].mxu0
    %v4046 = vadd.f32 %v3985, %v4045
    %v4047 = vpop.f32.mrb[0].mxu0
    %4048 = vmatprep.mubr.bf16.mxu0 0
    %4049 = vmatmul.mubr.bf16.gmra.mrb[0].mxu0 %v4003
    %v4050 = vpop.f32.mrb[0].mxu0
    %v4051 = vadd.f32 %v3985, %v4050
    %v4052 = vpop.f32.mrb[0].mxu0
    %v4053 = vpop.f32.mrb[0].mxu0
    %v4054 = vadd.f32 %v3985, %v4053
    %v4055 = vpop.f32.mrb[0].mxu0
    %4056 = vmatprep.mubr.bf16.mxu0 0
    %4057 = vmatmul.mubr.bf16.gmra.mrb[0].mxu0 %v4006
    %v4058 = vpop.f32.mrb[0].mxu0
    %v4059 = vadd.f32 %v3985, %v4058
    %v4060 = vpop.f32.mrb[0].mxu0
    %v4061 = vpop.f32.mrb[0].mxu0
    %v4062 = vadd.f32 %v3985, %v4061
    %v4063 = vpop.f32.mrb[0].mxu0
    %4064 = vdwg.mxu0
    %v4065 = vadd.f32 %v2307, %v4043
    %v4066 = vadd.f32 %v2308, %v4046
    %v4067 = vadd.f32 %v2309, %v4051
    %v4068 = vadd.f32 %v2310, %v4054
    %v4069 = vadd.f32 %v2311, %v4059
    %v4070 = vadd.f32 %v2312, %v4062
    %s4071 = scalar_lea.vmem %s10, 1
    %v4072 = vld [vmem:[%s4071] sm:$0x1]
    %s4073 = scalar_lea.vmem %s11, 1
    %v4074 = vld [vmem:[%s4073] sm:$0x1]
    %v4075 = vsel %vm187, %v4065, 0.0
    %4076 = vadd.xlane.f32.xlu0 %v4075
    %v4077 = vpop.xlane.xlu0 %4076
    %v4078 = vsel %vm187, %v4066, 0.0
    %4079 = vadd.xlane.f32.xlu0 %v4078
    %v4080 = vpop.xlane.xlu0 %4079
    %v4081 = vsel %vm187, %v4067, 0.0
    %4082 = vadd.xlane.f32.xlu0 %v4081
    %v4083 = vpop.xlane.xlu0 %4082
    %v4084 = vsel %vm187, %v4068, 0.0
    %4085 = vadd.xlane.f32.xlu0 %v4084
    %v4086 = vpop.xlane.xlu0 %4085
    %v4087 = vsel %vm187, %v4069, 0.0
    %4088 = vadd.xlane.f32.xlu0 %v4087
    %v4089 = vpop.xlane.xlu0 %4088
    %v4090 = vsel %vm187, %v4070, 0.0
    %4091 = vadd.xlane.f32.xlu0 %v4090
    %v4092 = vpop.xlane.xlu0 %4091
    %v4093 = vmul.f32 %v4077, %v206
    %v4094 = vmul.f32 %v4080, %v206
    %v4095 = vmul.f32 %v4083, %v206
    %v4096 = vmul.f32 %v4086, %v206
    %v4097 = vmul.f32 %v4089, %v206
    %v4098 = vmul.f32 %v4092, %v206
    %v4099 = vsub.f32 %v4065, %v4093
    %v4100 = vsub.f32 %v4066, %v4094
    %v4101 = vsub.f32 %v4067, %v4095
    %v4102 = vsub.f32 %v4068, %v4096
    %v4103 = vsub.f32 %v4069, %v4097
    %v4104 = vsub.f32 %v4070, %v4098
    %v4105 = vmul.f32 %v4099, %v4099
    %v4106 = vmul.f32 %v4100, %v4100
    %v4107 = vmul.f32 %v4101, %v4101
    %v4108 = vmul.f32 %v4102, %v4102
    %v4109 = vmul.f32 %v4103, %v4103
    %v4110 = vmul.f32 %v4104, %v4104
    %v4111 = vsel %vm187, %v4105, 0.0
    %4112 = vadd.xlane.f32.xlu0 %v4111
    %v4113 = vpop.xlane.xlu0 %4112
    %v4114 = vsel %vm187, %v4106, 0.0
    %4115 = vadd.xlane.f32.xlu0 %v4114
    %v4116 = vpop.xlane.xlu0 %4115
    %v4117 = vsel %vm187, %v4107, 0.0
    %4118 = vadd.xlane.f32.xlu0 %v4117
    %v4119 = vpop.xlane.xlu0 %4118
    %v4120 = vsel %vm187, %v4108, 0.0
    %4121 = vadd.xlane.f32.xlu0 %v4120
    %v4122 = vpop.xlane.xlu0 %4121
    %v4123 = vsel %vm187, %v4109, 0.0
    %4124 = vadd.xlane.f32.xlu0 %v4123
    %v4125 = vpop.xlane.xlu0 %4124
    %v4126 = vsel %vm187, %v4110, 0.0
    %4127 = vadd.xlane.f32.xlu0 %v4126
    %v4128 = vpop.xlane.xlu0 %4127
    %v4129 = vmul.f32 %v4113, %v206
    %v4130 = vmul.f32 %v4116, %v206
    %v4131 = vmul.f32 %v4119, %v206
    %v4132 = vmul.f32 %v4122, %v206
    %v4133 = vmul.f32 %v4125, %v206
    %v4134 = vmul.f32 %v4128, %v206
    %v4135 = vadd.f32 %v4129, 1e-06
    %v4136 = vadd.f32 %v4130, 1e-06
    %v4137 = vadd.f32 %v4131, 1e-06
    %v4138 = vadd.f32 %v4132, 1e-06
    %v4139 = vadd.f32 %v4133, 1e-06
    %v4140 = vadd.f32 %v4134, 1e-06
    %v4141 = vrsqrt.pop %v4135
    %v4142 = vrsqrt.pop %v4136
    %v4143 = vrsqrt.pop %v4137
    %v4144 = vrsqrt.pop %v4138
    %v4145 = vrsqrt.pop %v4139
    %v4146 = vrsqrt.pop %v4140
    %v4147 = vmul.f32 %v4099, %v4141
    %v4148 = vmul.f32 %v4100, %v4142
    %v4149 = vmul.f32 %v4101, %v4143
    %v4150 = vmul.f32 %v4102, %v4144
    %v4151 = vmul.f32 %v4103, %v4145
    %v4152 = vmul.f32 %v4104, %v4146
    %v4154 = vlaneseq
    %v4155 = vshrl.u32 %v4154, 7
    %v4156 = vsub.s32 0, %v4155
    %v4157 = vrot.slane %v4072, %v4156
    %v4159 = vmul.f32 %v4147, %v4157
    %v4160 = vmul.f32 %v4148, %v4157
    %v4161 = vmul.f32 %v4149, %v4157
    %v4162 = vmul.f32 %v4150, %v4157
    %v4163 = vmul.f32 %v4151, %v4157
    %v4164 = vmul.f32 %v4152, %v4157
    %v4166 = vlaneseq
    %v4167 = vshrl.u32 %v4166, 7
    %v4168 = vsub.s32 0, %v4167
    %v4169 = vrot.slane %v4074, %v4168
    %v4171 = vadd.f32 %v4159, %v4169
    %v4172 = vadd.f32 %v4160, %v4169
    %v4173 = vadd.f32 %v4161, %v4169
    %v4174 = vadd.f32 %v4162, %v4169
    %v4175 = vadd.f32 %v4163, %v4169
    %v4176 = vadd.f32 %v4164, %v4169
    %s4177 = scalar_lea.vmem %s12, 16
    %v4178 = vld [vmem:[%s4177] sm:$0xf]
    %v4179 = vld [vmem:[%s4177 + $0x4] sm:$0xf]
    %v4180 = vld [vmem:[%s4177 + $0x8] sm:$0xf]
    %v4181 = vld [vmem:[%s4177 + $0xc] sm:$0xf]
    %s4182 = scalar_lea.vmem %s13, 1
    %v4183 = vld [vmem:[%s4182] sm:$0x1]
    %v4184 = vpack.c.bf16 %v4172, %v4171
    %v4185 = vpack.c.bf16 %v4174, %v4173
    %v4186 = vpack.c.bf16 %v4176, %v4175
    %v4188 = vlaneseq
    %v4189 = vshrl.u32 %v4188, 7
    %v4190 = vsub.s32 0, %v4189
    %v4191 = vrot.slane %v4183, %v4190
    %v4197 = vunpack.c.l.b16 %v4178
    %v4198 = vunpack.c.l.b16 %v4179
    %v4199 = vunpack.c.l.b16 %v4180
    %v4200 = vunpack.c.l.b16 %v4181
    %v4201 = vpack.c.b16 %v4198, %v4197
    %v4202 = vpack.c.b16 %v4200, %v4199
    %v4206 = vsel %vm187, %v4184, 0
    %v4209 = vsel %vm187, %v4185, 0
    %v4212 = vsel %vm187, %v4186, 0
    %4214 = vmatprep.subr.bf16.mxu0 0
    %4215 = vmatpush1.bf16.msra.mxu0 %v4201
    %4216 = vmatprep.subr.bf16.mxu0 0
    %4217 = vmatpush1.bf16.msra.mxu0 %v4202
    %4218 = vmatprep.subr.bf16.mxu0 0
    %4219 = vmatpush1.bf16.msra.mxu0 0
    %4220 = vmatprep.subr.bf16.mxu0 0
    %4221 = vmatpush1.bf16.msra.mxu0 0
    %4222 = vmatprep.subr.bf16.mxu0 0
    %4223 = vmatpush1.bf16.msra.mxu0 0
    %4224 = vmatprep.subr.bf16.mxu0 0
    %4225 = vmatpush1.bf16.msra.mxu0 0
    %4226 = vmatprep.subr.bf16.mxu0 0
    %4227 = vmatpush1.bf16.msra.mxu0 0
    %4228 = vmatprep.subr.bf16.mxu0 0
    %4229 = vmatpush1.bf16.msra.mxu0 0
    %4230 = vmatprep.subr.bf16.mxu0 0
    %4231 = vmatpush1.bf16.msra.mxu0 0
    %4232 = vmatprep.subr.bf16.mxu0 0
    %4233 = vmatpush1.bf16.msra.mxu0 0
    %4234 = vmatprep.subr.bf16.mxu0 0
    %4235 = vmatpush1.bf16.msra.mxu0 0
    %4236 = vmatprep.subr.bf16.mxu0 0
    %4237 = vmatpush1.bf16.msra.mxu0 0
    %4238 = vmatprep.subr.bf16.mxu0 0
    %4239 = vmatpush1.bf16.msra.mxu0 0
    %4240 = vmatprep.subr.bf16.mxu0 0
    %4241 = vmatpush1.bf16.msra.mxu0 0
    %4242 = vmatprep.subr.bf16.mxu0 0
    %4243 = vmatpush1.bf16.msra.mxu0 0
    %4244 = vmatprep.subr.bf16.mxu0 0
    %4245 = vmatpush1.bf16.msra.mxu0 0
    %4246 = vmatprep.mubr.bf16.mxu0 0
    %4247 = vmatmul.mubr.bf16.gmra.mrb[0].mxu0 %v4206
    %v4248 = vpop.f32.mrb[0].mxu0
    %v4249 = vadd.f32 %v4191, %v4248
    %v4250 = vpop.f32.mrb[0].mxu0
    %v4251 = vpop.f32.mrb[0].mxu0
    %v4252 = vadd.f32 %v4191, %v4251
    %v4253 = vpop.f32.mrb[0].mxu0
    %4254 = vmatprep.mubr.bf16.mxu0 0
    %4255 = vmatmul.mubr.bf16.gmra.mrb[0].mxu0 %v4209
    %v4256 = vpop.f32.mrb[0].mxu0
    %v4257 = vadd.f32 %v4191, %v4256
    %v4258 = vpop.f32.mrb[0].mxu0
    %v4259 = vpop.f32.mrb[0].mxu0
    %v4260 = vadd.f32 %v4191, %v4259
    %v4261 = vpop.f32.mrb[0].mxu0
    %4262 = vmatprep.mubr.bf16.mxu0 0
    %4263 = vmatmul.mubr.bf16.gmra.mrb[0].mxu0 %v4212
    %v4264 = vpop.f32.mrb[0].mxu0
    %v4265 = vadd.f32 %v4191, %v4264
    %v4266 = vpop.f32.mrb[0].mxu0
    %v4267 = vpop.f32.mrb[0].mxu0
    %v4268 = vadd.f32 %v4191, %v4267
    %v4269 = vpop.f32.mrb[0].mxu0
    %4270 = vdwg.mxu0
    %v4271 = vmul.f32 %v4249, %v4249
    %v4272 = vmul.f32 %v4252, %v4252
    %v4273 = vmul.f32 %v4257, %v4257
    %v4274 = vmul.f32 %v4260, %v4260
    %v4275 = vmul.f32 %v4265, %v4265
    %v4276 = vmul.f32 %v4268, %v4268
    %v4277 = vmul.f32 %v4249, %v4271
    %v4278 = vmul.f32 %v4252, %v4272
    %v4279 = vmul.f32 %v4257, %v4273
    %v4280 = vmul.f32 %v4260, %v4274
    %v4281 = vmul.f32 %v4265, %v4275
    %v4282 = vmul.f32 %v4268, %v4276
    %v4283 = vmul.f32 %v4277, 0.044715
    %v4284 = vmul.f32 %v4278, 0.044715
    %v4285 = vmul.f32 %v4279, 0.044715
    %v4286 = vmul.f32 %v4280, 0.044715
    %v4287 = vmul.f32 %v4281, 0.044715
    %v4288 = vmul.f32 %v4282, 0.044715
    %v4289 = vadd.f32 %v4249, %v4283
    %v4290 = vadd.f32 %v4252, %v4284
    %v4291 = vadd.f32 %v4257, %v4285
    %v4292 = vadd.f32 %v4260, %v4286
    %v4293 = vadd.f32 %v4265, %v4287
    %v4294 = vadd.f32 %v4268, %v4288
    %v4295 = vmul.f32 %v4289, 0.7978846
    %v4296 = vmul.f32 %v4290, 0.7978846
    %v4297 = vmul.f32 %v4291, 0.7978846
    %v4298 = vmul.f32 %v4292, 0.7978846
    %v4299 = vmul.f32 %v4293, 0.7978846
    %v4300 = vmul.f32 %v4294, 0.7978846
    %v4301 = vtanh.pop %v4295
    %v4302 = vtanh.pop %v4296
    %v4303 = vtanh.pop %v4297
    %v4304 = vtanh.pop %v4298
    %v4305 = vtanh.pop %v4299
    %v4306 = vtanh.pop %v4300
    %v4307 = vadd.f32 %v4301, 1.0
    %v4308 = vadd.f32 %v4302, 1.0
    %v4309 = vadd.f32 %v4303, 1.0
    %v4310 = vadd.f32 %v4304, 1.0
    %v4311 = vadd.f32 %v4305, 1.0
    %v4312 = vadd.f32 %v4306, 1.0
    %v4313 = vmul.f32 %v4307, 0.5
    %v4314 = vmul.f32 %v4308, 0.5
    %v4315 = vmul.f32 %v4309, 0.5
    %v4316 = vmul.f32 %v4310, 0.5
    %v4317 = vmul.f32 %v4311, 0.5
    %v4318 = vmul.f32 %v4312, 0.5
    %v4319 = vmul.f32 %v4249, %v4313
    %v4320 = vmul.f32 %v4252, %v4314
    %v4321 = vmul.f32 %v4257, %v4315
    %v4322 = vmul.f32 %v4260, %v4316
    %v4323 = vmul.f32 %v4265, %v4317
    %v4324 = vmul.f32 %v4268, %v4318
    %s4325 = scalar_lea.vmem %s14, 32
    %v4326 = vld [vmem:[%s4325] sm:$0xf]
    %v4327 = vld [vmem:[%s4325 + $0x4] sm:$0xf]
    %v4328 = vld [vmem:[%s4325 + $0x8] sm:$0xf]
    %v4329 = vld [vmem:[%s4325 + $0xc] sm:$0xf]
    %v4330 = vld [vmem:[%s4325 + $0x10] sm:$0xf]
    %v4331 = vld [vmem:[%s4325 + $0x14] sm:$0xf]
    %v4332 = vld [vmem:[%s4325 + $0x18] sm:$0xf]
    %v4333 = vld [vmem:[%s4325 + $0x1c] sm:$0xf]
    %s4334 = scalar_lea.vmem %s15, 1
    %v4335 = vld [vmem:[%s4334] sm:$0x1]
    %v4336 = vpack.c.bf16 %v4320, %v4319
    %v4337 = vpack.c.bf16 %v4322, %v4321
    %v4338 = vpack.c.bf16 %v4324, %v4323
    %v4340 = vlaneseq
    %v4341 = vshrl.u32 %v4340, 7
    %v4342 = vsub.s32 0, %v4341
    %v4343 = vrot.slane %v4335, %v4342
    %v4353 = vunpack.c.l.b16 %v4326
    %v4354 = vunpack.c.l.b16 %v4327
    %v4355 = vunpack.c.l.b16 %v4328
    %v4356 = vunpack.c.l.b16 %v4329
    %v4357 = vunpack.c.l.b16 %v4330
    %v4358 = vunpack.c.l.b16 %v4331
    %v4359 = vunpack.c.l.b16 %v4332
    %v4360 = vunpack.c.l.b16 %v4333
    %v4361 = vpack.c.b16 %v4354, %v4353
    %v4362 = vpack.c.b16 %v4356, %v4355
    %v4363 = vpack.c.b16 %v4358, %v4357
    %v4364 = vpack.c.b16 %v4360, %v4359
    %v4370 = vsel %vm109, %v4336, 0
    %v4373 = vsel %vm109, %v4337, 0
    %v4376 = vsel %vm109, %v4338, 0
    %4378 = vmatprep.subr.bf16.mxu0 0
    %4379 = vmatpush1.bf16.msra.mxu0 %v4361
    %4380 = vmatprep.subr.bf16.mxu0 0
    %4381 = vmatpush1.bf16.msra.mxu0 %v4362
    %4382 = vmatprep.subr.bf16.mxu0 0
    %4383 = vmatpush1.bf16.msra.mxu0 %v4363
    %4384 = vmatprep.subr.bf16.mxu0 0
    %4385 = vmatpush1.bf16.msra.mxu0 %v4364
    %4386 = vmatprep.subr.bf16.mxu0 0
    %4387 = vmatpush1.bf16.msra.mxu0 0
    %4388 = vmatprep.subr.bf16.mxu0 0
    %4389 = vmatpush1.bf16.msra.mxu0 0
    %4390 = vmatprep.subr.bf16.mxu0 0
    %4391 = vmatpush1.bf16.msra.mxu0 0
    %4392 = vmatprep.subr.bf16.mxu0 0
    %4393 = vmatpush1.bf16.msra.mxu0 0
    %4394 = vmatprep.subr.bf16.mxu0 0
    %4395 = vmatpush1.bf16.msra.mxu0 0
    %4396 = vmatprep.subr.bf16.mxu0 0
    %4397 = vmatpush1.bf16.msra.mxu0 0
    %4398 = vmatprep.subr.bf16.mxu0 0
    %4399 = vmatpush1.bf16.msra.mxu0 0
    %4400 = vmatprep.subr.bf16.mxu0 0
    %4401 = vmatpush1.bf16.msra.mxu0 0
    %4402 = vmatprep.subr.bf16.mxu0 0
    %4403 = vmatpush1.bf16.msra.mxu0 0
    %4404 = vmatprep.subr.bf16.mxu0 0
    %4405 = vmatpush1.bf16.msra.mxu0 0
    %4406 = vmatprep.subr.bf16.mxu0 0
    %4407 = vmatpush1.bf16.msra.mxu0 0
    %4408 = vmatprep.subr.bf16.mxu0 0
    %4409 = vmatpush1.bf16.msra.mxu0 0
    %4410 = vmatprep.mubr.bf16.mxu0 0
    %4411 = vmatmul.mubr.bf16.gmra.mrb[0].mxu0 %v4370
    %v4412 = vpop.f32.mrb[0].mxu0
    %v4413 = vadd.f32 %v4343, %v4412
    %v4414 = vpop.f32.mrb[0].mxu0
    %v4415 = vpop.f32.mrb[0].mxu0
    %v4416 = vpop.f32.mrb[0].mxu0
    %4417 = vmatprep.mubr.bf16.mxu0 0
    %4418 = vmatmul.mubr.bf16.gmra.mrb[0].mxu0 %v4373
    %v4419 = vpop.f32.mrb[0].mxu0
    %v4420 = vpop.f32.mrb[0].mxu0
    %v4421 = vpop.f32.mrb[0].mxu0
    %v4422 = vadd.f32 %v4343, %v4421
    %v4423 = vpop.f32.mrb[0].mxu0
    %4424 = vmatprep.mubr.bf16.mxu0 0
    %4425 = vmatmul.mubr.bf16.gmra.mrb[0].mxu0 %v4376
    %v4426 = vpop.f32.mrb[0].mxu0
    %v4427 = vpop.f32.mrb[0].mxu0
    %v4428 = vpop.f32.mrb[0].mxu0
    %v4429 = vpop.f32.mrb[0].mxu0
    %4430 = vdwg.mxu0
    %v4431 = vadd.f32 %v4065, %v4413
    %v4432 = vadd.f32 %v4068, %v4422
    %v4433 = vld [vmem:[%s16] sm:$0x1]
    %v4434 = vld [vmem:[%s17] sm:$0x1]
    %v4437 = vrot.slane %v4432, 7
    %vm4438 = vcmask 1041409
    %v4439 = vsel %vm4438, %v4437, %v4431
    %vm4441 = vcmask 254976
    %v4442 = vsel %vm4441, %v4439, 0.0
    %4443 = vadd.xlane.f32.xlu0 %v4442
    %v4444 = vpop.xlane.xlu0 %4443
    %v4445 = vmul.f32 %v4444, %v206
    %v4447 = vrot.slane %v4445, 1
    %v4450 = vsub.f32 %v4431, %v4445
    %v4451 = vsub.f32 %v4432, %v4447
    %v4452 = vmul.f32 %v4450, %v4450
    %v4453 = vmul.f32 %v4451, %v4451
    %v4456 = vrot.slane %v4453, 7
    %v4457 = vsel %vm4438, %v4456, %v4452
    %v4459 = vsel %vm4441, %v4457, 0.0
    %4460 = vadd.xlane.f32.xlu0 %v4459
    %v4461 = vpop.xlane.xlu0 %4460
    %v4462 = vmul.f32 %v4461, %v206
    %v4463 = vadd.f32 %v4462, 1e-06
    %v4464 = vrsqrt.pop %v4463
    %v4466 = vrot.slane %v4464, 1
    %v4469 = vmul.f32 %v4450, %v4464
    %v4470 = vmul.f32 %v4451, %v4466
    %v4472 = vlaneseq
    %v4473 = vshrl.u32 %v4472, 7
    %v4474 = vsub.s32 0, %v4473
    %v4475 = vrot.slane %v4433, %v4474
    %v4477 = vmul.f32 %v4469, %v4475
    %v4478 = vmul.f32 %v4470, %v4475
    %v4480 = vlaneseq
    %v4481 = vshrl.u32 %v4480, 7
    %v4482 = vsub.s32 0, %v4481
    %v4483 = vrot.slane %v4434, %v4482
    %v4485 = vadd.f32 %v4477, %v4483
    %v4486 = vadd.f32 %v4478, %v4483
    %v4487 = vld [vmem:[%s18] sm:$0xf]
    %v4488 = vld [vmem:[%s18 + $0x4] sm:$0xf]
    %v4489 = vld [vmem:[%s18 + $0x8] sm:$0xf]
    %v4490 = vld [vmem:[%s18 + $0xc] sm:$0xf]
    %v4491 = vld [vmem:[%s19] sm:$0x1]
    %v4492 = vpack.c.bf16 %v4485, %v4485
    %v4493 = vpack.c.bf16 %v4486, %v4486
    %v4495 = vlaneseq
    %v4496 = vshrl.u32 %v4495, 7
    %v4497 = vsub.s32 0, %v4496
    %v4498 = vrot.slane %v4491, %v4497
    %v4502 = vunpack.c.l.b16 %v4492
    %v4503 = vunpack.c.l.b16 %v4493
    %v4504 = vrot.slane %v4503, 7
    %v4505 = vsel %vm4438, %v4504, %v4502
    %v4506 = vpack.c.b16 %v4505, %v4505
    %v4511 = vunpack.c.l.b16 %v4487
    %v4512 = vunpack.c.l.b16 %v4488
    %v4513 = vunpack.c.l.b16 %v4489
    %v4514 = vunpack.c.l.b16 %v4490
    %v4515 = vpack.c.b16 %v4512, %v4511
    %v4516 = vpack.c.b16 %v4514, %v4513
    %v4520 = vsel %vm187, %v4506, 0
    %4522 = vmatprep.subr.bf16.mxu0 0
    %4523 = vmatpush1.bf16.msra.mxu0 %v4515
    %4524 = vmatprep.subr.bf16.mxu0 0
    %4525 = vmatpush1.bf16.msra.mxu0 %v4516
    %4526 = vmatprep.subr.bf16.mxu0 0
    %4527 = vmatpush1.bf16.msra.mxu0 0
    %4528 = vmatprep.subr.bf16.mxu0 0
    %4529 = vmatpush1.bf16.msra.mxu0 0
    %4530 = vmatprep.subr.bf16.mxu0 0
    %4531 = vmatpush1.bf16.msra.mxu0 0
    %4532 = vmatprep.subr.bf16.mxu0 0
    %4533 = vmatpush1.bf16.msra.mxu0 0
    %4534 = vmatprep.subr.bf16.mxu0 0
    %4535 = vmatpush1.bf16.msra.mxu0 0
    %4536 = vmatprep.subr.bf16.mxu0 0
    %4537 = vmatpush1.bf16.msra.mxu0 0
    %4538 = vmatprep.subr.bf16.mxu0 0
    %4539 = vmatpush1.bf16.msra.mxu0 0
    %4540 = vmatprep.subr.bf16.mxu0 0
    %4541 = vmatpush1.bf16.msra.mxu0 0
    %4542 = vmatprep.subr.bf16.mxu0 0
    %4543 = vmatpush1.bf16.msra.mxu0 0
    %4544 = vmatprep.subr.bf16.mxu0 0
    %4545 = vmatpush1.bf16.msra.mxu0 0
    %4546 = vmatprep.subr.bf16.mxu0 0
    %4547 = vmatpush1.bf16.msra.mxu0 0
    %4548 = vmatprep.subr.bf16.mxu0 0
    %4549 = vmatpush1.bf16.msra.mxu0 0
    %4550 = vmatprep.subr.bf16.mxu0 0
    %4551 = vmatpush1.bf16.msra.mxu0 0
    %4552 = vmatprep.subr.bf16.mxu0 0
    %4553 = vmatpush1.bf16.msra.mxu0 0
    %4554 = vmatprep.mubr.bf16.mxu0 0
    %4555 = vmatmul.mubr.bf16.gmra.mrb[0].mxu0 %v4520
    %v4556 = vpop.f32.mrb[0].mxu0
    %v4557 = vadd.f32 %v4498, %v4556
    %v4558 = vpop.f32.mrb[0].mxu0
    %v4559 = vpop.f32.mrb[0].mxu0
    %v4560 = vpop.f32.mrb[0].mxu0
    %4561 = vdwg.mxu0
    %4562 = vst [vmem:[#allocation2] sm:$0x3] %v4557
    // Predicated region
    $region82: #{vit_forward.1} parent=1 // pred_check
      _
    $region83: #{vit_forward.1} parent=1 // pred_check_branch
      %4564 = sbr.rel (0) target = $region85
    $region84: #{vit_forward.1} parent=1 // pred_region
      %s4566 = ssub.s32 32, 32
      %4567 = vsyncadd [#allocation3], %s4566
      %s4569 = sshll.u32 [#allocation2], 4
      %s4570 = int_to_ptr.vmem [resolvable:$true] %s4569
      %4572 = dma.vmem_to_hbm [thread:$0]  %s4570, 32, %s20, [#allocation3]
    $region85: #{vit_forward.1} parent=1 // pred_fallthru
      _
    // Predicated region
    $region86: #{vit_forward.1} parent=1 // pred_check
      _
    $region87: #{vit_forward.1} parent=1 // pred_check_branch
      %4574 = sbr.rel (0) target = $region89
    $region88: #{vit_forward.1} parent=1 // pred_region
      %4575 = dma.done [#allocation3], 32
    $region89: #{vit_forward.1} parent=1 // pred_fallthru
      _
    %4576 = vsyncpa [#allocation3], 1

</llo_original>
